<compile_context>
chip_gen: v5e
topology: v5e:2x2
jax: 0.10.0
libtpu: 0.0.40
codegen_flags: <defaults>
</compile_context>

<pallas_src>
import functools

import jax
import jax.numpy as jnp
from jax.experimental import pallas as pl
from jax.experimental.pallas import tpu as pltpu

IN_FEATURES = 80 * 80          # 6400
HIDDEN = 256
OUT = 1


def _round_up(x, m):
    return (x + m - 1) // m * m


def pg_forward_kernel(x_ref, w1_ref, b1_ref, w2_ref, b2_ref, o_ref):
    """Fused MLP forward for one batch tile.

    x_ref : (bm, 6400)   bf16 input tile (bf16 at the producer; no in-kernel cast)
    w1_ref: (6400, 256)  bf16, VMEM-resident across batch tiles
    b1_ref: (1, 256)     f32
    w2_ref: (1, 256)     f32 row (PyTorch (out=1, in=256) layout)
    b2_ref: (1, 1)       f32 scalar in SMEM
    o_ref : (bm, 1)      f32 output tile
    """
    # fc1 on the MXU: bf16 x bf16 -> f32 accumulate, whole K=6400 in one shot.
    h = jnp.dot(x_ref[...], w1_ref[...], preferred_element_type=jnp.float32)
    # bias + ReLU in f32 (v5e-safe elementwise math).
    h = jnp.maximum(h + b1_ref[...], 0.0)
    # fc2 (256 -> 1) as VPU multiply + lane reduction instead of an N=1 MXU op.
    logit = jnp.sum(h * w2_ref[...], axis=-1, keepdims=True) + b2_ref[0, 0]
    o_ref[...] = jax.nn.sigmoid(logit).astype(o_ref.dtype)


@functools.partial(jax.jit, static_argnames=("block_b",))
def pg_forward(observation, w1, b1, w2, b2, *, block_b=512):
    """observation: (B, 6400), ideally already bf16 at the producer.
    w1: (6400, 256) bf16 (required), b1: (1, 256) f32, w2: (1, 256) f32 row,
    b2: (1, 1) f32.  Returns (B, 1) f32."""
    B, K = observation.shape
    assert K == IN_FEATURES
    assert w1.dtype == jnp.bfloat16, (
        "Store W1 in bf16 once at init (see init_params/demo); a per-call "
        "f32->bf16 cast would add ~10 MB of HBM traffic on every call.")

    # x should already be bf16 at the producer (0/1 frames are exact in bf16);
    # this astype is a trace-time no-op in that case and only a safety net for
    # f32 callers.
    x = observation.astype(jnp.bfloat16)

    # Batch tile: sublane-aligned; large (block_b=512) for big batches to
    # amortize the ~0.35 us per-grid-step pipeline overhead, but never fewer
    # than 2 grid steps when the batch allows it, so the "parallel" batch axis
    # can split across v7x's two TensorCores (no effect on single-TC v5e/v6e).
    b_aligned = _round_up(B, 8)
    if b_aligned <= 2 * block_b:
        bm = max(8, _round_up(-(-b_aligned // 2), 8))   # ceil(b_aligned/2), 8-aligned
    else:
        bm = block_b
    padded_b = _round_up(b_aligned, bm)
    if padded_b != B:
        x = jnp.pad(x, ((0, padded_b - B), (0, 0)))

    out = pl.pallas_call(
        pg_forward_kernel,
        out_shape=jax.ShapeDtypeStruct((padded_b, OUT), jnp.float32),
        grid_spec=pltpu.PrefetchScalarGridSpec(
            num_scalar_prefetch=0,
            grid=(padded_b // bm,),
            in_specs=[
                pl.BlockSpec((bm, IN_FEATURES), lambda i: (i, 0)),      # x tile (bf16)
                pl.BlockSpec((IN_FEATURES, HIDDEN), lambda i: (0, 0)),  # W1 (bf16, resident)
                pl.BlockSpec((1, HIDDEN), lambda i: (0, 0)),            # b1 (f32)
                pl.BlockSpec((1, HIDDEN), lambda i: (0, 0)),            # w2 row (f32)
                pl.BlockSpec(memory_space=pltpu.MemorySpace.SMEM),      # b2 scalar
            ],
            out_specs=pl.BlockSpec((bm, OUT), lambda i: (i, 0)),
        ),
        compiler_params=pltpu.CompilerParams(
            dimension_semantics=("parallel",),
            # bm=512 bf16 x (2 bufs, 13.1 MB) + bf16 W1 (2 bufs, 6.6 MB)
            # + compiler scratch comfortably fits; well under v7x's 64 MiB.
            vmem_limit_bytes=40 * 1024 * 1024,
        ),
    )(x, w1, b1, w2, b2)

    # TODO(synk): rollout regime (B~1 per frame) is ~100% W1-DMA bound; at the
    # call site either batch frames across timesteps, compress W1 (int8 on
    # v5e/v6e, fp8-e4m3 on v7x -- its MXU has no integer path), or keep W1
    # resident across calls via a cross-pallas_call prefetch (P10).
    return out[:B]


def init_params(key):
    """Deterministic init mirroring the PyTorch module:
       xavier_normal for Linear weights, PyTorch-default uniform for biases.
       w1 stored as (in, out); w2 kept as the PyTorch (out=1, in=256) row."""
    k1, k2, k3, k4 = jax.random.split(key, 4)

    def xavier_normal(k, shape, fan_in, fan_out):
        std = jnp.sqrt(2.0 / (fan_in + fan_out))
        return jax.random.normal(k, shape, jnp.float32) * std

    w1 = xavier_normal(k1, (IN_FEATURES, HIDDEN), IN_FEATURES, HIDDEN)
    w2 = xavier_normal(k2, (1, HIDDEN), HIDDEN, OUT)          # (out, in) row
    bound1 = 1.0 / jnp.sqrt(jnp.float32(IN_FEATURES))
    bound2 = 1.0 / jnp.sqrt(jnp.float32(HIDDEN))
    b1 = jax.random.uniform(k3, (1, HIDDEN), jnp.float32, -bound1, bound1)
    b2 = jax.random.uniform(k4, (1, OUT), jnp.float32, -bound2, bound2)
    return w1, b1, w2, b2


def pg_forward_ref_f32(x, w1, b1, w2, b2):
    h = jnp.maximum(x @ w1 + b1, 0.0)
    return jax.nn.sigmoid(h @ w2.T + b2)


def pg_forward_ref_bf16(x, w1, b1, w2, b2):
    h = jnp.dot(x.astype(jnp.bfloat16), w1.astype(jnp.bfloat16),
                preferred_element_type=jnp.float32)
    h = jnp.maximum(h + b1, 0.0)
    return jax.nn.sigmoid(h @ w2.T + b2)


if __name__ == "__main__":
    key = jax.random.PRNGKey(0)
    kx, kp = jax.random.split(key)

    batch = 8  # small, sublane-aligned demo batch
    # Pong-style preprocessed frames are 0/1-valued -> bf16 storage is lossless.
    observation = jax.random.bernoulli(
        kx, 0.12, (batch, IN_FEATURES)).astype(jnp.float32)
    obs_bf16 = observation.astype(jnp.bfloat16)   # producer-side cast, once

    w1, b1, w2, b2 = init_params(kp)
    w1_bf16 = w1.astype(jnp.bfloat16)             # W1 stored bf16 once at init

    out = pg_forward(obs_bf16, w1_bf16, b1, w2, b2)
    out = jax.block_until_ready(out)

    assert out.shape == (batch, OUT) and out.dtype == jnp.float32

    ref_bf16 = pg_forward_ref_bf16(observation, w1, b1, w2, b2)
    assert jnp.allclose(out, ref_bf16, atol=1e-3, rtol=1e-3), \
        "mismatch vs bf16-matched reference"

    ref_f32 = pg_forward_ref_f32(observation, w1, b1, w2, b2)
    assert jnp.allclose(out, ref_f32, atol=3e-2, rtol=3e-2), \
        "mismatch vs f32 reference"

    print("KERNEL_OK")
</pallas_src>

<mosaic_0001>
module attributes {stable_mosaic.version = 11 : i64} {
  func.func @pg_forward_kernel(%arg0: i32, %arg1: memref<8x6400xbf16, #tpu.memory_space<vmem>>, %arg2: memref<6400x256xbf16, #tpu.memory_space<vmem>>, %arg3: memref<1x256xf32, #tpu.memory_space<vmem>>, %arg4: memref<1x256xf32, #tpu.memory_space<vmem>>, %arg5: memref<1x1xf32, #tpu.memory_space<smem>>, %arg6: memref<8x1xf32, #tpu.memory_space<vmem>>) attributes {dimension_semantics = [#tpu.dimension_semantics<parallel>], iteration_bounds = array<i64: 1>, scalar_prefetch = 0 : i64, scratch_operands = 0 : i64, tpu.core_type = #tpu.core_type<tc>, window_params = [{transform_indices = @transform_0, window_bounds = array<i64: 8, 6400>}, {pipeline_mode = #tpu.pipeline_mode<synchronous>, transform_indices = @transform_1, window_bounds = array<i64: 6400, 256>}, {pipeline_mode = #tpu.pipeline_mode<synchronous>, transform_indices = @transform_2, window_bounds = array<i64: 1, 256>}, {pipeline_mode = #tpu.pipeline_mode<synchronous>, transform_indices = @transform_3, window_bounds = array<i64: 1, 256>}, {transform_indices = @transform_4, window_bounds = array<i64: 1, 1>}, {transform_indices = @transform_5, window_bounds = array<i64: 8, 1>}]} {
    %c0 = arith.constant 0 : index
    %c0_0 = arith.constant 0 : index
    %0 = vector.load %arg1[%c0, %c0_0] : memref<8x6400xbf16, #tpu.memory_space<vmem>>, vector<8x6400xbf16>
    %c0_1 = arith.constant 0 : index
    %c0_2 = arith.constant 0 : index
    %1 = vector.load %arg2[%c0_1, %c0_2] : memref<6400x256xbf16, #tpu.memory_space<vmem>>, vector<6400x256xbf16>
    %cst = arith.constant dense<0.000000e+00> : vector<8x256xf32>
    %2 = tpu.matmul %0, %1, %cst {dimension_numbers = #tpu.dot_dimension_numbers<[1], [0], [0], [1], [0, 0, 1, 1], [], []>} : vector<8x6400xbf16>, vector<6400x256xbf16>, vector<8x256xf32> -> vector<8x256xf32>
    %c0_3 = arith.constant 0 : index
    %c0_4 = arith.constant 0 : index
    %3 = vector.load %arg3[%c0_3, %c0_4] : memref<1x256xf32, #tpu.memory_space<vmem>>, vector<1x256xf32>
    %4 = vector.broadcast %3 : vector<1x256xf32> to vector<8x256xf32>
    %5 = arith.addf %2, %4 : vector<8x256xf32>
    %cst_5 = arith.constant 0.000000e+00 : f32
    %6 = vector.broadcast %cst_5 : f32 to vector<8x256xf32>
    %7 = arith.maximumf %5, %6 : vector<8x256xf32>
    %c0_6 = arith.constant 0 : index
    %c0_7 = arith.constant 0 : index
    %8 = vector.load %arg4[%c0_6, %c0_7] : memref<1x256xf32, #tpu.memory_space<vmem>>, vector<1x256xf32>
    %9 = vector.broadcast %8 : vector<1x256xf32> to vector<8x256xf32>
    %10 = arith.mulf %7, %9 : vector<8x256xf32>
    %cst_8 = arith.constant dense<0.000000e+00> : vector<8xf32>
    %11 = vector.multi_reduction <add>, %10, %cst_8 [1] : vector<8x256xf32> to vector<8xf32>
    %12 = vector.shape_cast %11 : vector<8xf32> to vector<8x1xf32>
    %c0_9 = arith.constant 0 : index
    %c0_10 = arith.constant 0 : index
    %13 = memref.load %arg5[%c0_9, %c0_10] : memref<1x1xf32, #tpu.memory_space<smem>>
    %14 = vector.broadcast %13 : f32 to vector<8x1xf32>
    %15 = arith.addf %12, %14 : vector<8x1xf32>
    %16 = arith.negf %15 : vector<8x1xf32>
    %17 = math.exp %16 : vector<8x1xf32>
    %cst_11 = arith.constant 1.000000e+00 : f32
    %18 = vector.broadcast %cst_11 : f32 to vector<8x1xf32>
    %19 = arith.addf %18, %17 : vector<8x1xf32>
    %20 = arith.divf %18, %19 : vector<8x1xf32>
    %c0_12 = arith.constant 0 : index
    %c0_13 = arith.constant 0 : index
    %21 = vector.load %arg6[%c0_12, %c0_13] : memref<8x1xf32, #tpu.memory_space<vmem>>, vector<8x1xf32>
    tpu.vector_store %arg6[%c0_12, %c0_13], %20 {strides = array<i32>} : memref<8x1xf32, #tpu.memory_space<vmem>>, vector<8x1xf32>,
    return
  }
  func.func @transform_0(%arg0: i32) -> (i32, i32) {
    %c0_i32 = arith.constant 0 : i32
    %c0_i32_0 = arith.constant 0 : i32
    return %arg0, %c0_i32 : i32, i32
  }
  func.func @transform_1(%arg0: i32) -> (i32, i32) {
    %c0_i32 = arith.constant 0 : i32
    %c0_i32_0 = arith.constant 0 : i32
    %c0_i32_1 = arith.constant 0 : i32
    return %c0_i32, %c0_i32_0 : i32, i32
  }
  func.func @transform_2(%arg0: i32) -> (i32, i32) {
    %c0_i32 = arith.constant 0 : i32
    %c0_i32_0 = arith.constant 0 : i32
    %c0_i32_1 = arith.constant 0 : i32
    return %c0_i32, %c0_i32_0 : i32, i32
  }
  func.func @transform_3(%arg0: i32) -> (i32, i32) {
    %c0_i32 = arith.constant 0 : i32
    %c0_i32_0 = arith.constant 0 : i32
    %c0_i32_1 = arith.constant 0 : i32
    return %c0_i32, %c0_i32_0 : i32, i32
  }
  func.func @transform_4(%arg0: i32) -> (i32, i32) {
    %c0_i32 = arith.constant 0 : i32
    %c0_i32_0 = arith.constant 0 : i32
    %c0_i32_1 = arith.constant 0 : i32
    return %c0_i32, %c0_i32_0 : i32, i32
  }
  func.func @transform_5(%arg0: i32) -> (i32, i32) {
    %c0_i32 = arith.constant 0 : i32
    %c0_i32_0 = arith.constant 0 : i32
    return %arg0, %c0_i32 : i32, i32
  }
}

</mosaic_0001>

<llo_original>
// kernel: pg_forward.1
$region0: #{pg_forward.1}
  #allocation0 [shape = 'u32[]', space=smem, size = 0x4, offset = 0x4, fixed_abs, tag = 'smem constant byte address 0x4 - core index']
  #allocation1 [shape = 'u32[72,128]{1,0:T(1,128)}', space=vmem, size = 0x9000, scoped, tag = 'internal scratch']
  #allocation2 [shape = 'f32[1,1]{1,0:T(1,128)S(6)}', space=smem, size = 0x200, scoped, tag = 'scoped memory for pg_forward.1']
  %s0 = inlined_call_operand.hbm [shape: bf16[8,6400], index: 0, kind: input, shape index: {}]
  %s1 = inlined_call_operand.hbm [shape: bf16[6400,256], index: 1, kind: input, shape index: {}]
  %s2 = inlined_call_operand.hbm [shape: f32[1,256], index: 2, kind: input, shape index: {}]
  %s3 = inlined_call_operand.hbm [shape: f32[1,256], index: 3, kind: input, shape index: {}]
  %s4 = inlined_call_operand.<no memory space> [shape: f32[1,1], index: 4, kind: input, shape index: {}]
  %s5 = inlined_call_operand.vmem [shape: f32[8,1], index: 5, kind: output, shape index: {}]
  %s6 = sld [smem:[#allocation0]]
  $region46: #{pg_forward.1} parent=0
    _
  %s8 = ssub.s32 1, %s6
  %s9 = scalar_select 0, %s8, %s6
  %10 = sst [smem:[#allocation2]] %s4
  $region1: #{pg_forward.1} parent=0
    #allocation3 [shape = 'u8[102400]{0}', space=vmem, size = 0x19000, scoped, tag = 'input window, operand 0, single buffered']
    #allocation4 [shape = 's32[1]{0}', space=sflag, size = 0x4, scoped, tag = 'scoped memory for pg_forward.1']
    #allocation5 [shape = 'u8[3276800]{0}', space=vmem, size = 0x320000, scoped, tag = 'input window, operand 1, single buffered']
    #allocation6 [shape = 's32[1]{0}', space=sflag, size = 0x4, scoped, tag = 'scoped memory for pg_forward.1']
    #allocation7 [shape = 'u8[1024]{0}', space=vmem, size = 0x400, scoped, tag = 'input window, operand 2, single buffered']
    #allocation8 [shape = 'u8[1024]{0}', space=vmem, size = 0x400, scoped, tag = 'input window, operand 3, single buffered']
    #allocation9 [shape = 's32[1]{0}', space=sflag, size = 0x4, scoped, tag = 'scoped memory for pg_forward.1']
    %11 = vsyncpa [#allocation4], 0
    %12 = vsyncpa [#allocation6], 0
    %13 = vsyncpa [#allocation9], 0
    // Predicated region
    $region2: #{pg_forward.1} parent=1 // pred_check
      _
    $region3: #{pg_forward.1} parent=1 // pred_check_branch
      %15 = sbr.rel (0) target = $region5
    $region4: #{pg_forward.1} parent=1 // pred_region
      %17 = vsyncadd [#allocation4], 0
      %s19 = sshll.u32 %s0, 4
      %s20 = int_to_ptr.hbm [resolvable:$true] %s19
      %s21 = sshll.u32 [#allocation3], 4
      %s22 = int_to_ptr.vmem [resolvable:$true] %s21
      %24 = dma.hbm_to_vmem [thread:$0]  %s20, 3200, %s22, [#allocation4]
    $region5: #{pg_forward.1} parent=1 // pred_fallthru
      _
    // Predicated region
    $region6: #{pg_forward.1} parent=1 // pred_check
      _
    $region7: #{pg_forward.1} parent=1 // pred_check_branch
      %26 = sbr.rel (0) target = $region9
    $region8: #{pg_forward.1} parent=1 // pred_region
      %28 = vsyncadd [#allocation6], 0
      %s29 = sshll.u32 %s1, 4
      %s30 = int_to_ptr.hbm [resolvable:$true] %s29
      %s31 = sshll.u32 [#allocation5], 4
      %s32 = int_to_ptr.vmem [resolvable:$true] %s31
      %37 = dma.hbm_to_vmem [thread:$0]  %s30, 102400, %s32, [#allocation6], 128, 128, 8
    $region9: #{pg_forward.1} parent=1 // pred_fallthru
      _
    // Predicated region
    $region10: #{pg_forward.1} parent=1 // pred_check
      _
    $region11: #{pg_forward.1} parent=1 // pred_check_branch
      %39 = sbr.rel (0) target = $region13
    $region12: #{pg_forward.1} parent=1 // pred_region
      %41 = vsyncadd [#allocation6], 0
      %s43 = sshll.u32 %s2, 4
      %s44 = int_to_ptr.hbm [resolvable:$true] %s43
      %s45 = sshll.u32 [#allocation7], 4
      %s46 = int_to_ptr.vmem [resolvable:$true] %s45
      %48 = dma.hbm_to_vmem [thread:$0]  %s44, 32, %s46, [#allocation6]
    $region13: #{pg_forward.1} parent=1 // pred_fallthru
      _
    // Predicated region
    $region14: #{pg_forward.1} parent=1 // pred_check
      _
    $region15: #{pg_forward.1} parent=1 // pred_check_branch
      %50 = sbr.rel (0) target = $region17
    $region16: #{pg_forward.1} parent=1 // pred_region
      %52 = vsyncadd [#allocation9], 0
      %s54 = sshll.u32 %s3, 4
      %s55 = int_to_ptr.hbm [resolvable:$true] %s54
      %s56 = sshll.u32 [#allocation8], 4
      %s57 = int_to_ptr.vmem [resolvable:$true] %s56
      %59 = dma.hbm_to_vmem [thread:$0]  %s55, 32, %s57, [#allocation9]
    $region17: #{pg_forward.1} parent=1 // pred_fallthru
      _
    // Predicated region
    $region18: #{pg_forward.1} parent=1 // pred_check
      _
    $region19: #{pg_forward.1} parent=1 // pred_check_branch
      %61 = sbr.rel (0) target = $region21
    $region20: #{pg_forward.1} parent=1 // pred_region
      _
    $region21: #{pg_forward.1} parent=1 // pred_fallthru
      _
    // Predicated region
    $region22: #{pg_forward.1} parent=1 // pred_check
      _
    $region23: #{pg_forward.1} parent=1 // pred_check_branch
      %63 = sbr.rel (0) target = $region25
    $region24: #{pg_forward.1} parent=1 // pred_region
      %65 = dma.done [#allocation4], 3200
    $region25: #{pg_forward.1} parent=1 // pred_fallthru
      _
    // Predicated region
    $region26: #{pg_forward.1} parent=1 // pred_check
      _
    $region27: #{pg_forward.1} parent=1 // pred_check_branch
      %67 = sbr.rel (0) target = $region29
    $region28: #{pg_forward.1} parent=1 // pred_region
      %69 = dma.done [#allocation6], 102400
    $region29: #{pg_forward.1} parent=1 // pred_fallthru
      _
    // Predicated region
    $region30: #{pg_forward.1} parent=1 // pred_check
      _
    $region31: #{pg_forward.1} parent=1 // pred_check_branch
      %71 = sbr.rel (0) target = $region33
    $region32: #{pg_forward.1} parent=1 // pred_region
      %73 = dma.done [#allocation6], 32
    $region33: #{pg_forward.1} parent=1 // pred_fallthru
      _
    // Predicated region
    $region34: #{pg_forward.1} parent=1 // pred_check
      _
    $region35: #{pg_forward.1} parent=1 // pred_check_branch
      %75 = sbr.rel (0) target = $region37
    $region36: #{pg_forward.1} parent=1 // pred_region
      %77 = dma.done [#allocation9], 32
    $region37: #{pg_forward.1} parent=1 // pred_fallthru
      _
    %v78 = vld [vmem:[#allocation3] sm:$0xff]
    %v79 = vld [vmem:[#allocation3 + $0x8] sm:$0xff]
    %v80 = vld [vmem:[#allocation3 + $0x10] sm:$0xff]
    %v81 = vld [vmem:[#allocation3 + $0x18] sm:$0xff]
    %v82 = vld [vmem:[#allocation3 + $0x20] sm:$0xff]
    %v83 = vld [vmem:[#allocation3 + $0x28] sm:$0xff]
    %v84 = vld [vmem:[#allocation3 + $0x30] sm:$0xff]
    %v85 = vld [vmem:[#allocation3 + $0x38] sm:$0xff]
    %v86 = vld [vmem:[#allocation3 + $0x40] sm:$0xff]
    %v87 = vld [vmem:[#allocation3 + $0x48] sm:$0xff]
    %v88 = vld [vmem:[#allocation3 + $0x50] sm:$0xff]
    %v89 = vld [vmem:[#allocation3 + $0x58] sm:$0xff]
    %v90 = vld [vmem:[#allocation3 + $0x60] sm:$0xff]
    %v91 = vld [vmem:[#allocation3 + $0x68] sm:$0xff]
    %v92 = vld [vmem:[#allocation3 + $0x70] sm:$0xff]
    %v93 = vld [vmem:[#allocation3 + $0x78] sm:$0xff]
    %v94 = vld [vmem:[#allocation3 + $0x80] sm:$0xff]
    %v95 = vld [vmem:[#allocation3 + $0x88] sm:$0xff]
    %v96 = vld [vmem:[#allocation3 + $0x90] sm:$0xff]
    %v97 = vld [vmem:[#allocation3 + $0x98] sm:$0xff]
    %v98 = vld [vmem:[#allocation3 + $0xa0] sm:$0xff]
    %v99 = vld [vmem:[#allocation3 + $0xa8] sm:$0xff]
    %v100 = vld [vmem:[#allocation3 + $0xb0] sm:$0xff]
    %v101 = vld [vmem:[#allocation3 + $0xb8] sm:$0xff]
    %v102 = vld [vmem:[#allocation3 + $0xc0] sm:$0xff]
    %v103 = vld [vmem:[#allocation5] sm:$0xff]
    %v104 = vld [vmem:[#allocation5 + $0x8] sm:$0xff]
    %v105 = vld [vmem:[#allocation5 + $0x10] sm:$0xff]
    %v106 = vld [vmem:[#allocation5 + $0x18] sm:$0xff]
    %v107 = vld [vmem:[#allocation5 + $0x20] sm:$0xff]
    %v108 = vld [vmem:[#allocation5 + $0x28] sm:$0xff]
    %v109 = vld [vmem:[#allocation5 + $0x30] sm:$0xff]
    %v110 = vld [vmem:[#allocation5 + $0x38] sm:$0xff]
    %v111 = vld [vmem:[#allocation5 + $0x40] sm:$0xff]
    %v112 = vld [vmem:[#allocation5 + $0x48] sm:$0xff]
    %v113 = vld [vmem:[#allocation5 + $0x50] sm:$0xff]
    %v114 = vld [vmem:[#allocation5 + $0x58] sm:$0xff]
    %v115 = vld [vmem:[#allocation5 + $0x60] sm:$0xff]
    %v116 = vld [vmem:[#allocation5 + $0x68] sm:$0xff]
    %v117 = vld [vmem:[#allocation5 + $0x70] sm:$0xff]
    %v118 = vld [vmem:[#allocation5 + $0x78] sm:$0xff]
    %v119 = vld [vmem:[#allocation5 + $0x80] sm:$0xff]
    %v120 = vld [vmem:[#allocation5 + $0x88] sm:$0xff]
    %v121 = vld [vmem:[#allocation5 + $0x90] sm:$0xff]
    %v122 = vld [vmem:[#allocation5 + $0x98] sm:$0xff]
    %v123 = vld [vmem:[#allocation5 + $0xa0] sm:$0xff]
    %v124 = vld [vmem:[#allocation5 + $0xa8] sm:$0xff]
    %v125 = vld [vmem:[#allocation5 + $0xb0] sm:$0xff]
    %v126 = vld [vmem:[#allocation5 + $0xb8] sm:$0xff]
    %v127 = vld [vmem:[#allocation5 + $0xc0] sm:$0xff]
    %v128 = vld [vmem:[#allocation5 + $0xc8] sm:$0xff]
    %v129 = vld [vmem:[#allocation5 + $0xd0] sm:$0xff]
    %v130 = vld [vmem:[#allocation5 + $0xd8] sm:$0xff]
    %v131 = vld [vmem:[#allocation5 + $0xe0] sm:$0xff]
    %v132 = vld [vmem:[#allocation5 + $0xe8] sm:$0xff]
    %v133 = vld [vmem:[#allocation5 + $0xf0] sm:$0xff]
    %v134 = vld [vmem:[#allocation5 + $0xf8] sm:$0xff]
    %v135 = vld [vmem:[#allocation5 + $0x100] sm:$0xff]
    %v136 = vld [vmem:[#allocation5 + $0x108] sm:$0xff]
    %v137 = vld [vmem:[#allocation5 + $0x110] sm:$0xff]
    %v138 = vld [vmem:[#allocation5 + $0x118] sm:$0xff]
    %v139 = vld [vmem:[#allocation5 + $0x120] sm:$0xff]
    %v140 = vld [vmem:[#allocation5 + $0x128] sm:$0xff]
    %v141 = vld [vmem:[#allocation5 + $0x130] sm:$0xff]
    %v142 = vld [vmem:[#allocation5 + $0x138] sm:$0xff]
    %v143 = vld [vmem:[#allocation5 + $0x140] sm:$0xff]
    %v144 = vld [vmem:[#allocation5 + $0x148] sm:$0xff]
    %v145 = vld [vmem:[#allocation5 + $0x150] sm:$0xff]
    %v146 = vld [vmem:[#allocation5 + $0x158] sm:$0xff]
    %v147 = vld [vmem:[#allocation5 + $0x160] sm:$0xff]
    %v148 = vld [vmem:[#allocation5 + $0x168] sm:$0xff]
    %v149 = vld [vmem:[#allocation5 + $0x170] sm:$0xff]
    %v150 = vld [vmem:[#allocation5 + $0x178] sm:$0xff]
    %v151 = vld [vmem:[#allocation5 + $0x180] sm:$0xff]
    %v152 = vld [vmem:[#allocation5 + $0x188] sm:$0xff]
    %v153 = vld [vmem:[#allocation5 + $0x190] sm:$0xff]
    %v154 = vld [vmem:[#allocation5 + $0x198] sm:$0xff]
    %v155 = vld [vmem:[#allocation5 + $0x1a0] sm:$0xff]
    %v156 = vld [vmem:[#allocation5 + $0x1a8] sm:$0xff]
    %v157 = vld [vmem:[#allocation5 + $0x1b0] sm:$0xff]
    %v158 = vld [vmem:[#allocation5 + $0x1b8] sm:$0xff]
    %v159 = vld [vmem:[#allocation5 + $0x1c0] sm:$0xff]
    %v160 = vld [vmem:[#allocation5 + $0x1c8] sm:$0xff]
    %v161 = vld [vmem:[#allocation5 + $0x1d0] sm:$0xff]
    %v162 = vld [vmem:[#allocation5 + $0x1d8] sm:$0xff]
    %v163 = vld [vmem:[#allocation5 + $0x1e0] sm:$0xff]
    %v164 = vld [vmem:[#allocation5 + $0x1e8] sm:$0xff]
    %v165 = vld [vmem:[#allocation5 + $0x1f0] sm:$0xff]
    %v166 = vld [vmem:[#allocation5 + $0x1f8] sm:$0xff]
    %v167 = vld [vmem:[#allocation5 + $0x200] sm:$0xff]
    %v168 = vld [vmem:[#allocation5 + $0x208] sm:$0xff]
    %v169 = vld [vmem:[#allocation5 + $0x210] sm:$0xff]
    %v170 = vld [vmem:[#allocation5 + $0x218] sm:$0xff]
    %v171 = vld [vmem:[#allocation5 + $0x220] sm:$0xff]
    %v172 = vld [vmem:[#allocation5 + $0x228] sm:$0xff]
    %v173 = vld [vmem:[#allocation5 + $0x230] sm:$0xff]
    %v174 = vld [vmem:[#allocation5 + $0x238] sm:$0xff]
    %v175 = vld [vmem:[#allocation5 + $0x240] sm:$0xff]
    %v176 = vld [vmem:[#allocation5 + $0x248] sm:$0xff]
    %v177 = vld [vmem:[#allocation5 + $0x250] sm:$0xff]
    %v178 = vld [vmem:[#allocation5 + $0x258] sm:$0xff]
    %v179 = vld [vmem:[#allocation5 + $0x260] sm:$0xff]
    %v180 = vld [vmem:[#allocation5 + $0x268] sm:$0xff]
    %v181 = vld [vmem:[#allocation5 + $0x270] sm:$0xff]
    %v182 = vld [vmem:[#allocation5 + $0x278] sm:$0xff]
    %v183 = vld [vmem:[#allocation5 + $0x280] sm:$0xff]
    %v184 = vld [vmem:[#allocation5 + $0x288] sm:$0xff]
    %v185 = vld [vmem:[#allocation5 + $0x290] sm:$0xff]
    %v186 = vld [vmem:[#allocation5 + $0x298] sm:$0xff]
    %v187 = vld [vmem:[#allocation5 + $0x2a0] sm:$0xff]
    %v188 = vld [vmem:[#allocation5 + $0x2a8] sm:$0xff]
    %v189 = vld [vmem:[#allocation5 + $0x2b0] sm:$0xff]
    %v190 = vld [vmem:[#allocation5 + $0x2b8] sm:$0xff]
    %v191 = vld [vmem:[#allocation5 + $0x2c0] sm:$0xff]
    %v192 = vld [vmem:[#allocation5 + $0x2c8] sm:$0xff]
    %v193 = vld [vmem:[#allocation5 + $0x2d0] sm:$0xff]
    %v194 = vld [vmem:[#allocation5 + $0x2d8] sm:$0xff]
    %v195 = vld [vmem:[#allocation5 + $0x2e0] sm:$0xff]
    %v196 = vld [vmem:[#allocation5 + $0x2e8] sm:$0xff]
    %v197 = vld [vmem:[#allocation5 + $0x2f0] sm:$0xff]
    %v198 = vld [vmem:[#allocation5 + $0x2f8] sm:$0xff]
    %v199 = vld [vmem:[#allocation5 + $0x300] sm:$0xff]
    %v200 = vld [vmem:[#allocation5 + $0x308] sm:$0xff]
    %v201 = vld [vmem:[#allocation5 + $0x310] sm:$0xff]
    %v202 = vld [vmem:[#allocation5 + $0x318] sm:$0xff]
    %v203 = vld [vmem:[#allocation5 + $0x320] sm:$0xff]
    %v204 = vld [vmem:[#allocation5 + $0x328] sm:$0xff]
    %v205 = vld [vmem:[#allocation5 + $0x330] sm:$0xff]
    %v206 = vld [vmem:[#allocation5 + $0x338] sm:$0xff]
    %v207 = vld [vmem:[#allocation5 + $0x340] sm:$0xff]
    %v208 = vld [vmem:[#allocation5 + $0x348] sm:$0xff]
    %v209 = vld [vmem:[#allocation5 + $0x350] sm:$0xff]
    %v210 = vld [vmem:[#allocation5 + $0x358] sm:$0xff]
    %v211 = vld [vmem:[#allocation5 + $0x360] sm:$0xff]
    %v212 = vld [vmem:[#allocation5 + $0x368] sm:$0xff]
    %v213 = vld [vmem:[#allocation5 + $0x370] sm:$0xff]
    %v214 = vld [vmem:[#allocation5 + $0x378] sm:$0xff]
    %v215 = vld [vmem:[#allocation5 + $0x380] sm:$0xff]
    %v216 = vld [vmem:[#allocation5 + $0x388] sm:$0xff]
    %v217 = vld [vmem:[#allocation5 + $0x390] sm:$0xff]
    %v218 = vld [vmem:[#allocation5 + $0x398] sm:$0xff]
    %v219 = vld [vmem:[#allocation5 + $0x3a0] sm:$0xff]
    %v220 = vld [vmem:[#allocation5 + $0x3a8] sm:$0xff]
    %v221 = vld [vmem:[#allocation5 + $0x3b0] sm:$0xff]
    %v222 = vld [vmem:[#allocation5 + $0x3b8] sm:$0xff]
    %v223 = vld [vmem:[#allocation5 + $0x3c0] sm:$0xff]
    %v224 = vld [vmem:[#allocation5 + $0x3c8] sm:$0xff]
    %v225 = vld [vmem:[#allocation5 + $0x3d0] sm:$0xff]
    %v226 = vld [vmem:[#allocation5 + $0x3d8] sm:$0xff]
    %v227 = vld [vmem:[#allocation5 + $0x3e0] sm:$0xff]
    %v228 = vld [vmem:[#allocation5 + $0x3e8] sm:$0xff]
    %v229 = vld [vmem:[#allocation5 + $0x3f0] sm:$0xff]
    %v230 = vld [vmem:[#allocation5 + $0x3f8] sm:$0xff]
    %v231 = vld [vmem:[#allocation5 + $0x400] sm:$0xff]
    %v232 = vld [vmem:[#allocation5 + $0x408] sm:$0xff]
    %v233 = vld [vmem:[#allocation5 + $0x410] sm:$0xff]
    %v234 = vld [vmem:[#allocation5 + $0x418] sm:$0xff]
    %v235 = vld [vmem:[#allocation5 + $0x420] sm:$0xff]
    %v236 = vld [vmem:[#allocation5 + $0x428] sm:$0xff]
    %v237 = vld [vmem:[#allocation5 + $0x430] sm:$0xff]
    %v238 = vld [vmem:[#allocation5 + $0x438] sm:$0xff]
    %v239 = vld [vmem:[#allocation5 + $0x440] sm:$0xff]
    %v240 = vld [vmem:[#allocation5 + $0x448] sm:$0xff]
    %v241 = vld [vmem:[#allocation5 + $0x450] sm:$0xff]
    %v242 = vld [vmem:[#allocation5 + $0x458] sm:$0xff]
    %v243 = vld [vmem:[#allocation5 + $0x460] sm:$0xff]
    %v244 = vld [vmem:[#allocation5 + $0x468] sm:$0xff]
    %v245 = vld [vmem:[#allocation5 + $0x470] sm:$0xff]
    %v246 = vld [vmem:[#allocation5 + $0x478] sm:$0xff]
    %v247 = vld [vmem:[#allocation5 + $0x480] sm:$0xff]
    %v248 = vld [vmem:[#allocation5 + $0x488] sm:$0xff]
    %v249 = vld [vmem:[#allocation5 + $0x490] sm:$0xff]
    %v250 = vld [vmem:[#allocation5 + $0x498] sm:$0xff]
    %v251 = vld [vmem:[#allocation5 + $0x4a0] sm:$0xff]
    %v252 = vld [vmem:[#allocation5 + $0x4a8] sm:$0xff]
    %v253 = vld [vmem:[#allocation5 + $0x4b0] sm:$0xff]
    %v254 = vld [vmem:[#allocation5 + $0x4b8] sm:$0xff]
    %v255 = vld [vmem:[#allocation5 + $0x4c0] sm:$0xff]
    %v256 = vld [vmem:[#allocation5 + $0x4c8] sm:$0xff]
    %v257 = vld [vmem:[#allocation5 + $0x4d0] sm:$0xff]
    %v258 = vld [vmem:[#allocation5 + $0x4d8] sm:$0xff]
    %v259 = vld [vmem:[#allocation5 + $0x4e0] sm:$0xff]
    %v260 = vld [vmem:[#allocation5 + $0x4e8] sm:$0xff]
    %v261 = vld [vmem:[#allocation5 + $0x4f0] sm:$0xff]
    %v262 = vld [vmem:[#allocation5 + $0x4f8] sm:$0xff]
    %v263 = vld [vmem:[#allocation5 + $0x500] sm:$0xff]
    %v264 = vld [vmem:[#allocation5 + $0x508] sm:$0xff]
    %v265 = vld [vmem:[#allocation5 + $0x510] sm:$0xff]
    %v266 = vld [vmem:[#allocation5 + $0x518] sm:$0xff]
    %v267 = vld [vmem:[#allocation5 + $0x520] sm:$0xff]
    %v268 = vld [vmem:[#allocation5 + $0x528] sm:$0xff]
    %v269 = vld [vmem:[#allocation5 + $0x530] sm:$0xff]
    %v270 = vld [vmem:[#allocation5 + $0x538] sm:$0xff]
    %v271 = vld [vmem:[#allocation5 + $0x540] sm:$0xff]
    %v272 = vld [vmem:[#allocation5 + $0x548] sm:$0xff]
    %v273 = vld [vmem:[#allocation5 + $0x550] sm:$0xff]
    %v274 = vld [vmem:[#allocation5 + $0x558] sm:$0xff]
    %v275 = vld [vmem:[#allocation5 + $0x560] sm:$0xff]
    %v276 = vld [vmem:[#allocation5 + $0x568] sm:$0xff]
    %v277 = vld [vmem:[#allocation5 + $0x570] sm:$0xff]
    %v278 = vld [vmem:[#allocation5 + $0x578] sm:$0xff]
    %v279 = vld [vmem:[#allocation5 + $0x580] sm:$0xff]
    %v280 = vld [vmem:[#allocation5 + $0x588] sm:$0xff]
    %v281 = vld [vmem:[#allocation5 + $0x590] sm:$0xff]
    %v282 = vld [vmem:[#allocation5 + $0x598] sm:$0xff]
    %v283 = vld [vmem:[#allocation5 + $0x5a0] sm:$0xff]
    %v284 = vld [vmem:[#allocation5 + $0x5a8] sm:$0xff]
    %v285 = vld [vmem:[#allocation5 + $0x5b0] sm:$0xff]
    %v286 = vld [vmem:[#allocation5 + $0x5b8] sm:$0xff]
    %v287 = vld [vmem:[#allocation5 + $0x5c0] sm:$0xff]
    %v288 = vld [vmem:[#allocation5 + $0x5c8] sm:$0xff]
    %v289 = vld [vmem:[#allocation5 + $0x5d0] sm:$0xff]
    %v290 = vld [vmem:[#allocation5 + $0x5d8] sm:$0xff]
    %v291 = vld [vmem:[#allocation5 + $0x5e0] sm:$0xff]
    %v292 = vld [vmem:[#allocation5 + $0x5e8] sm:$0xff]
    %v293 = vld [vmem:[#allocation5 + $0x5f0] sm:$0xff]
    %v294 = vld [vmem:[#allocation5 + $0x5f8] sm:$0xff]
    %v295 = vld [vmem:[#allocation5 + $0x600] sm:$0xff]
    %v296 = vld [vmem:[#allocation5 + $0x608] sm:$0xff]
    %v297 = vld [vmem:[#allocation5 + $0x610] sm:$0xff]
    %v298 = vld [vmem:[#allocation5 + $0x618] sm:$0xff]
    %v299 = vld [vmem:[#allocation5 + $0x620] sm:$0xff]
    %v300 = vld [vmem:[#allocation5 + $0x628] sm:$0xff]
    %v301 = vld [vmem:[#allocation5 + $0x630] sm:$0xff]
    %v302 = vld [vmem:[#allocation5 + $0x638] sm:$0xff]
    %v303 = vld [vmem:[#allocation5 + $0x640] sm:$0xff]
    %v304 = vld [vmem:[#allocation5 + $0x648] sm:$0xff]
    %v305 = vld [vmem:[#allocation5 + $0x650] sm:$0xff]
    %v306 = vld [vmem:[#allocation5 + $0x658] sm:$0xff]
    %v307 = vld [vmem:[#allocation5 + $0x660] sm:$0xff]
    %v308 = vld [vmem:[#allocation5 + $0x668] sm:$0xff]
    %v309 = vld [vmem:[#allocation5 + $0x670] sm:$0xff]
    %v310 = vld [vmem:[#allocation5 + $0x678] sm:$0xff]
    %v311 = vld [vmem:[#allocation5 + $0x680] sm:$0xff]
    %v312 = vld [vmem:[#allocation5 + $0x688] sm:$0xff]
    %v313 = vld [vmem:[#allocation5 + $0x690] sm:$0xff]
    %v314 = vld [vmem:[#allocation5 + $0x698] sm:$0xff]
    %v315 = vld [vmem:[#allocation5 + $0x6a0] sm:$0xff]
    %v316 = vld [vmem:[#allocation5 + $0x6a8] sm:$0xff]
    %v317 = vld [vmem:[#allocation5 + $0x6b0] sm:$0xff]
    %v318 = vld [vmem:[#allocation5 + $0x6b8] sm:$0xff]
    %v319 = vld [vmem:[#allocation5 + $0x6c0] sm:$0xff]
    %v320 = vld [vmem:[#allocation5 + $0x6c8] sm:$0xff]
    %v321 = vld [vmem:[#allocation5 + $0x6d0] sm:$0xff]
    %v322 = vld [vmem:[#allocation5 + $0x6d8] sm:$0xff]
    %v323 = vld [vmem:[#allocation5 + $0x6e0] sm:$0xff]
    %v324 = vld [vmem:[#allocation5 + $0x6e8] sm:$0xff]
    %v325 = vld [vmem:[#allocation5 + $0x6f0] sm:$0xff]
    %v326 = vld [vmem:[#allocation5 + $0x6f8] sm:$0xff]
    %v327 = vld [vmem:[#allocation5 + $0x700] sm:$0xff]
    %v328 = vld [vmem:[#allocation5 + $0x708] sm:$0xff]
    %v329 = vld [vmem:[#allocation5 + $0x710] sm:$0xff]
    %v330 = vld [vmem:[#allocation5 + $0x718] sm:$0xff]
    %v331 = vld [vmem:[#allocation5 + $0x720] sm:$0xff]
    %v332 = vld [vmem:[#allocation5 + $0x728] sm:$0xff]
    %v333 = vld [vmem:[#allocation5 + $0x730] sm:$0xff]
    %v334 = vld [vmem:[#allocation5 + $0x738] sm:$0xff]
    %v335 = vld [vmem:[#allocation5 + $0x740] sm:$0xff]
    %v336 = vld [vmem:[#allocation5 + $0x748] sm:$0xff]
    %v337 = vld [vmem:[#allocation5 + $0x750] sm:$0xff]
    %v338 = vld [vmem:[#allocation5 + $0x758] sm:$0xff]
    %v339 = vld [vmem:[#allocation5 + $0x760] sm:$0xff]
    %v340 = vld [vmem:[#allocation5 + $0x768] sm:$0xff]
    %v341 = vld [vmem:[#allocation5 + $0x770] sm:$0xff]
    %v342 = vld [vmem:[#allocation5 + $0x778] sm:$0xff]
    %v343 = vld [vmem:[#allocation5 + $0x780] sm:$0xff]
    %v344 = vld [vmem:[#allocation5 + $0x788] sm:$0xff]
    %v345 = vld [vmem:[#allocation5 + $0x790] sm:$0xff]
    %v346 = vld [vmem:[#allocation5 + $0x798] sm:$0xff]
    %v347 = vld [vmem:[#allocation5 + $0x7a0] sm:$0xff]
    %v348 = vld [vmem:[#allocation5 + $0x7a8] sm:$0xff]
    %v349 = vld [vmem:[#allocation5 + $0x7b0] sm:$0xff]
    %v350 = vld [vmem:[#allocation5 + $0x7b8] sm:$0xff]
    %v351 = vld [vmem:[#allocation5 + $0x7c0] sm:$0xff]
    %v352 = vld [vmem:[#allocation5 + $0x7c8] sm:$0xff]
    %v353 = vld [vmem:[#allocation5 + $0x7d0] sm:$0xff]
    %v354 = vld [vmem:[#allocation5 + $0x7d8] sm:$0xff]
    %v355 = vld [vmem:[#allocation5 + $0x7e0] sm:$0xff]
    %v356 = vld [vmem:[#allocation5 + $0x7e8] sm:$0xff]
    %v357 = vld [vmem:[#allocation5 + $0x7f0] sm:$0xff]
    %v358 = vld [vmem:[#allocation5 + $0x7f8] sm:$0xff]
    %v359 = vld [vmem:[#allocation5 + $0x800] sm:$0xff]
    %v360 = vld [vmem:[#allocation5 + $0x808] sm:$0xff]
    %v361 = vld [vmem:[#allocation5 + $0x810] sm:$0xff]
    %v362 = vld [vmem:[#allocation5 + $0x818] sm:$0xff]
    %v363 = vld [vmem:[#allocation5 + $0x820] sm:$0xff]
    %v364 = vld [vmem:[#allocation5 + $0x828] sm:$0xff]
    %v365 = vld [vmem:[#allocation5 + $0x830] sm:$0xff]
    %v366 = vld [vmem:[#allocation5 + $0x838] sm:$0xff]
    %v367 = vld [vmem:[#allocation5 + $0x840] sm:$0xff]
    %v368 = vld [vmem:[#allocation5 + $0x848] sm:$0xff]
    %v369 = vld [vmem:[#allocation5 + $0x850] sm:$0xff]
    %v370 = vld [vmem:[#allocation5 + $0x858] sm:$0xff]
    %v371 = vld [vmem:[#allocation5 + $0x860] sm:$0xff]
    %v372 = vld [vmem:[#allocation5 + $0x868] sm:$0xff]
    %v373 = vld [vmem:[#allocation5 + $0x870] sm:$0xff]
    %v374 = vld [vmem:[#allocation5 + $0x878] sm:$0xff]
    %v375 = vld [vmem:[#allocation5 + $0x880] sm:$0xff]
    %v376 = vld [vmem:[#allocation5 + $0x888] sm:$0xff]
    %v377 = vld [vmem:[#allocation5 + $0x890] sm:$0xff]
    %v378 = vld [vmem:[#allocation5 + $0x898] sm:$0xff]
    %v379 = vld [vmem:[#allocation5 + $0x8a0] sm:$0xff]
    %v380 = vld [vmem:[#allocation5 + $0x8a8] sm:$0xff]
    %v381 = vld [vmem:[#allocation5 + $0x8b0] sm:$0xff]
    %v382 = vld [vmem:[#allocation5 + $0x8b8] sm:$0xff]
    %v383 = vld [vmem:[#allocation5 + $0x8c0] sm:$0xff]
    %v384 = vld [vmem:[#allocation5 + $0x8c8] sm:$0xff]
    %v385 = vld [vmem:[#allocation5 + $0x8d0] sm:$0xff]
    %v386 = vld [vmem:[#allocation5 + $0x8d8] sm:$0xff]
    %v387 = vld [vmem:[#allocation5 + $0x8e0] sm:$0xff]
    %v388 = vld [vmem:[#allocation5 + $0x8e8] sm:$0xff]
    %v389 = vld [vmem:[#allocation5 + $0x8f0] sm:$0xff]
    %v390 = vld [vmem:[#allocation5 + $0x8f8] sm:$0xff]
    %v391 = vld [vmem:[#allocation5 + $0x900] sm:$0xff]
    %v392 = vld [vmem:[#allocation5 + $0x908] sm:$0xff]
    %v393 = vld [vmem:[#allocation5 + $0x910] sm:$0xff]
    %v394 = vld [vmem:[#allocation5 + $0x918] sm:$0xff]
    %v395 = vld [vmem:[#allocation5 + $0x920] sm:$0xff]
    %v396 = vld [vmem:[#allocation5 + $0x928] sm:$0xff]
    %v397 = vld [vmem:[#allocation5 + $0x930] sm:$0xff]
    %v398 = vld [vmem:[#allocation5 + $0x938] sm:$0xff]
    %v399 = vld [vmem:[#allocation5 + $0x940] sm:$0xff]
    %v400 = vld [vmem:[#allocation5 + $0x948] sm:$0xff]
    %v401 = vld [vmem:[#allocation5 + $0x950] sm:$0xff]
    %v402 = vld [vmem:[#allocation5 + $0x958] sm:$0xff]
    %v403 = vld [vmem:[#allocation5 + $0x960] sm:$0xff]
    %v404 = vld [vmem:[#allocation5 + $0x968] sm:$0xff]
    %v405 = vld [vmem:[#allocation5 + $0x970] sm:$0xff]
    %v406 = vld [vmem:[#allocation5 + $0x978] sm:$0xff]
    %v407 = vld [vmem:[#allocation5 + $0x980] sm:$0xff]
    %v408 = vld [vmem:[#allocation5 + $0x988] sm:$0xff]
    %v409 = vld [vmem:[#allocation5 + $0x990] sm:$0xff]
    %v410 = vld [vmem:[#allocation5 + $0x998] sm:$0xff]
    %v411 = vld [vmem:[#allocation5 + $0x9a0] sm:$0xff]
    %v412 = vld [vmem:[#allocation5 + $0x9a8] sm:$0xff]
    %v413 = vld [vmem:[#allocation5 + $0x9b0] sm:$0xff]
    %v414 = vld [vmem:[#allocation5 + $0x9b8] sm:$0xff]
    %v415 = vld [vmem:[#allocation5 + $0x9c0] sm:$0xff]
    %v416 = vld [vmem:[#allocation5 + $0x9c8] sm:$0xff]
    %v417 = vld [vmem:[#allocation5 + $0x9d0] sm:$0xff]
    %v418 = vld [vmem:[#allocation5 + $0x9d8] sm:$0xff]
    %v419 = vld [vmem:[#allocation5 + $0x9e0] sm:$0xff]
    %v420 = vld [vmem:[#allocation5 + $0x9e8] sm:$0xff]
    %v421 = vld [vmem:[#allocation5 + $0x9f0] sm:$0xff]
    %v422 = vld [vmem:[#allocation5 + $0x9f8] sm:$0xff]
    %v423 = vld [vmem:[#allocation5 + $0xa00] sm:$0xff]
    %v424 = vld [vmem:[#allocation5 + $0xa08] sm:$0xff]
    %v425 = vld [vmem:[#allocation5 + $0xa10] sm:$0xff]
    %v426 = vld [vmem:[#allocation5 + $0xa18] sm:$0xff]
    %v427 = vld [vmem:[#allocation5 + $0xa20] sm:$0xff]
    %v428 = vld [vmem:[#allocation5 + $0xa28] sm:$0xff]
    %v429 = vld [vmem:[#allocation5 + $0xa30] sm:$0xff]
    %v430 = vld [vmem:[#allocation5 + $0xa38] sm:$0xff]
    %v431 = vld [vmem:[#allocation5 + $0xa40] sm:$0xff]
    %v432 = vld [vmem:[#allocation5 + $0xa48] sm:$0xff]
    %v433 = vld [vmem:[#allocation5 + $0xa50] sm:$0xff]
    %v434 = vld [vmem:[#allocation5 + $0xa58] sm:$0xff]
    %v435 = vld [vmem:[#allocation5 + $0xa60] sm:$0xff]
    %v436 = vld [vmem:[#allocation5 + $0xa68] sm:$0xff]
    %v437 = vld [vmem:[#allocation5 + $0xa70] sm:$0xff]
    %v438 = vld [vmem:[#allocation5 + $0xa78] sm:$0xff]
    %v439 = vld [vmem:[#allocation5 + $0xa80] sm:$0xff]
    %v440 = vld [vmem:[#allocation5 + $0xa88] sm:$0xff]
    %v441 = vld [vmem:[#allocation5 + $0xa90] sm:$0xff]
    %v442 = vld [vmem:[#allocation5 + $0xa98] sm:$0xff]
    %v443 = vld [vmem:[#allocation5 + $0xaa0] sm:$0xff]
    %v444 = vld [vmem:[#allocation5 + $0xaa8] sm:$0xff]
    %v445 = vld [vmem:[#allocation5 + $0xab0] sm:$0xff]
    %v446 = vld [vmem:[#allocation5 + $0xab8] sm:$0xff]
    %v447 = vld [vmem:[#allocation5 + $0xac0] sm:$0xff]
    %v448 = vld [vmem:[#allocation5 + $0xac8] sm:$0xff]
    %v449 = vld [vmem:[#allocation5 + $0xad0] sm:$0xff]
    %v450 = vld [vmem:[#allocation5 + $0xad8] sm:$0xff]
    %v451 = vld [vmem:[#allocation5 + $0xae0] sm:$0xff]
    %v452 = vld [vmem:[#allocation5 + $0xae8] sm:$0xff]
    %v453 = vld [vmem:[#allocation5 + $0xaf0] sm:$0xff]
    %v454 = vld [vmem:[#allocation5 + $0xaf8] sm:$0xff]
    %v455 = vld [vmem:[#allocation5 + $0xb00] sm:$0xff]
    %v456 = vld [vmem:[#allocation5 + $0xb08] sm:$0xff]
    %v457 = vld [vmem:[#allocation5 + $0xb10] sm:$0xff]
    %v458 = vld [vmem:[#allocation5 + $0xb18] sm:$0xff]
    %v459 = vld [vmem:[#allocation5 + $0xb20] sm:$0xff]
    %v460 = vld [vmem:[#allocation5 + $0xb28] sm:$0xff]
    %v461 = vld [vmem:[#allocation5 + $0xb30] sm:$0xff]
    %v462 = vld [vmem:[#allocation5 + $0xb38] sm:$0xff]
    %v463 = vld [vmem:[#allocation5 + $0xb40] sm:$0xff]
    %v464 = vld [vmem:[#allocation5 + $0xb48] sm:$0xff]
    %v465 = vld [vmem:[#allocation5 + $0xb50] sm:$0xff]
    %v466 = vld [vmem:[#allocation5 + $0xb58] sm:$0xff]
    %v467 = vld [vmem:[#allocation5 + $0xb60] sm:$0xff]
    %v468 = vld [vmem:[#allocation5 + $0xb68] sm:$0xff]
    %v469 = vld [vmem:[#allocation5 + $0xb70] sm:$0xff]
    %v470 = vld [vmem:[#allocation5 + $0xb78] sm:$0xff]
    %v471 = vld [vmem:[#allocation5 + $0xb80] sm:$0xff]
    %v472 = vld [vmem:[#allocation5 + $0xb88] sm:$0xff]
    %v473 = vld [vmem:[#allocation5 + $0xb90] sm:$0xff]
    %v474 = vld [vmem:[#allocation5 + $0xb98] sm:$0xff]
    %v475 = vld [vmem:[#allocation5 + $0xba0] sm:$0xff]
    %v476 = vld [vmem:[#allocation5 + $0xba8] sm:$0xff]
    %v477 = vld [vmem:[#allocation5 + $0xbb0] sm:$0xff]
    %v478 = vld [vmem:[#allocation5 + $0xbb8] sm:$0xff]
    %v479 = vld [vmem:[#allocation5 + $0xbc0] sm:$0xff]
    %v480 = vld [vmem:[#allocation5 + $0xbc8] sm:$0xff]
    %v481 = vld [vmem:[#allocation5 + $0xbd0] sm:$0xff]
    %v482 = vld [vmem:[#allocation5 + $0xbd8] sm:$0xff]
    %v483 = vld [vmem:[#allocation5 + $0xbe0] sm:$0xff]
    %v484 = vld [vmem:[#allocation5 + $0xbe8] sm:$0xff]
    %v485 = vld [vmem:[#allocation5 + $0xbf0] sm:$0xff]
    %v486 = vld [vmem:[#allocation5 + $0xbf8] sm:$0xff]
    %v487 = vld [vmem:[#allocation5 + $0xc00] sm:$0xff]
    %v488 = vld [vmem:[#allocation5 + $0xc08] sm:$0xff]
    %v489 = vld [vmem:[#allocation5 + $0xc10] sm:$0xff]
    %v490 = vld [vmem:[#allocation5 + $0xc18] sm:$0xff]
    %v491 = vld [vmem:[#allocation5 + $0xc20] sm:$0xff]
    %v492 = vld [vmem:[#allocation5 + $0xc28] sm:$0xff]
    %v493 = vld [vmem:[#allocation5 + $0xc30] sm:$0xff]
    %v494 = vld [vmem:[#allocation5 + $0xc38] sm:$0xff]
    %v495 = vld [vmem:[#allocation5 + $0xc40] sm:$0xff]
    %v496 = vld [vmem:[#allocation5 + $0xc48] sm:$0xff]
    %v497 = vld [vmem:[#allocation5 + $0xc50] sm:$0xff]
    %v498 = vld [vmem:[#allocation5 + $0xc58] sm:$0xff]
    %v499 = vld [vmem:[#allocation5 + $0xc60] sm:$0xff]
    %v500 = vld [vmem:[#allocation5 + $0xc68] sm:$0xff]
    %v501 = vld [vmem:[#allocation5 + $0xc70] sm:$0xff]
    %v502 = vld [vmem:[#allocation5 + $0xc78] sm:$0xff]
    %v503 = vld [vmem:[#allocation5 + $0xc80] sm:$0xff]
    %v504 = vld [vmem:[#allocation5 + $0xc88] sm:$0xff]
    %v505 = vld [vmem:[#allocation5 + $0xc90] sm:$0xff]
    %v506 = vld [vmem:[#allocation5 + $0xc98] sm:$0xff]
    %v507 = vld [vmem:[#allocation5 + $0xca0] sm:$0xff]
    %v508 = vld [vmem:[#allocation5 + $0xca8] sm:$0xff]
    %v509 = vld [vmem:[#allocation5 + $0xcb0] sm:$0xff]
    %v510 = vld [vmem:[#allocation5 + $0xcb8] sm:$0xff]
    %v511 = vld [vmem:[#allocation5 + $0xcc0] sm:$0xff]
    %v512 = vld [vmem:[#allocation5 + $0xcc8] sm:$0xff]
    %v513 = vld [vmem:[#allocation5 + $0xcd0] sm:$0xff]
    %v514 = vld [vmem:[#allocation5 + $0xcd8] sm:$0xff]
    %v515 = vld [vmem:[#allocation5 + $0xce0] sm:$0xff]
    %v516 = vld [vmem:[#allocation5 + $0xce8] sm:$0xff]
    %v517 = vld [vmem:[#allocation5 + $0xcf0] sm:$0xff]
    %v518 = vld [vmem:[#allocation5 + $0xcf8] sm:$0xff]
    %v519 = vld [vmem:[#allocation5 + $0xd00] sm:$0xff]
    %v520 = vld [vmem:[#allocation5 + $0xd08] sm:$0xff]
    %v521 = vld [vmem:[#allocation5 + $0xd10] sm:$0xff]
    %v522 = vld [vmem:[#allocation5 + $0xd18] sm:$0xff]
    %v523 = vld [vmem:[#allocation5 + $0xd20] sm:$0xff]
    %v524 = vld [vmem:[#allocation5 + $0xd28] sm:$0xff]
    %v525 = vld [vmem:[#allocation5 + $0xd30] sm:$0xff]
    %v526 = vld [vmem:[#allocation5 + $0xd38] sm:$0xff]
    %v527 = vld [vmem:[#allocation5 + $0xd40] sm:$0xff]
    %v528 = vld [vmem:[#allocation5 + $0xd48] sm:$0xff]
    %v529 = vld [vmem:[#allocation5 + $0xd50] sm:$0xff]
    %v530 = vld [vmem:[#allocation5 + $0xd58] sm:$0xff]
    %v531 = vld [vmem:[#allocation5 + $0xd60] sm:$0xff]
    %v532 = vld [vmem:[#allocation5 + $0xd68] sm:$0xff]
    %v533 = vld [vmem:[#allocation5 + $0xd70] sm:$0xff]
    %v534 = vld [vmem:[#allocation5 + $0xd78] sm:$0xff]
    %v535 = vld [vmem:[#allocation5 + $0xd80] sm:$0xff]
    %v536 = vld [vmem:[#allocation5 + $0xd88] sm:$0xff]
    %v537 = vld [vmem:[#allocation5 + $0xd90] sm:$0xff]
    %v538 = vld [vmem:[#allocation5 + $0xd98] sm:$0xff]
    %v539 = vld [vmem:[#allocation5 + $0xda0] sm:$0xff]
    %v540 = vld [vmem:[#allocation5 + $0xda8] sm:$0xff]
    %v541 = vld [vmem:[#allocation5 + $0xdb0] sm:$0xff]
    %v542 = vld [vmem:[#allocation5 + $0xdb8] sm:$0xff]
    %v543 = vld [vmem:[#allocation5 + $0xdc0] sm:$0xff]
    %v544 = vld [vmem:[#allocation5 + $0xdc8] sm:$0xff]
    %v545 = vld [vmem:[#allocation5 + $0xdd0] sm:$0xff]
    %v546 = vld [vmem:[#allocation5 + $0xdd8] sm:$0xff]
    %v547 = vld [vmem:[#allocation5 + $0xde0] sm:$0xff]
    %v548 = vld [vmem:[#allocation5 + $0xde8] sm:$0xff]
    %v549 = vld [vmem:[#allocation5 + $0xdf0] sm:$0xff]
    %v550 = vld [vmem:[#allocation5 + $0xdf8] sm:$0xff]
    %v551 = vld [vmem:[#allocation5 + $0xe00] sm:$0xff]
    %v552 = vld [vmem:[#allocation5 + $0xe08] sm:$0xff]
    %v553 = vld [vmem:[#allocation5 + $0xe10] sm:$0xff]
    %v554 = vld [vmem:[#allocation5 + $0xe18] sm:$0xff]
    %v555 = vld [vmem:[#allocation5 + $0xe20] sm:$0xff]
    %v556 = vld [vmem:[#allocation5 + $0xe28] sm:$0xff]
    %v557 = vld [vmem:[#allocation5 + $0xe30] sm:$0xff]
    %v558 = vld [vmem:[#allocation5 + $0xe38] sm:$0xff]
    %v559 = vld [vmem:[#allocation5 + $0xe40] sm:$0xff]
    %v560 = vld [vmem:[#allocation5 + $0xe48] sm:$0xff]
    %v561 = vld [vmem:[#allocation5 + $0xe50] sm:$0xff]
    %v562 = vld [vmem:[#allocation5 + $0xe58] sm:$0xff]
    %v563 = vld [vmem:[#allocation5 + $0xe60] sm:$0xff]
    %v564 = vld [vmem:[#allocation5 + $0xe68] sm:$0xff]
    %v565 = vld [vmem:[#allocation5 + $0xe70] sm:$0xff]
    %v566 = vld [vmem:[#allocation5 + $0xe78] sm:$0xff]
    %v567 = vld [vmem:[#allocation5 + $0xe80] sm:$0xff]
    %v568 = vld [vmem:[#allocation5 + $0xe88] sm:$0xff]
    %v569 = vld [vmem:[#allocation5 + $0xe90] sm:$0xff]
    %v570 = vld [vmem:[#allocation5 + $0xe98] sm:$0xff]
    %v571 = vld [vmem:[#allocation5 + $0xea0] sm:$0xff]
    %v572 = vld [vmem:[#allocation5 + $0xea8] sm:$0xff]
    %v573 = vld [vmem:[#allocation5 + $0xeb0] sm:$0xff]
    %v574 = vld [vmem:[#allocation5 + $0xeb8] sm:$0xff]
    %v575 = vld [vmem:[#allocation5 + $0xec0] sm:$0xff]
    %v576 = vld [vmem:[#allocation5 + $0xec8] sm:$0xff]
    %v577 = vld [vmem:[#allocation5 + $0xed0] sm:$0xff]
    %v578 = vld [vmem:[#allocation5 + $0xed8] sm:$0xff]
    %v579 = vld [vmem:[#allocation5 + $0xee0] sm:$0xff]
    %v580 = vld [vmem:[#allocation5 + $0xee8] sm:$0xff]
    %v581 = vld [vmem:[#allocation5 + $0xef0] sm:$0xff]
    %v582 = vld [vmem:[#allocation5 + $0xef8] sm:$0xff]
    %v583 = vld [vmem:[#allocation5 + $0xf00] sm:$0xff]
    %v584 = vld [vmem:[#allocation5 + $0xf08] sm:$0xff]
    %v585 = vld [vmem:[#allocation5 + $0xf10] sm:$0xff]
    %v586 = vld [vmem:[#allocation5 + $0xf18] sm:$0xff]
    %v587 = vld [vmem:[#allocation5 + $0xf20] sm:$0xff]
    %v588 = vld [vmem:[#allocation5 + $0xf28] sm:$0xff]
    %v589 = vld [vmem:[#allocation5 + $0xf30] sm:$0xff]
    %v590 = vld [vmem:[#allocation5 + $0xf38] sm:$0xff]
    %v591 = vld [vmem:[#allocation5 + $0xf40] sm:$0xff]
    %v592 = vld [vmem:[#allocation5 + $0xf48] sm:$0xff]
    %v593 = vld [vmem:[#allocation5 + $0xf50] sm:$0xff]
    %v594 = vld [vmem:[#allocation5 + $0xf58] sm:$0xff]
    %v595 = vld [vmem:[#allocation5 + $0xf60] sm:$0xff]
    %v596 = vld [vmem:[#allocation5 + $0xf68] sm:$0xff]
    %v597 = vld [vmem:[#allocation5 + $0xf70] sm:$0xff]
    %v598 = vld [vmem:[#allocation5 + $0xf78] sm:$0xff]
    %v599 = vld [vmem:[#allocation5 + $0xf80] sm:$0xff]
    %v600 = vld [vmem:[#allocation5 + $0xf88] sm:$0xff]
    %v601 = vld [vmem:[#allocation5 + $0xf90] sm:$0xff]
    %v602 = vld [vmem:[#allocation5 + $0xf98] sm:$0xff]
    %v603 = vld [vmem:[#allocation5 + $0xfa0] sm:$0xff]
    %v604 = vld [vmem:[#allocation5 + $0xfa8] sm:$0xff]
    %v605 = vld [vmem:[#allocation5 + $0xfb0] sm:$0xff]
    %v606 = vld [vmem:[#allocation5 + $0xfb8] sm:$0xff]
    %v607 = vld [vmem:[#allocation5 + $0xfc0] sm:$0xff]
    %v608 = vld [vmem:[#allocation5 + $0xfc8] sm:$0xff]
    %v609 = vld [vmem:[#allocation5 + $0xfd0] sm:$0xff]
    %v610 = vld [vmem:[#allocation5 + $0xfd8] sm:$0xff]
    %v611 = vld [vmem:[#allocation5 + $0xfe0] sm:$0xff]
    %v612 = vld [vmem:[#allocation5 + $0xfe8] sm:$0xff]
    %v613 = vld [vmem:[#allocation5 + $0xff0] sm:$0xff]
    %v614 = vld [vmem:[#allocation5 + $0xff8] sm:$0xff]
    %v615 = vld [vmem:[#allocation5 + $0x1000] sm:$0xff]
    %v616 = vld [vmem:[#allocation5 + $0x1008] sm:$0xff]
    %v617 = vld [vmem:[#allocation5 + $0x1010] sm:$0xff]
    %v618 = vld [vmem:[#allocation5 + $0x1018] sm:$0xff]
    %v619 = vld [vmem:[#allocation5 + $0x1020] sm:$0xff]
    %v620 = vld [vmem:[#allocation5 + $0x1028] sm:$0xff]
    %v621 = vld [vmem:[#allocation5 + $0x1030] sm:$0xff]
    %v622 = vld [vmem:[#allocation5 + $0x1038] sm:$0xff]
    %v623 = vld [vmem:[#allocation5 + $0x1040] sm:$0xff]
    %v624 = vld [vmem:[#allocation5 + $0x1048] sm:$0xff]
    %v625 = vld [vmem:[#allocation5 + $0x1050] sm:$0xff]
    %v626 = vld [vmem:[#allocation5 + $0x1058] sm:$0xff]
    %v627 = vld [vmem:[#allocation5 + $0x1060] sm:$0xff]
    %v628 = vld [vmem:[#allocation5 + $0x1068] sm:$0xff]
    %v629 = vld [vmem:[#allocation5 + $0x1070] sm:$0xff]
    %v630 = vld [vmem:[#allocation5 + $0x1078] sm:$0xff]
    %v631 = vld [vmem:[#allocation5 + $0x1080] sm:$0xff]
    %v632 = vld [vmem:[#allocation5 + $0x1088] sm:$0xff]
    %v633 = vld [vmem:[#allocation5 + $0x1090] sm:$0xff]
    %v634 = vld [vmem:[#allocation5 + $0x1098] sm:$0xff]
    %v635 = vld [vmem:[#allocation5 + $0x10a0] sm:$0xff]
    %v636 = vld [vmem:[#allocation5 + $0x10a8] sm:$0xff]
    %v637 = vld [vmem:[#allocation5 + $0x10b0] sm:$0xff]
    %v638 = vld [vmem:[#allocation5 + $0x10b8] sm:$0xff]
    %v639 = vld [vmem:[#allocation5 + $0x10c0] sm:$0xff]
    %v640 = vld [vmem:[#allocation5 + $0x10c8] sm:$0xff]
    %v641 = vld [vmem:[#allocation5 + $0x10d0] sm:$0xff]
    %v642 = vld [vmem:[#allocation5 + $0x10d8] sm:$0xff]
    %v643 = vld [vmem:[#allocation5 + $0x10e0] sm:$0xff]
    %v644 = vld [vmem:[#allocation5 + $0x10e8] sm:$0xff]
    %v645 = vld [vmem:[#allocation5 + $0x10f0] sm:$0xff]
    %v646 = vld [vmem:[#allocation5 + $0x10f8] sm:$0xff]
    %v647 = vld [vmem:[#allocation5 + $0x1100] sm:$0xff]
    %v648 = vld [vmem:[#allocation5 + $0x1108] sm:$0xff]
    %v649 = vld [vmem:[#allocation5 + $0x1110] sm:$0xff]
    %v650 = vld [vmem:[#allocation5 + $0x1118] sm:$0xff]
    %v651 = vld [vmem:[#allocation5 + $0x1120] sm:$0xff]
    %v652 = vld [vmem:[#allocation5 + $0x1128] sm:$0xff]
    %v653 = vld [vmem:[#allocation5 + $0x1130] sm:$0xff]
    %v654 = vld [vmem:[#allocation5 + $0x1138] sm:$0xff]
    %v655 = vld [vmem:[#allocation5 + $0x1140] sm:$0xff]
    %v656 = vld [vmem:[#allocation5 + $0x1148] sm:$0xff]
    %v657 = vld [vmem:[#allocation5 + $0x1150] sm:$0xff]
    %v658 = vld [vmem:[#allocation5 + $0x1158] sm:$0xff]
    %v659 = vld [vmem:[#allocation5 + $0x1160] sm:$0xff]
    %v660 = vld [vmem:[#allocation5 + $0x1168] sm:$0xff]
    %v661 = vld [vmem:[#allocation5 + $0x1170] sm:$0xff]
    %v662 = vld [vmem:[#allocation5 + $0x1178] sm:$0xff]
    %v663 = vld [vmem:[#allocation5 + $0x1180] sm:$0xff]
    %v664 = vld [vmem:[#allocation5 + $0x1188] sm:$0xff]
    %v665 = vld [vmem:[#allocation5 + $0x1190] sm:$0xff]
    %v666 = vld [vmem:[#allocation5 + $0x1198] sm:$0xff]
    %v667 = vld [vmem:[#allocation5 + $0x11a0] sm:$0xff]
    %v668 = vld [vmem:[#allocation5 + $0x11a8] sm:$0xff]
    %v669 = vld [vmem:[#allocation5 + $0x11b0] sm:$0xff]
    %v670 = vld [vmem:[#allocation5 + $0x11b8] sm:$0xff]
    %v671 = vld [vmem:[#allocation5 + $0x11c0] sm:$0xff]
    %v672 = vld [vmem:[#allocation5 + $0x11c8] sm:$0xff]
    %v673 = vld [vmem:[#allocation5 + $0x11d0] sm:$0xff]
    %v674 = vld [vmem:[#allocation5 + $0x11d8] sm:$0xff]
    %v675 = vld [vmem:[#allocation5 + $0x11e0] sm:$0xff]
    %v676 = vld [vmem:[#allocation5 + $0x11e8] sm:$0xff]
    %v677 = vld [vmem:[#allocation5 + $0x11f0] sm:$0xff]
    %v678 = vld [vmem:[#allocation5 + $0x11f8] sm:$0xff]
    %v679 = vld [vmem:[#allocation5 + $0x1200] sm:$0xff]
    %v680 = vld [vmem:[#allocation5 + $0x1208] sm:$0xff]
    %v681 = vld [vmem:[#allocation5 + $0x1210] sm:$0xff]
    %v682 = vld [vmem:[#allocation5 + $0x1218] sm:$0xff]
    %v683 = vld [vmem:[#allocation5 + $0x1220] sm:$0xff]
    %v684 = vld [vmem:[#allocation5 + $0x1228] sm:$0xff]
    %v685 = vld [vmem:[#allocation5 + $0x1230] sm:$0xff]
    %v686 = vld [vmem:[#allocation5 + $0x1238] sm:$0xff]
    %v687 = vld [vmem:[#allocation5 + $0x1240] sm:$0xff]
    %v688 = vld [vmem:[#allocation5 + $0x1248] sm:$0xff]
    %v689 = vld [vmem:[#allocation5 + $0x1250] sm:$0xff]
    %v690 = vld [vmem:[#allocation5 + $0x1258] sm:$0xff]
    %v691 = vld [vmem:[#allocation5 + $0x1260] sm:$0xff]
    %v692 = vld [vmem:[#allocation5 + $0x1268] sm:$0xff]
    %v693 = vld [vmem:[#allocation5 + $0x1270] sm:$0xff]
    %v694 = vld [vmem:[#allocation5 + $0x1278] sm:$0xff]
    %v695 = vld [vmem:[#allocation5 + $0x1280] sm:$0xff]
    %v696 = vld [vmem:[#allocation5 + $0x1288] sm:$0xff]
    %v697 = vld [vmem:[#allocation5 + $0x1290] sm:$0xff]
    %v698 = vld [vmem:[#allocation5 + $0x1298] sm:$0xff]
    %v699 = vld [vmem:[#allocation5 + $0x12a0] sm:$0xff]
    %v700 = vld [vmem:[#allocation5 + $0x12a8] sm:$0xff]
    %v701 = vld [vmem:[#allocation5 + $0x12b0] sm:$0xff]
    %v702 = vld [vmem:[#allocation5 + $0x12b8] sm:$0xff]
    %v703 = vld [vmem:[#allocation5 + $0x12c0] sm:$0xff]
    %v704 = vld [vmem:[#allocation5 + $0x12c8] sm:$0xff]
    %v705 = vld [vmem:[#allocation5 + $0x12d0] sm:$0xff]
    %v706 = vld [vmem:[#allocation5 + $0x12d8] sm:$0xff]
    %v707 = vld [vmem:[#allocation5 + $0x12e0] sm:$0xff]
    %v708 = vld [vmem:[#allocation5 + $0x12e8] sm:$0xff]
    %v709 = vld [vmem:[#allocation5 + $0x12f0] sm:$0xff]
    %v710 = vld [vmem:[#allocation5 + $0x12f8] sm:$0xff]
    %v711 = vld [vmem:[#allocation5 + $0x1300] sm:$0xff]
    %v712 = vld [vmem:[#allocation5 + $0x1308] sm:$0xff]
    %v713 = vld [vmem:[#allocation5 + $0x1310] sm:$0xff]
    %v714 = vld [vmem:[#allocation5 + $0x1318] sm:$0xff]
    %v715 = vld [vmem:[#allocation5 + $0x1320] sm:$0xff]
    %v716 = vld [vmem:[#allocation5 + $0x1328] sm:$0xff]
    %v717 = vld [vmem:[#allocation5 + $0x1330] sm:$0xff]
    %v718 = vld [vmem:[#allocation5 + $0x1338] sm:$0xff]
    %v719 = vld [vmem:[#allocation5 + $0x1340] sm:$0xff]
    %v720 = vld [vmem:[#allocation5 + $0x1348] sm:$0xff]
    %v721 = vld [vmem:[#allocation5 + $0x1350] sm:$0xff]
    %v722 = vld [vmem:[#allocation5 + $0x1358] sm:$0xff]
    %v723 = vld [vmem:[#allocation5 + $0x1360] sm:$0xff]
    %v724 = vld [vmem:[#allocation5 + $0x1368] sm:$0xff]
    %v725 = vld [vmem:[#allocation5 + $0x1370] sm:$0xff]
    %v726 = vld [vmem:[#allocation5 + $0x1378] sm:$0xff]
    %v727 = vld [vmem:[#allocation5 + $0x1380] sm:$0xff]
    %v728 = vld [vmem:[#allocation5 + $0x1388] sm:$0xff]
    %v729 = vld [vmem:[#allocation5 + $0x1390] sm:$0xff]
    %v730 = vld [vmem:[#allocation5 + $0x1398] sm:$0xff]
    %v731 = vld [vmem:[#allocation5 + $0x13a0] sm:$0xff]
    %v732 = vld [vmem:[#allocation5 + $0x13a8] sm:$0xff]
    %v733 = vld [vmem:[#allocation5 + $0x13b0] sm:$0xff]
    %v734 = vld [vmem:[#allocation5 + $0x13b8] sm:$0xff]
    %v735 = vld [vmem:[#allocation5 + $0x13c0] sm:$0xff]
    %v736 = vld [vmem:[#allocation5 + $0x13c8] sm:$0xff]
    %v737 = vld [vmem:[#allocation5 + $0x13d0] sm:$0xff]
    %v738 = vld [vmem:[#allocation5 + $0x13d8] sm:$0xff]
    %v739 = vld [vmem:[#allocation5 + $0x13e0] sm:$0xff]
    %v740 = vld [vmem:[#allocation5 + $0x13e8] sm:$0xff]
    %v741 = vld [vmem:[#allocation5 + $0x13f0] sm:$0xff]
    %v742 = vld [vmem:[#allocation5 + $0x13f8] sm:$0xff]
    %v743 = vld [vmem:[#allocation5 + $0x1400] sm:$0xff]
    %v744 = vld [vmem:[#allocation5 + $0x1408] sm:$0xff]
    %v745 = vld [vmem:[#allocation5 + $0x1410] sm:$0xff]
    %v746 = vld [vmem:[#allocation5 + $0x1418] sm:$0xff]
    %v747 = vld [vmem:[#allocation5 + $0x1420] sm:$0xff]
    %v748 = vld [vmem:[#allocation5 + $0x1428] sm:$0xff]
    %v749 = vld [vmem:[#allocation5 + $0x1430] sm:$0xff]
    %v750 = vld [vmem:[#allocation5 + $0x1438] sm:$0xff]
    %v751 = vld [vmem:[#allocation5 + $0x1440] sm:$0xff]
    %v752 = vld [vmem:[#allocation5 + $0x1448] sm:$0xff]
    %v753 = vld [vmem:[#allocation5 + $0x1450] sm:$0xff]
    %v754 = vld [vmem:[#allocation5 + $0x1458] sm:$0xff]
    %v755 = vld [vmem:[#allocation5 + $0x1460] sm:$0xff]
    %v756 = vld [vmem:[#allocation5 + $0x1468] sm:$0xff]
    %v757 = vld [vmem:[#allocation5 + $0x1470] sm:$0xff]
    %v758 = vld [vmem:[#allocation5 + $0x1478] sm:$0xff]
    %v759 = vld [vmem:[#allocation5 + $0x1480] sm:$0xff]
    %v760 = vld [vmem:[#allocation5 + $0x1488] sm:$0xff]
    %v761 = vld [vmem:[#allocation5 + $0x1490] sm:$0xff]
    %v762 = vld [vmem:[#allocation5 + $0x1498] sm:$0xff]
    %v763 = vld [vmem:[#allocation5 + $0x14a0] sm:$0xff]
    %v764 = vld [vmem:[#allocation5 + $0x14a8] sm:$0xff]
    %v765 = vld [vmem:[#allocation5 + $0x14b0] sm:$0xff]
    %v766 = vld [vmem:[#allocation5 + $0x14b8] sm:$0xff]
    %v767 = vld [vmem:[#allocation5 + $0x14c0] sm:$0xff]
    %v768 = vld [vmem:[#allocation5 + $0x14c8] sm:$0xff]
    %v769 = vld [vmem:[#allocation5 + $0x14d0] sm:$0xff]
    %v770 = vld [vmem:[#allocation5 + $0x14d8] sm:$0xff]
    %v771 = vld [vmem:[#allocation5 + $0x14e0] sm:$0xff]
    %v772 = vld [vmem:[#allocation5 + $0x14e8] sm:$0xff]
    %v773 = vld [vmem:[#allocation5 + $0x14f0] sm:$0xff]
    %v774 = vld [vmem:[#allocation5 + $0x14f8] sm:$0xff]
    %v775 = vld [vmem:[#allocation5 + $0x1500] sm:$0xff]
    %v776 = vld [vmem:[#allocation5 + $0x1508] sm:$0xff]
    %v777 = vld [vmem:[#allocation5 + $0x1510] sm:$0xff]
    %v778 = vld [vmem:[#allocation5 + $0x1518] sm:$0xff]
    %v779 = vld [vmem:[#allocation5 + $0x1520] sm:$0xff]
    %v780 = vld [vmem:[#allocation5 + $0x1528] sm:$0xff]
    %v781 = vld [vmem:[#allocation5 + $0x1530] sm:$0xff]
    %v782 = vld [vmem:[#allocation5 + $0x1538] sm:$0xff]
    %v783 = vld [vmem:[#allocation5 + $0x1540] sm:$0xff]
    %v784 = vld [vmem:[#allocation5 + $0x1548] sm:$0xff]
    %v785 = vld [vmem:[#allocation5 + $0x1550] sm:$0xff]
    %v786 = vld [vmem:[#allocation5 + $0x1558] sm:$0xff]
    %v787 = vld [vmem:[#allocation5 + $0x1560] sm:$0xff]
    %v788 = vld [vmem:[#allocation5 + $0x1568] sm:$0xff]
    %v789 = vld [vmem:[#allocation5 + $0x1570] sm:$0xff]
    %v790 = vld [vmem:[#allocation5 + $0x1578] sm:$0xff]
    %v791 = vld [vmem:[#allocation5 + $0x1580] sm:$0xff]
    %v792 = vld [vmem:[#allocation5 + $0x1588] sm:$0xff]
    %v793 = vld [vmem:[#allocation5 + $0x1590] sm:$0xff]
    %v794 = vld [vmem:[#allocation5 + $0x1598] sm:$0xff]
    %v795 = vld [vmem:[#allocation5 + $0x15a0] sm:$0xff]
    %v796 = vld [vmem:[#allocation5 + $0x15a8] sm:$0xff]
    %v797 = vld [vmem:[#allocation5 + $0x15b0] sm:$0xff]
    %v798 = vld [vmem:[#allocation5 + $0x15b8] sm:$0xff]
    %v799 = vld [vmem:[#allocation5 + $0x15c0] sm:$0xff]
    %v800 = vld [vmem:[#allocation5 + $0x15c8] sm:$0xff]
    %v801 = vld [vmem:[#allocation5 + $0x15d0] sm:$0xff]
    %v802 = vld [vmem:[#allocation5 + $0x15d8] sm:$0xff]
    %v803 = vld [vmem:[#allocation5 + $0x15e0] sm:$0xff]
    %v804 = vld [vmem:[#allocation5 + $0x15e8] sm:$0xff]
    %v805 = vld [vmem:[#allocation5 + $0x15f0] sm:$0xff]
    %v806 = vld [vmem:[#allocation5 + $0x15f8] sm:$0xff]
    %v807 = vld [vmem:[#allocation5 + $0x1600] sm:$0xff]
    %v808 = vld [vmem:[#allocation5 + $0x1608] sm:$0xff]
    %v809 = vld [vmem:[#allocation5 + $0x1610] sm:$0xff]
    %v810 = vld [vmem:[#allocation5 + $0x1618] sm:$0xff]
    %v811 = vld [vmem:[#allocation5 + $0x1620] sm:$0xff]
    %v812 = vld [vmem:[#allocation5 + $0x1628] sm:$0xff]
    %v813 = vld [vmem:[#allocation5 + $0x1630] sm:$0xff]
    %v814 = vld [vmem:[#allocation5 + $0x1638] sm:$0xff]
    %v815 = vld [vmem:[#allocation5 + $0x1640] sm:$0xff]
    %v816 = vld [vmem:[#allocation5 + $0x1648] sm:$0xff]
    %v817 = vld [vmem:[#allocation5 + $0x1650] sm:$0xff]
    %v818 = vld [vmem:[#allocation5 + $0x1658] sm:$0xff]
    %v819 = vld [vmem:[#allocation5 + $0x1660] sm:$0xff]
    %v820 = vld [vmem:[#allocation5 + $0x1668] sm:$0xff]
    %v821 = vld [vmem:[#allocation5 + $0x1670] sm:$0xff]
    %v822 = vld [vmem:[#allocation5 + $0x1678] sm:$0xff]
    %v823 = vld [vmem:[#allocation5 + $0x1680] sm:$0xff]
    %v824 = vld [vmem:[#allocation5 + $0x1688] sm:$0xff]
    %v825 = vld [vmem:[#allocation5 + $0x1690] sm:$0xff]
    %v826 = vld [vmem:[#allocation5 + $0x1698] sm:$0xff]
    %v827 = vld [vmem:[#allocation5 + $0x16a0] sm:$0xff]
    %v828 = vld [vmem:[#allocation5 + $0x16a8] sm:$0xff]
    %v829 = vld [vmem:[#allocation5 + $0x16b0] sm:$0xff]
    %v830 = vld [vmem:[#allocation5 + $0x16b8] sm:$0xff]
    %v831 = vld [vmem:[#allocation5 + $0x16c0] sm:$0xff]
    %v832 = vld [vmem:[#allocation5 + $0x16c8] sm:$0xff]
    %v833 = vld [vmem:[#allocation5 + $0x16d0] sm:$0xff]
    %v834 = vld [vmem:[#allocation5 + $0x16d8] sm:$0xff]
    %v835 = vld [vmem:[#allocation5 + $0x16e0] sm:$0xff]
    %v836 = vld [vmem:[#allocation5 + $0x16e8] sm:$0xff]
    %v837 = vld [vmem:[#allocation5 + $0x16f0] sm:$0xff]
    %v838 = vld [vmem:[#allocation5 + $0x16f8] sm:$0xff]
    %v839 = vld [vmem:[#allocation5 + $0x1700] sm:$0xff]
    %v840 = vld [vmem:[#allocation5 + $0x1708] sm:$0xff]
    %v841 = vld [vmem:[#allocation5 + $0x1710] sm:$0xff]
    %v842 = vld [vmem:[#allocation5 + $0x1718] sm:$0xff]
    %v843 = vld [vmem:[#allocation5 + $0x1720] sm:$0xff]
    %v844 = vld [vmem:[#allocation5 + $0x1728] sm:$0xff]
    %v845 = vld [vmem:[#allocation5 + $0x1730] sm:$0xff]
    %v846 = vld [vmem:[#allocation5 + $0x1738] sm:$0xff]
    %v847 = vld [vmem:[#allocation5 + $0x1740] sm:$0xff]
    %v848 = vld [vmem:[#allocation5 + $0x1748] sm:$0xff]
    %v849 = vld [vmem:[#allocation5 + $0x1750] sm:$0xff]
    %v850 = vld [vmem:[#allocation5 + $0x1758] sm:$0xff]
    %v851 = vld [vmem:[#allocation5 + $0x1760] sm:$0xff]
    %v852 = vld [vmem:[#allocation5 + $0x1768] sm:$0xff]
    %v853 = vld [vmem:[#allocation5 + $0x1770] sm:$0xff]
    %v854 = vld [vmem:[#allocation5 + $0x1778] sm:$0xff]
    %v855 = vld [vmem:[#allocation5 + $0x1780] sm:$0xff]
    %v856 = vld [vmem:[#allocation5 + $0x1788] sm:$0xff]
    %v857 = vld [vmem:[#allocation5 + $0x1790] sm:$0xff]
    %v858 = vld [vmem:[#allocation5 + $0x1798] sm:$0xff]
    %v859 = vld [vmem:[#allocation5 + $0x17a0] sm:$0xff]
    %v860 = vld [vmem:[#allocation5 + $0x17a8] sm:$0xff]
    %v861 = vld [vmem:[#allocation5 + $0x17b0] sm:$0xff]
    %v862 = vld [vmem:[#allocation5 + $0x17b8] sm:$0xff]
    %v863 = vld [vmem:[#allocation5 + $0x17c0] sm:$0xff]
    %v864 = vld [vmem:[#allocation5 + $0x17c8] sm:$0xff]
    %v865 = vld [vmem:[#allocation5 + $0x17d0] sm:$0xff]
    %v866 = vld [vmem:[#allocation5 + $0x17d8] sm:$0xff]
    %v867 = vld [vmem:[#allocation5 + $0x17e0] sm:$0xff]
    %v868 = vld [vmem:[#allocation5 + $0x17e8] sm:$0xff]
    %v869 = vld [vmem:[#allocation5 + $0x17f0] sm:$0xff]
    %v870 = vld [vmem:[#allocation5 + $0x17f8] sm:$0xff]
    %v871 = vld [vmem:[#allocation5 + $0x1800] sm:$0xff]
    %v872 = vld [vmem:[#allocation5 + $0x1808] sm:$0xff]
    %v873 = vld [vmem:[#allocation5 + $0x1810] sm:$0xff]
    %v874 = vld [vmem:[#allocation5 + $0x1818] sm:$0xff]
    %v875 = vld [vmem:[#allocation5 + $0x1820] sm:$0xff]
    %v876 = vld [vmem:[#allocation5 + $0x1828] sm:$0xff]
    %v877 = vld [vmem:[#allocation5 + $0x1830] sm:$0xff]
    %v878 = vld [vmem:[#allocation5 + $0x1838] sm:$0xff]
    %v879 = vld [vmem:[#allocation5 + $0x1840] sm:$0xff]
    %v880 = vld [vmem:[#allocation5 + $0x1848] sm:$0xff]
    %v881 = vld [vmem:[#allocation5 + $0x1850] sm:$0xff]
    %v882 = vld [vmem:[#allocation5 + $0x1858] sm:$0xff]
    %v883 = vld [vmem:[#allocation5 + $0x1860] sm:$0xff]
    %v884 = vld [vmem:[#allocation5 + $0x1868] sm:$0xff]
    %v885 = vld [vmem:[#allocation5 + $0x1870] sm:$0xff]
    %v886 = vld [vmem:[#allocation5 + $0x1878] sm:$0xff]
    %v887 = vld [vmem:[#allocation5 + $0x1880] sm:$0xff]
    %v888 = vld [vmem:[#allocation5 + $0x1888] sm:$0xff]
    %v889 = vld [vmem:[#allocation5 + $0x1890] sm:$0xff]
    %v890 = vld [vmem:[#allocation5 + $0x1898] sm:$0xff]
    %v891 = vld [vmem:[#allocation5 + $0x18a0] sm:$0xff]
    %v892 = vld [vmem:[#allocation5 + $0x18a8] sm:$0xff]
    %v893 = vld [vmem:[#allocation5 + $0x18b0] sm:$0xff]
    %v894 = vld [vmem:[#allocation5 + $0x18b8] sm:$0xff]
    %v895 = vld [vmem:[#allocation5 + $0x18c0] sm:$0xff]
    %v896 = vld [vmem:[#allocation5 + $0x18c8] sm:$0xff]
    %v897 = vld [vmem:[#allocation5 + $0x18d0] sm:$0xff]
    %v898 = vld [vmem:[#allocation5 + $0x18d8] sm:$0xff]
    %v899 = vld [vmem:[#allocation5 + $0x18e0] sm:$0xff]
    %v900 = vld [vmem:[#allocation5 + $0x18e8] sm:$0xff]
    %v901 = vld [vmem:[#allocation5 + $0x18f0] sm:$0xff]
    %v902 = vld [vmem:[#allocation5 + $0x18f8] sm:$0xff]
    %v903 = vld [vmem:[#allocation7] sm:$0x3]
    %v905 = vperm.slane %v903, 0
    %v906 = vperm.slane %v903, 1
    %v934 = vunpack.c.l.b16 %v78
    %v935 = vunpack.c.h.b16 %v78
    %v936 = vunpack.c.l.b16 %v79
    %v937 = vunpack.c.h.b16 %v79
    %v938 = vunpack.c.l.b16 %v80
    %v939 = vunpack.c.h.b16 %v80
    %v940 = vunpack.c.l.b16 %v81
    %v941 = vunpack.c.h.b16 %v81
    %v942 = vunpack.c.l.b16 %v82
    %v943 = vunpack.c.h.b16 %v82
    %v944 = vunpack.c.l.b16 %v83
    %v945 = vunpack.c.h.b16 %v83
    %v946 = vunpack.c.l.b16 %v84
    %v947 = vunpack.c.h.b16 %v84
    %v948 = vunpack.c.l.b16 %v85
    %v949 = vunpack.c.h.b16 %v85
    %v950 = vunpack.c.l.b16 %v86
    %v951 = vunpack.c.h.b16 %v86
    %v952 = vunpack.c.l.b16 %v87
    %v953 = vunpack.c.h.b16 %v87
    %v954 = vunpack.c.l.b16 %v88
    %v955 = vunpack.c.h.b16 %v88
    %v956 = vunpack.c.l.b16 %v89
    %v957 = vunpack.c.h.b16 %v89
    %v958 = vunpack.c.l.b16 %v90
    %v959 = vunpack.c.h.b16 %v90
    %v960 = vunpack.c.l.b16 %v91
    %v961 = vunpack.c.h.b16 %v91
    %v962 = vunpack.c.l.b16 %v92
    %v963 = vunpack.c.h.b16 %v92
    %v964 = vunpack.c.l.b16 %v93
    %v965 = vunpack.c.h.b16 %v93
    %v966 = vunpack.c.l.b16 %v94
    %v967 = vunpack.c.h.b16 %v94
    %v968 = vunpack.c.l.b16 %v95
    %v969 = vunpack.c.h.b16 %v95
    %v970 = vunpack.c.l.b16 %v96
    %v971 = vunpack.c.h.b16 %v96
    %v972 = vunpack.c.l.b16 %v97
    %v973 = vunpack.c.h.b16 %v97
    %v974 = vunpack.c.l.b16 %v98
    %v975 = vunpack.c.h.b16 %v98
    %v976 = vunpack.c.l.b16 %v99
    %v977 = vunpack.c.h.b16 %v99
    %v978 = vunpack.c.l.b16 %v100
    %v979 = vunpack.c.h.b16 %v100
    %v980 = vunpack.c.l.b16 %v101
    %v981 = vunpack.c.h.b16 %v101
    %v982 = vunpack.c.l.b16 %v102
    %v983 = vunpack.c.h.b16 %v102
    %v984 = vpack.c.b16 %v934, %v934
    %v985 = vpack.c.b16 %v935, %v935
    %v986 = vpack.c.b16 %v936, %v936
    %v987 = vpack.c.b16 %v937, %v937
    %v988 = vpack.c.b16 %v938, %v938
    %v989 = vpack.c.b16 %v939, %v939
    %v990 = vpack.c.b16 %v940, %v940
    %v991 = vpack.c.b16 %v941, %v941
    %v992 = vpack.c.b16 %v942, %v942
    %v993 = vpack.c.b16 %v943, %v943
    %v994 = vpack.c.b16 %v944, %v944
    %v995 = vpack.c.b16 %v945, %v945
    %v996 = vpack.c.b16 %v946, %v946
    %v997 = vpack.c.b16 %v947, %v947
    %v998 = vpack.c.b16 %v948, %v948
    %v999 = vpack.c.b16 %v949, %v949
    %v1000 = vpack.c.b16 %v950, %v950
    %v1001 = vpack.c.b16 %v951, %v951
    %v1002 = vpack.c.b16 %v952, %v952
    %v1003 = vpack.c.b16 %v953, %v953
    %v1004 = vpack.c.b16 %v954, %v954
    %v1005 = vpack.c.b16 %v955, %v955
    %v1006 = vpack.c.b16 %v956, %v956
    %v1007 = vpack.c.b16 %v957, %v957
    %v1008 = vpack.c.b16 %v958, %v958
    %v1009 = vpack.c.b16 %v959, %v959
    %v1010 = vpack.c.b16 %v960, %v960
    %v1011 = vpack.c.b16 %v961, %v961
    %v1012 = vpack.c.b16 %v962, %v962
    %v1013 = vpack.c.b16 %v963, %v963
    %v1014 = vpack.c.b16 %v964, %v964
    %v1015 = vpack.c.b16 %v965, %v965
    %v1016 = vpack.c.b16 %v966, %v966
    %v1017 = vpack.c.b16 %v967, %v967
    %v1018 = vpack.c.b16 %v968, %v968
    %v1019 = vpack.c.b16 %v969, %v969
    %v1020 = vpack.c.b16 %v970, %v970
    %v1021 = vpack.c.b16 %v971, %v971
    %v1022 = vpack.c.b16 %v972, %v972
    %v1023 = vpack.c.b16 %v973, %v973
    %v1024 = vpack.c.b16 %v974, %v974
    %v1025 = vpack.c.b16 %v975, %v975
    %v1026 = vpack.c.b16 %v976, %v976
    %v1027 = vpack.c.b16 %v977, %v977
    %v1028 = vpack.c.b16 %v978, %v978
    %v1029 = vpack.c.b16 %v979, %v979
    %v1030 = vpack.c.b16 %v980, %v980
    %v1031 = vpack.c.b16 %v981, %v981
    %v1032 = vpack.c.b16 %v982, %v982
    %v1033 = vpack.c.b16 %v983, %v983
    %v1884 = vunpack.c.l.b16 %v103
    %v1885 = vunpack.c.h.b16 %v103
    %v1886 = vunpack.c.l.b16 %v104
    %v1887 = vunpack.c.h.b16 %v104
    %v1888 = vunpack.c.l.b16 %v105
    %v1889 = vunpack.c.h.b16 %v105
    %v1890 = vunpack.c.l.b16 %v106
    %v1891 = vunpack.c.h.b16 %v106
    %v1892 = vunpack.c.l.b16 %v107
    %v1893 = vunpack.c.h.b16 %v107
    %v1894 = vunpack.c.l.b16 %v108
    %v1895 = vunpack.c.h.b16 %v108
    %v1896 = vunpack.c.l.b16 %v109
    %v1897 = vunpack.c.h.b16 %v109
    %v1898 = vunpack.c.l.b16 %v110
    %v1899 = vunpack.c.h.b16 %v110
    %v1900 = vunpack.c.l.b16 %v111
    %v1901 = vunpack.c.h.b16 %v111
    %v1902 = vunpack.c.l.b16 %v112
    %v1903 = vunpack.c.h.b16 %v112
    %v1904 = vunpack.c.l.b16 %v113
    %v1905 = vunpack.c.h.b16 %v113
    %v1906 = vunpack.c.l.b16 %v114
    %v1907 = vunpack.c.h.b16 %v114
    %v1908 = vunpack.c.l.b16 %v115
    %v1909 = vunpack.c.h.b16 %v115
    %v1910 = vunpack.c.l.b16 %v116
    %v1911 = vunpack.c.h.b16 %v116
    %v1912 = vunpack.c.l.b16 %v117
    %v1913 = vunpack.c.h.b16 %v117
    %v1914 = vunpack.c.l.b16 %v118
    %v1915 = vunpack.c.h.b16 %v118
    %v1916 = vunpack.c.l.b16 %v119
    %v1917 = vunpack.c.h.b16 %v119
    %v1918 = vunpack.c.l.b16 %v120
    %v1919 = vunpack.c.h.b16 %v120
    %v1920 = vunpack.c.l.b16 %v121
    %v1921 = vunpack.c.h.b16 %v121
    %v1922 = vunpack.c.l.b16 %v122
    %v1923 = vunpack.c.h.b16 %v122
    %v1924 = vunpack.c.l.b16 %v123
    %v1925 = vunpack.c.h.b16 %v123
    %v1926 = vunpack.c.l.b16 %v124
    %v1927 = vunpack.c.h.b16 %v124
    %v1928 = vunpack.c.l.b16 %v125
    %v1929 = vunpack.c.h.b16 %v125
    %v1930 = vunpack.c.l.b16 %v126
    %v1931 = vunpack.c.h.b16 %v126
    %v1932 = vunpack.c.l.b16 %v127
    %v1933 = vunpack.c.h.b16 %v127
    %v1934 = vunpack.c.l.b16 %v128
    %v1935 = vunpack.c.h.b16 %v128
    %v1936 = vunpack.c.l.b16 %v129
    %v1937 = vunpack.c.h.b16 %v129
    %v1938 = vunpack.c.l.b16 %v130
    %v1939 = vunpack.c.h.b16 %v130
    %v1940 = vunpack.c.l.b16 %v131
    %v1941 = vunpack.c.h.b16 %v131
    %v1942 = vunpack.c.l.b16 %v132
    %v1943 = vunpack.c.h.b16 %v132
    %v1944 = vunpack.c.l.b16 %v133
    %v1945 = vunpack.c.h.b16 %v133
    %v1946 = vunpack.c.l.b16 %v134
    %v1947 = vunpack.c.h.b16 %v134
    %v1948 = vunpack.c.l.b16 %v135
    %v1949 = vunpack.c.h.b16 %v135
    %v1950 = vunpack.c.l.b16 %v136
    %v1951 = vunpack.c.h.b16 %v136
    %v1952 = vunpack.c.l.b16 %v137
    %v1953 = vunpack.c.h.b16 %v137
    %v1954 = vunpack.c.l.b16 %v138
    %v1955 = vunpack.c.h.b16 %v138
    %v1956 = vunpack.c.l.b16 %v139
    %v1957 = vunpack.c.h.b16 %v139
    %v1958 = vunpack.c.l.b16 %v140
    %v1959 = vunpack.c.h.b16 %v140
    %v1960 = vunpack.c.l.b16 %v141
    %v1961 = vunpack.c.h.b16 %v141
    %v1962 = vunpack.c.l.b16 %v142
    %v1963 = vunpack.c.h.b16 %v142
    %v1964 = vunpack.c.l.b16 %v143
    %v1965 = vunpack.c.h.b16 %v143
    %v1966 = vunpack.c.l.b16 %v144
    %v1967 = vunpack.c.h.b16 %v144
    %v1968 = vunpack.c.l.b16 %v145
    %v1969 = vunpack.c.h.b16 %v145
    %v1970 = vunpack.c.l.b16 %v146
    %v1971 = vunpack.c.h.b16 %v146
    %v1972 = vunpack.c.l.b16 %v147
    %v1973 = vunpack.c.h.b16 %v147
    %v1974 = vunpack.c.l.b16 %v148
    %v1975 = vunpack.c.h.b16 %v148
    %v1976 = vunpack.c.l.b16 %v149
    %v1977 = vunpack.c.h.b16 %v149
    %v1978 = vunpack.c.l.b16 %v150
    %v1979 = vunpack.c.h.b16 %v150
    %v1980 = vunpack.c.l.b16 %v151
    %v1981 = vunpack.c.h.b16 %v151
    %v1982 = vunpack.c.l.b16 %v152
    %v1983 = vunpack.c.h.b16 %v152
    %v1984 = vunpack.c.l.b16 %v153
    %v1985 = vunpack.c.h.b16 %v153
    %v1986 = vunpack.c.l.b16 %v154
    %v1987 = vunpack.c.h.b16 %v154
    %v1988 = vunpack.c.l.b16 %v155
    %v1989 = vunpack.c.h.b16 %v155
    %v1990 = vunpack.c.l.b16 %v156
    %v1991 = vunpack.c.h.b16 %v156
    %v1992 = vunpack.c.l.b16 %v157
    %v1993 = vunpack.c.h.b16 %v157
    %v1994 = vunpack.c.l.b16 %v158
    %v1995 = vunpack.c.h.b16 %v158
    %v1996 = vunpack.c.l.b16 %v159
    %v1997 = vunpack.c.h.b16 %v159
    %v1998 = vunpack.c.l.b16 %v160
    %v1999 = vunpack.c.h.b16 %v160
    %v2000 = vunpack.c.l.b16 %v161
    %v2001 = vunpack.c.h.b16 %v161
    %v2002 = vunpack.c.l.b16 %v162
    %v2003 = vunpack.c.h.b16 %v162
    %v2004 = vunpack.c.l.b16 %v163
    %v2005 = vunpack.c.h.b16 %v163
    %v2006 = vunpack.c.l.b16 %v164
    %v2007 = vunpack.c.h.b16 %v164
    %v2008 = vunpack.c.l.b16 %v165
    %v2009 = vunpack.c.h.b16 %v165
    %v2010 = vunpack.c.l.b16 %v166
    %v2011 = vunpack.c.h.b16 %v166
    %v2012 = vunpack.c.l.b16 %v167
    %v2013 = vunpack.c.h.b16 %v167
    %v2014 = vunpack.c.l.b16 %v168
    %v2015 = vunpack.c.h.b16 %v168
    %v2016 = vunpack.c.l.b16 %v169
    %v2017 = vunpack.c.h.b16 %v169
    %v2018 = vunpack.c.l.b16 %v170
    %v2019 = vunpack.c.h.b16 %v170
    %v2020 = vunpack.c.l.b16 %v171
    %v2021 = vunpack.c.h.b16 %v171
    %v2022 = vunpack.c.l.b16 %v172
    %v2023 = vunpack.c.h.b16 %v172
    %v2024 = vunpack.c.l.b16 %v173
    %v2025 = vunpack.c.h.b16 %v173
    %v2026 = vunpack.c.l.b16 %v174
    %v2027 = vunpack.c.h.b16 %v174
    %v2028 = vunpack.c.l.b16 %v175
    %v2029 = vunpack.c.h.b16 %v175
    %v2030 = vunpack.c.l.b16 %v176
    %v2031 = vunpack.c.h.b16 %v176
    %v2032 = vunpack.c.l.b16 %v177
    %v2033 = vunpack.c.h.b16 %v177
    %v2034 = vunpack.c.l.b16 %v178
    %v2035 = vunpack.c.h.b16 %v178
    %v2036 = vunpack.c.l.b16 %v179
    %v2037 = vunpack.c.h.b16 %v179
    %v2038 = vunpack.c.l.b16 %v180
    %v2039 = vunpack.c.h.b16 %v180
    %v2040 = vunpack.c.l.b16 %v181
    %v2041 = vunpack.c.h.b16 %v181
    %v2042 = vunpack.c.l.b16 %v182
    %v2043 = vunpack.c.h.b16 %v182
    %v2044 = vunpack.c.l.b16 %v183
    %v2045 = vunpack.c.h.b16 %v183
    %v2046 = vunpack.c.l.b16 %v184
    %v2047 = vunpack.c.h.b16 %v184
    %v2048 = vunpack.c.l.b16 %v185
    %v2049 = vunpack.c.h.b16 %v185
    %v2050 = vunpack.c.l.b16 %v186
    %v2051 = vunpack.c.h.b16 %v186
    %v2052 = vunpack.c.l.b16 %v187
    %v2053 = vunpack.c.h.b16 %v187
    %v2054 = vunpack.c.l.b16 %v188
    %v2055 = vunpack.c.h.b16 %v188
    %v2056 = vunpack.c.l.b16 %v189
    %v2057 = vunpack.c.h.b16 %v189
    %v2058 = vunpack.c.l.b16 %v190
    %v2059 = vunpack.c.h.b16 %v190
    %v2060 = vunpack.c.l.b16 %v191
    %v2061 = vunpack.c.h.b16 %v191
    %v2062 = vunpack.c.l.b16 %v192
    %v2063 = vunpack.c.h.b16 %v192
    %v2064 = vunpack.c.l.b16 %v193
    %v2065 = vunpack.c.h.b16 %v193
    %v2066 = vunpack.c.l.b16 %v194
    %v2067 = vunpack.c.h.b16 %v194
    %v2068 = vunpack.c.l.b16 %v195
    %v2069 = vunpack.c.h.b16 %v195
    %v2070 = vunpack.c.l.b16 %v196
    %v2071 = vunpack.c.h.b16 %v196
    %v2072 = vunpack.c.l.b16 %v197
    %v2073 = vunpack.c.h.b16 %v197
    %v2074 = vunpack.c.l.b16 %v198
    %v2075 = vunpack.c.h.b16 %v198
    %v2076 = vunpack.c.l.b16 %v199
    %v2077 = vunpack.c.h.b16 %v199
    %v2078 = vunpack.c.l.b16 %v200
    %v2079 = vunpack.c.h.b16 %v200
    %v2080 = vunpack.c.l.b16 %v201
    %v2081 = vunpack.c.h.b16 %v201
    %v2082 = vunpack.c.l.b16 %v202
    %v2083 = vunpack.c.h.b16 %v202
    %v2084 = vunpack.c.l.b16 %v203
    %v2085 = vunpack.c.h.b16 %v203
    %v2086 = vunpack.c.l.b16 %v204
    %v2087 = vunpack.c.h.b16 %v204
    %v2088 = vunpack.c.l.b16 %v205
    %v2089 = vunpack.c.h.b16 %v205
    %v2090 = vunpack.c.l.b16 %v206
    %v2091 = vunpack.c.h.b16 %v206
    %v2092 = vunpack.c.l.b16 %v207
    %v2093 = vunpack.c.h.b16 %v207
    %v2094 = vunpack.c.l.b16 %v208
    %v2095 = vunpack.c.h.b16 %v208
    %v2096 = vunpack.c.l.b16 %v209
    %v2097 = vunpack.c.h.b16 %v209
    %v2098 = vunpack.c.l.b16 %v210
    %v2099 = vunpack.c.h.b16 %v210
    %v2100 = vunpack.c.l.b16 %v211
    %v2101 = vunpack.c.h.b16 %v211
    %v2102 = vunpack.c.l.b16 %v212
    %v2103 = vunpack.c.h.b16 %v212
    %v2104 = vunpack.c.l.b16 %v213
    %v2105 = vunpack.c.h.b16 %v213
    %v2106 = vunpack.c.l.b16 %v214
    %v2107 = vunpack.c.h.b16 %v214
    %v2108 = vunpack.c.l.b16 %v215
    %v2109 = vunpack.c.h.b16 %v215
    %v2110 = vunpack.c.l.b16 %v216
    %v2111 = vunpack.c.h.b16 %v216
    %v2112 = vunpack.c.l.b16 %v217
    %v2113 = vunpack.c.h.b16 %v217
    %v2114 = vunpack.c.l.b16 %v218
    %v2115 = vunpack.c.h.b16 %v218
    %v2116 = vunpack.c.l.b16 %v219
    %v2117 = vunpack.c.h.b16 %v219
    %v2118 = vunpack.c.l.b16 %v220
    %v2119 = vunpack.c.h.b16 %v220
    %v2120 = vunpack.c.l.b16 %v221
    %v2121 = vunpack.c.h.b16 %v221
    %v2122 = vunpack.c.l.b16 %v222
    %v2123 = vunpack.c.h.b16 %v222
    %v2124 = vunpack.c.l.b16 %v223
    %v2125 = vunpack.c.h.b16 %v223
    %v2126 = vunpack.c.l.b16 %v224
    %v2127 = vunpack.c.h.b16 %v224
    %v2128 = vunpack.c.l.b16 %v225
    %v2129 = vunpack.c.h.b16 %v225
    %v2130 = vunpack.c.l.b16 %v226
    %v2131 = vunpack.c.h.b16 %v226
    %v2132 = vunpack.c.l.b16 %v227
    %v2133 = vunpack.c.h.b16 %v227
    %v2134 = vunpack.c.l.b16 %v228
    %v2135 = vunpack.c.h.b16 %v228
    %v2136 = vunpack.c.l.b16 %v229
    %v2137 = vunpack.c.h.b16 %v229
    %v2138 = vunpack.c.l.b16 %v230
    %v2139 = vunpack.c.h.b16 %v230
    %v2140 = vunpack.c.l.b16 %v231
    %v2141 = vunpack.c.h.b16 %v231
    %v2142 = vunpack.c.l.b16 %v232
    %v2143 = vunpack.c.h.b16 %v232
    %v2144 = vunpack.c.l.b16 %v233
    %v2145 = vunpack.c.h.b16 %v233
    %v2146 = vunpack.c.l.b16 %v234
    %v2147 = vunpack.c.h.b16 %v234
    %v2148 = vunpack.c.l.b16 %v235
    %v2149 = vunpack.c.h.b16 %v235
    %v2150 = vunpack.c.l.b16 %v236
    %v2151 = vunpack.c.h.b16 %v236
    %v2152 = vunpack.c.l.b16 %v237
    %v2153 = vunpack.c.h.b16 %v237
    %v2154 = vunpack.c.l.b16 %v238
    %v2155 = vunpack.c.h.b16 %v238
    %v2156 = vunpack.c.l.b16 %v239
    %v2157 = vunpack.c.h.b16 %v239
    %v2158 = vunpack.c.l.b16 %v240
    %v2159 = vunpack.c.h.b16 %v240
    %v2160 = vunpack.c.l.b16 %v241
    %v2161 = vunpack.c.h.b16 %v241
    %v2162 = vunpack.c.l.b16 %v242
    %v2163 = vunpack.c.h.b16 %v242
    %v2164 = vunpack.c.l.b16 %v243
    %v2165 = vunpack.c.h.b16 %v243
    %v2166 = vunpack.c.l.b16 %v244
    %v2167 = vunpack.c.h.b16 %v244
    %v2168 = vunpack.c.l.b16 %v245
    %v2169 = vunpack.c.h.b16 %v245
    %v2170 = vunpack.c.l.b16 %v246
    %v2171 = vunpack.c.h.b16 %v246
    %v2172 = vunpack.c.l.b16 %v247
    %v2173 = vunpack.c.h.b16 %v247
    %v2174 = vunpack.c.l.b16 %v248
    %v2175 = vunpack.c.h.b16 %v248
    %v2176 = vunpack.c.l.b16 %v249
    %v2177 = vunpack.c.h.b16 %v249
    %v2178 = vunpack.c.l.b16 %v250
    %v2179 = vunpack.c.h.b16 %v250
    %v2180 = vunpack.c.l.b16 %v251
    %v2181 = vunpack.c.h.b16 %v251
    %v2182 = vunpack.c.l.b16 %v252
    %v2183 = vunpack.c.h.b16 %v252
    %v2184 = vunpack.c.l.b16 %v253
    %v2185 = vunpack.c.h.b16 %v253
    %v2186 = vunpack.c.l.b16 %v254
    %v2187 = vunpack.c.h.b16 %v254
    %v2188 = vunpack.c.l.b16 %v255
    %v2189 = vunpack.c.h.b16 %v255
    %v2190 = vunpack.c.l.b16 %v256
    %v2191 = vunpack.c.h.b16 %v256
    %v2192 = vunpack.c.l.b16 %v257
    %v2193 = vunpack.c.h.b16 %v257
    %v2194 = vunpack.c.l.b16 %v258
    %v2195 = vunpack.c.h.b16 %v258
    %v2196 = vunpack.c.l.b16 %v259
    %v2197 = vunpack.c.h.b16 %v259
    %v2198 = vunpack.c.l.b16 %v260
    %v2199 = vunpack.c.h.b16 %v260
    %v2200 = vunpack.c.l.b16 %v261
    %v2201 = vunpack.c.h.b16 %v261
    %v2202 = vunpack.c.l.b16 %v262
    %v2203 = vunpack.c.h.b16 %v262
    %v2204 = vunpack.c.l.b16 %v263
    %v2205 = vunpack.c.h.b16 %v263
    %v2206 = vunpack.c.l.b16 %v264
    %v2207 = vunpack.c.h.b16 %v264
    %v2208 = vunpack.c.l.b16 %v265
    %v2209 = vunpack.c.h.b16 %v265
    %v2210 = vunpack.c.l.b16 %v266
    %v2211 = vunpack.c.h.b16 %v266
    %v2212 = vunpack.c.l.b16 %v267
    %v2213 = vunpack.c.h.b16 %v267
    %v2214 = vunpack.c.l.b16 %v268
    %v2215 = vunpack.c.h.b16 %v268
    %v2216 = vunpack.c.l.b16 %v269
    %v2217 = vunpack.c.h.b16 %v269
    %v2218 = vunpack.c.l.b16 %v270
    %v2219 = vunpack.c.h.b16 %v270
    %v2220 = vunpack.c.l.b16 %v271
    %v2221 = vunpack.c.h.b16 %v271
    %v2222 = vunpack.c.l.b16 %v272
    %v2223 = vunpack.c.h.b16 %v272
    %v2224 = vunpack.c.l.b16 %v273
    %v2225 = vunpack.c.h.b16 %v273
    %v2226 = vunpack.c.l.b16 %v274
    %v2227 = vunpack.c.h.b16 %v274
    %v2228 = vunpack.c.l.b16 %v275
    %v2229 = vunpack.c.h.b16 %v275
    %v2230 = vunpack.c.l.b16 %v276
    %v2231 = vunpack.c.h.b16 %v276
    %v2232 = vunpack.c.l.b16 %v277
    %v2233 = vunpack.c.h.b16 %v277
    %v2234 = vunpack.c.l.b16 %v278
    %v2235 = vunpack.c.h.b16 %v278
    %v2236 = vunpack.c.l.b16 %v279
    %v2237 = vunpack.c.h.b16 %v279
    %v2238 = vunpack.c.l.b16 %v280
    %v2239 = vunpack.c.h.b16 %v280
    %v2240 = vunpack.c.l.b16 %v281
    %v2241 = vunpack.c.h.b16 %v281
    %v2242 = vunpack.c.l.b16 %v282
    %v2243 = vunpack.c.h.b16 %v282
    %v2244 = vunpack.c.l.b16 %v283
    %v2245 = vunpack.c.h.b16 %v283
    %v2246 = vunpack.c.l.b16 %v284
    %v2247 = vunpack.c.h.b16 %v284
    %v2248 = vunpack.c.l.b16 %v285
    %v2249 = vunpack.c.h.b16 %v285
    %v2250 = vunpack.c.l.b16 %v286
    %v2251 = vunpack.c.h.b16 %v286
    %v2252 = vunpack.c.l.b16 %v287
    %v2253 = vunpack.c.h.b16 %v287
    %v2254 = vunpack.c.l.b16 %v288
    %v2255 = vunpack.c.h.b16 %v288
    %v2256 = vunpack.c.l.b16 %v289
    %v2257 = vunpack.c.h.b16 %v289
    %v2258 = vunpack.c.l.b16 %v290
    %v2259 = vunpack.c.h.b16 %v290
    %v2260 = vunpack.c.l.b16 %v291
    %v2261 = vunpack.c.h.b16 %v291
    %v2262 = vunpack.c.l.b16 %v292
    %v2263 = vunpack.c.h.b16 %v292
    %v2264 = vunpack.c.l.b16 %v293
    %v2265 = vunpack.c.h.b16 %v293
    %v2266 = vunpack.c.l.b16 %v294
    %v2267 = vunpack.c.h.b16 %v294
    %v2268 = vunpack.c.l.b16 %v295
    %v2269 = vunpack.c.h.b16 %v295
    %v2270 = vunpack.c.l.b16 %v296
    %v2271 = vunpack.c.h.b16 %v296
    %v2272 = vunpack.c.l.b16 %v297
    %v2273 = vunpack.c.h.b16 %v297
    %v2274 = vunpack.c.l.b16 %v298
    %v2275 = vunpack.c.h.b16 %v298
    %v2276 = vunpack.c.l.b16 %v299
    %v2277 = vunpack.c.h.b16 %v299
    %v2278 = vunpack.c.l.b16 %v300
    %v2279 = vunpack.c.h.b16 %v300
    %v2280 = vunpack.c.l.b16 %v301
    %v2281 = vunpack.c.h.b16 %v301
    %v2282 = vunpack.c.l.b16 %v302
    %v2283 = vunpack.c.h.b16 %v302
    %v2284 = vunpack.c.l.b16 %v303
    %v2285 = vunpack.c.h.b16 %v303
    %v2286 = vunpack.c.l.b16 %v304
    %v2287 = vunpack.c.h.b16 %v304
    %v2288 = vunpack.c.l.b16 %v305
    %v2289 = vunpack.c.h.b16 %v305
    %v2290 = vunpack.c.l.b16 %v306
    %v2291 = vunpack.c.h.b16 %v306
    %v2292 = vunpack.c.l.b16 %v307
    %v2293 = vunpack.c.h.b16 %v307
    %v2294 = vunpack.c.l.b16 %v308
    %v2295 = vunpack.c.h.b16 %v308
    %v2296 = vunpack.c.l.b16 %v309
    %v2297 = vunpack.c.h.b16 %v309
    %v2298 = vunpack.c.l.b16 %v310
    %v2299 = vunpack.c.h.b16 %v310
    %v2300 = vunpack.c.l.b16 %v311
    %v2301 = vunpack.c.h.b16 %v311
    %v2302 = vunpack.c.l.b16 %v312
    %v2303 = vunpack.c.h.b16 %v312
    %v2304 = vunpack.c.l.b16 %v313
    %v2305 = vunpack.c.h.b16 %v313
    %v2306 = vunpack.c.l.b16 %v314
    %v2307 = vunpack.c.h.b16 %v314
    %v2308 = vunpack.c.l.b16 %v315
    %v2309 = vunpack.c.h.b16 %v315
    %v2310 = vunpack.c.l.b16 %v316
    %v2311 = vunpack.c.h.b16 %v316
    %v2312 = vunpack.c.l.b16 %v317
    %v2313 = vunpack.c.h.b16 %v317
    %v2314 = vunpack.c.l.b16 %v318
    %v2315 = vunpack.c.h.b16 %v318
    %v2316 = vunpack.c.l.b16 %v319
    %v2317 = vunpack.c.h.b16 %v319
    %v2318 = vunpack.c.l.b16 %v320
    %v2319 = vunpack.c.h.b16 %v320
    %v2320 = vunpack.c.l.b16 %v321
    %v2321 = vunpack.c.h.b16 %v321
    %v2322 = vunpack.c.l.b16 %v322
    %v2323 = vunpack.c.h.b16 %v322
    %v2324 = vunpack.c.l.b16 %v323
    %v2325 = vunpack.c.h.b16 %v323
    %v2326 = vunpack.c.l.b16 %v324
    %v2327 = vunpack.c.h.b16 %v324
    %v2328 = vunpack.c.l.b16 %v325
    %v2329 = vunpack.c.h.b16 %v325
    %v2330 = vunpack.c.l.b16 %v326
    %v2331 = vunpack.c.h.b16 %v326
    %v2332 = vunpack.c.l.b16 %v327
    %v2333 = vunpack.c.h.b16 %v327
    %v2334 = vunpack.c.l.b16 %v328
    %v2335 = vunpack.c.h.b16 %v328
    %v2336 = vunpack.c.l.b16 %v329
    %v2337 = vunpack.c.h.b16 %v329
    %v2338 = vunpack.c.l.b16 %v330
    %v2339 = vunpack.c.h.b16 %v330
    %v2340 = vunpack.c.l.b16 %v331
    %v2341 = vunpack.c.h.b16 %v331
    %v2342 = vunpack.c.l.b16 %v332
    %v2343 = vunpack.c.h.b16 %v332
    %v2344 = vunpack.c.l.b16 %v333
    %v2345 = vunpack.c.h.b16 %v333
    %v2346 = vunpack.c.l.b16 %v334
    %v2347 = vunpack.c.h.b16 %v334
    %v2348 = vunpack.c.l.b16 %v335
    %v2349 = vunpack.c.h.b16 %v335
    %v2350 = vunpack.c.l.b16 %v336
    %v2351 = vunpack.c.h.b16 %v336
    %v2352 = vunpack.c.l.b16 %v337
    %v2353 = vunpack.c.h.b16 %v337
    %v2354 = vunpack.c.l.b16 %v338
    %v2355 = vunpack.c.h.b16 %v338
    %v2356 = vunpack.c.l.b16 %v339
    %v2357 = vunpack.c.h.b16 %v339
    %v2358 = vunpack.c.l.b16 %v340
    %v2359 = vunpack.c.h.b16 %v340
    %v2360 = vunpack.c.l.b16 %v341
    %v2361 = vunpack.c.h.b16 %v341
    %v2362 = vunpack.c.l.b16 %v342
    %v2363 = vunpack.c.h.b16 %v342
    %v2364 = vunpack.c.l.b16 %v343
    %v2365 = vunpack.c.h.b16 %v343
    %v2366 = vunpack.c.l.b16 %v344
    %v2367 = vunpack.c.h.b16 %v344
    %v2368 = vunpack.c.l.b16 %v345
    %v2369 = vunpack.c.h.b16 %v345
    %v2370 = vunpack.c.l.b16 %v346
    %v2371 = vunpack.c.h.b16 %v346
    %v2372 = vunpack.c.l.b16 %v347
    %v2373 = vunpack.c.h.b16 %v347
    %v2374 = vunpack.c.l.b16 %v348
    %v2375 = vunpack.c.h.b16 %v348
    %v2376 = vunpack.c.l.b16 %v349
    %v2377 = vunpack.c.h.b16 %v349
    %v2378 = vunpack.c.l.b16 %v350
    %v2379 = vunpack.c.h.b16 %v350
    %v2380 = vunpack.c.l.b16 %v351
    %v2381 = vunpack.c.h.b16 %v351
    %v2382 = vunpack.c.l.b16 %v352
    %v2383 = vunpack.c.h.b16 %v352
    %v2384 = vunpack.c.l.b16 %v353
    %v2385 = vunpack.c.h.b16 %v353
    %v2386 = vunpack.c.l.b16 %v354
    %v2387 = vunpack.c.h.b16 %v354
    %v2388 = vunpack.c.l.b16 %v355
    %v2389 = vunpack.c.h.b16 %v355
    %v2390 = vunpack.c.l.b16 %v356
    %v2391 = vunpack.c.h.b16 %v356
    %v2392 = vunpack.c.l.b16 %v357
    %v2393 = vunpack.c.h.b16 %v357
    %v2394 = vunpack.c.l.b16 %v358
    %v2395 = vunpack.c.h.b16 %v358
    %v2396 = vunpack.c.l.b16 %v359
    %v2397 = vunpack.c.h.b16 %v359
    %v2398 = vunpack.c.l.b16 %v360
    %v2399 = vunpack.c.h.b16 %v360
    %v2400 = vunpack.c.l.b16 %v361
    %v2401 = vunpack.c.h.b16 %v361
    %v2402 = vunpack.c.l.b16 %v362
    %v2403 = vunpack.c.h.b16 %v362
    %v2404 = vunpack.c.l.b16 %v363
    %v2405 = vunpack.c.h.b16 %v363
    %v2406 = vunpack.c.l.b16 %v364
    %v2407 = vunpack.c.h.b16 %v364
    %v2408 = vunpack.c.l.b16 %v365
    %v2409 = vunpack.c.h.b16 %v365
    %v2410 = vunpack.c.l.b16 %v366
    %v2411 = vunpack.c.h.b16 %v366
    %v2412 = vunpack.c.l.b16 %v367
    %v2413 = vunpack.c.h.b16 %v367
    %v2414 = vunpack.c.l.b16 %v368
    %v2415 = vunpack.c.h.b16 %v368
    %v2416 = vunpack.c.l.b16 %v369
    %v2417 = vunpack.c.h.b16 %v369
    %v2418 = vunpack.c.l.b16 %v370
    %v2419 = vunpack.c.h.b16 %v370
    %v2420 = vunpack.c.l.b16 %v371
    %v2421 = vunpack.c.h.b16 %v371
    %v2422 = vunpack.c.l.b16 %v372
    %v2423 = vunpack.c.h.b16 %v372
    %v2424 = vunpack.c.l.b16 %v373
    %v2425 = vunpack.c.h.b16 %v373
    %v2426 = vunpack.c.l.b16 %v374
    %v2427 = vunpack.c.h.b16 %v374
    %v2428 = vunpack.c.l.b16 %v375
    %v2429 = vunpack.c.h.b16 %v375
    %v2430 = vunpack.c.l.b16 %v376
    %v2431 = vunpack.c.h.b16 %v376
    %v2432 = vunpack.c.l.b16 %v377
    %v2433 = vunpack.c.h.b16 %v377
    %v2434 = vunpack.c.l.b16 %v378
    %v2435 = vunpack.c.h.b16 %v378
    %v2436 = vunpack.c.l.b16 %v379
    %v2437 = vunpack.c.h.b16 %v379
    %v2438 = vunpack.c.l.b16 %v380
    %v2439 = vunpack.c.h.b16 %v380
    %v2440 = vunpack.c.l.b16 %v381
    %v2441 = vunpack.c.h.b16 %v381
    %v2442 = vunpack.c.l.b16 %v382
    %v2443 = vunpack.c.h.b16 %v382
    %v2444 = vunpack.c.l.b16 %v383
    %v2445 = vunpack.c.h.b16 %v383
    %v2446 = vunpack.c.l.b16 %v384
    %v2447 = vunpack.c.h.b16 %v384
    %v2448 = vunpack.c.l.b16 %v385
    %v2449 = vunpack.c.h.b16 %v385
    %v2450 = vunpack.c.l.b16 %v386
    %v2451 = vunpack.c.h.b16 %v386
    %v2452 = vunpack.c.l.b16 %v387
    %v2453 = vunpack.c.h.b16 %v387
    %v2454 = vunpack.c.l.b16 %v388
    %v2455 = vunpack.c.h.b16 %v388
    %v2456 = vunpack.c.l.b16 %v389
    %v2457 = vunpack.c.h.b16 %v389
    %v2458 = vunpack.c.l.b16 %v390
    %v2459 = vunpack.c.h.b16 %v390
    %v2460 = vunpack.c.l.b16 %v391
    %v2461 = vunpack.c.h.b16 %v391
    %v2462 = vunpack.c.l.b16 %v392
    %v2463 = vunpack.c.h.b16 %v392
    %v2464 = vunpack.c.l.b16 %v393
    %v2465 = vunpack.c.h.b16 %v393
    %v2466 = vunpack.c.l.b16 %v394
    %v2467 = vunpack.c.h.b16 %v394
    %v2468 = vunpack.c.l.b16 %v395
    %v2469 = vunpack.c.h.b16 %v395
    %v2470 = vunpack.c.l.b16 %v396
    %v2471 = vunpack.c.h.b16 %v396
    %v2472 = vunpack.c.l.b16 %v397
    %v2473 = vunpack.c.h.b16 %v397
    %v2474 = vunpack.c.l.b16 %v398
    %v2475 = vunpack.c.h.b16 %v398
    %v2476 = vunpack.c.l.b16 %v399
    %v2477 = vunpack.c.h.b16 %v399
    %v2478 = vunpack.c.l.b16 %v400
    %v2479 = vunpack.c.h.b16 %v400
    %v2480 = vunpack.c.l.b16 %v401
    %v2481 = vunpack.c.h.b16 %v401
    %v2482 = vunpack.c.l.b16 %v402
    %v2483 = vunpack.c.h.b16 %v402
    %v2484 = vunpack.c.l.b16 %v403
    %v2485 = vunpack.c.h.b16 %v403
    %v2486 = vunpack.c.l.b16 %v404
    %v2487 = vunpack.c.h.b16 %v404
    %v2488 = vunpack.c.l.b16 %v405
    %v2489 = vunpack.c.h.b16 %v405
    %v2490 = vunpack.c.l.b16 %v406
    %v2491 = vunpack.c.h.b16 %v406
    %v2492 = vunpack.c.l.b16 %v407
    %v2493 = vunpack.c.h.b16 %v407
    %v2494 = vunpack.c.l.b16 %v408
    %v2495 = vunpack.c.h.b16 %v408
    %v2496 = vunpack.c.l.b16 %v409
    %v2497 = vunpack.c.h.b16 %v409
    %v2498 = vunpack.c.l.b16 %v410
    %v2499 = vunpack.c.h.b16 %v410
    %v2500 = vunpack.c.l.b16 %v411
    %v2501 = vunpack.c.h.b16 %v411
    %v2502 = vunpack.c.l.b16 %v412
    %v2503 = vunpack.c.h.b16 %v412
    %v2504 = vunpack.c.l.b16 %v413
    %v2505 = vunpack.c.h.b16 %v413
    %v2506 = vunpack.c.l.b16 %v414
    %v2507 = vunpack.c.h.b16 %v414
    %v2508 = vunpack.c.l.b16 %v415
    %v2509 = vunpack.c.h.b16 %v415
    %v2510 = vunpack.c.l.b16 %v416
    %v2511 = vunpack.c.h.b16 %v416
    %v2512 = vunpack.c.l.b16 %v417
    %v2513 = vunpack.c.h.b16 %v417
    %v2514 = vunpack.c.l.b16 %v418
    %v2515 = vunpack.c.h.b16 %v418
    %v2516 = vunpack.c.l.b16 %v419
    %v2517 = vunpack.c.h.b16 %v419
    %v2518 = vunpack.c.l.b16 %v420
    %v2519 = vunpack.c.h.b16 %v420
    %v2520 = vunpack.c.l.b16 %v421
    %v2521 = vunpack.c.h.b16 %v421
    %v2522 = vunpack.c.l.b16 %v422
    %v2523 = vunpack.c.h.b16 %v422
    %v2524 = vunpack.c.l.b16 %v423
    %v2525 = vunpack.c.h.b16 %v423
    %v2526 = vunpack.c.l.b16 %v424
    %v2527 = vunpack.c.h.b16 %v424
    %v2528 = vunpack.c.l.b16 %v425
    %v2529 = vunpack.c.h.b16 %v425
    %v2530 = vunpack.c.l.b16 %v426
    %v2531 = vunpack.c.h.b16 %v426
    %v2532 = vunpack.c.l.b16 %v427
    %v2533 = vunpack.c.h.b16 %v427
    %v2534 = vunpack.c.l.b16 %v428
    %v2535 = vunpack.c.h.b16 %v428
    %v2536 = vunpack.c.l.b16 %v429
    %v2537 = vunpack.c.h.b16 %v429
    %v2538 = vunpack.c.l.b16 %v430
    %v2539 = vunpack.c.h.b16 %v430
    %v2540 = vunpack.c.l.b16 %v431
    %v2541 = vunpack.c.h.b16 %v431
    %v2542 = vunpack.c.l.b16 %v432
    %v2543 = vunpack.c.h.b16 %v432
    %v2544 = vunpack.c.l.b16 %v433
    %v2545 = vunpack.c.h.b16 %v433
    %v2546 = vunpack.c.l.b16 %v434
    %v2547 = vunpack.c.h.b16 %v434
    %v2548 = vunpack.c.l.b16 %v435
    %v2549 = vunpack.c.h.b16 %v435
    %v2550 = vunpack.c.l.b16 %v436
    %v2551 = vunpack.c.h.b16 %v436
    %v2552 = vunpack.c.l.b16 %v437
    %v2553 = vunpack.c.h.b16 %v437
    %v2554 = vunpack.c.l.b16 %v438
    %v2555 = vunpack.c.h.b16 %v438
    %v2556 = vunpack.c.l.b16 %v439
    %v2557 = vunpack.c.h.b16 %v439
    %v2558 = vunpack.c.l.b16 %v440
    %v2559 = vunpack.c.h.b16 %v440
    %v2560 = vunpack.c.l.b16 %v441
    %v2561 = vunpack.c.h.b16 %v441
    %v2562 = vunpack.c.l.b16 %v442
    %v2563 = vunpack.c.h.b16 %v442
    %v2564 = vunpack.c.l.b16 %v443
    %v2565 = vunpack.c.h.b16 %v443
    %v2566 = vunpack.c.l.b16 %v444
    %v2567 = vunpack.c.h.b16 %v444
    %v2568 = vunpack.c.l.b16 %v445
    %v2569 = vunpack.c.h.b16 %v445
    %v2570 = vunpack.c.l.b16 %v446
    %v2571 = vunpack.c.h.b16 %v446
    %v2572 = vunpack.c.l.b16 %v447
    %v2573 = vunpack.c.h.b16 %v447
    %v2574 = vunpack.c.l.b16 %v448
    %v2575 = vunpack.c.h.b16 %v448
    %v2576 = vunpack.c.l.b16 %v449
    %v2577 = vunpack.c.h.b16 %v449
    %v2578 = vunpack.c.l.b16 %v450
    %v2579 = vunpack.c.h.b16 %v450
    %v2580 = vunpack.c.l.b16 %v451
    %v2581 = vunpack.c.h.b16 %v451
    %v2582 = vunpack.c.l.b16 %v452
    %v2583 = vunpack.c.h.b16 %v452
    %v2584 = vunpack.c.l.b16 %v453
    %v2585 = vunpack.c.h.b16 %v453
    %v2586 = vunpack.c.l.b16 %v454
    %v2587 = vunpack.c.h.b16 %v454
    %v2588 = vunpack.c.l.b16 %v455
    %v2589 = vunpack.c.h.b16 %v455
    %v2590 = vunpack.c.l.b16 %v456
    %v2591 = vunpack.c.h.b16 %v456
    %v2592 = vunpack.c.l.b16 %v457
    %v2593 = vunpack.c.h.b16 %v457
    %v2594 = vunpack.c.l.b16 %v458
    %v2595 = vunpack.c.h.b16 %v458
    %v2596 = vunpack.c.l.b16 %v459
    %v2597 = vunpack.c.h.b16 %v459
    %v2598 = vunpack.c.l.b16 %v460
    %v2599 = vunpack.c.h.b16 %v460
    %v2600 = vunpack.c.l.b16 %v461
    %v2601 = vunpack.c.h.b16 %v461
    %v2602 = vunpack.c.l.b16 %v462
    %v2603 = vunpack.c.h.b16 %v462
    %v2604 = vunpack.c.l.b16 %v463
    %v2605 = vunpack.c.h.b16 %v463
    %v2606 = vunpack.c.l.b16 %v464
    %v2607 = vunpack.c.h.b16 %v464
    %v2608 = vunpack.c.l.b16 %v465
    %v2609 = vunpack.c.h.b16 %v465
    %v2610 = vunpack.c.l.b16 %v466
    %v2611 = vunpack.c.h.b16 %v466
    %v2612 = vunpack.c.l.b16 %v467
    %v2613 = vunpack.c.h.b16 %v467
    %v2614 = vunpack.c.l.b16 %v468
    %v2615 = vunpack.c.h.b16 %v468
    %v2616 = vunpack.c.l.b16 %v469
    %v2617 = vunpack.c.h.b16 %v469
    %v2618 = vunpack.c.l.b16 %v470
    %v2619 = vunpack.c.h.b16 %v470
    %v2620 = vunpack.c.l.b16 %v471
    %v2621 = vunpack.c.h.b16 %v471
    %v2622 = vunpack.c.l.b16 %v472
    %v2623 = vunpack.c.h.b16 %v472
    %v2624 = vunpack.c.l.b16 %v473
    %v2625 = vunpack.c.h.b16 %v473
    %v2626 = vunpack.c.l.b16 %v474
    %v2627 = vunpack.c.h.b16 %v474
    %v2628 = vunpack.c.l.b16 %v475
    %v2629 = vunpack.c.h.b16 %v475
    %v2630 = vunpack.c.l.b16 %v476
    %v2631 = vunpack.c.h.b16 %v476
    %v2632 = vunpack.c.l.b16 %v477
    %v2633 = vunpack.c.h.b16 %v477
    %v2634 = vunpack.c.l.b16 %v478
    %v2635 = vunpack.c.h.b16 %v478
    %v2636 = vunpack.c.l.b16 %v479
    %v2637 = vunpack.c.h.b16 %v479
    %v2638 = vunpack.c.l.b16 %v480
    %v2639 = vunpack.c.h.b16 %v480
    %v2640 = vunpack.c.l.b16 %v481
    %v2641 = vunpack.c.h.b16 %v481
    %v2642 = vunpack.c.l.b16 %v482
    %v2643 = vunpack.c.h.b16 %v482
    %v2644 = vunpack.c.l.b16 %v483
    %v2645 = vunpack.c.h.b16 %v483
    %v2646 = vunpack.c.l.b16 %v484
    %v2647 = vunpack.c.h.b16 %v484
    %v2648 = vunpack.c.l.b16 %v485
    %v2649 = vunpack.c.h.b16 %v485
    %v2650 = vunpack.c.l.b16 %v486
    %v2651 = vunpack.c.h.b16 %v486
    %v2652 = vunpack.c.l.b16 %v487
    %v2653 = vunpack.c.h.b16 %v487
    %v2654 = vunpack.c.l.b16 %v488
    %v2655 = vunpack.c.h.b16 %v488
    %v2656 = vunpack.c.l.b16 %v489
    %v2657 = vunpack.c.h.b16 %v489
    %v2658 = vunpack.c.l.b16 %v490
    %v2659 = vunpack.c.h.b16 %v490
    %v2660 = vunpack.c.l.b16 %v491
    %v2661 = vunpack.c.h.b16 %v491
    %v2662 = vunpack.c.l.b16 %v492
    %v2663 = vunpack.c.h.b16 %v492
    %v2664 = vunpack.c.l.b16 %v493
    %v2665 = vunpack.c.h.b16 %v493
    %v2666 = vunpack.c.l.b16 %v494
    %v2667 = vunpack.c.h.b16 %v494
    %v2668 = vunpack.c.l.b16 %v495
    %v2669 = vunpack.c.h.b16 %v495
    %v2670 = vunpack.c.l.b16 %v496
    %v2671 = vunpack.c.h.b16 %v496
    %v2672 = vunpack.c.l.b16 %v497
    %v2673 = vunpack.c.h.b16 %v497
    %v2674 = vunpack.c.l.b16 %v498
    %v2675 = vunpack.c.h.b16 %v498
    %v2676 = vunpack.c.l.b16 %v499
    %v2677 = vunpack.c.h.b16 %v499
    %v2678 = vunpack.c.l.b16 %v500
    %v2679 = vunpack.c.h.b16 %v500
    %v2680 = vunpack.c.l.b16 %v501
    %v2681 = vunpack.c.h.b16 %v501
    %v2682 = vunpack.c.l.b16 %v502
    %v2683 = vunpack.c.h.b16 %v502
    %v2684 = vunpack.c.l.b16 %v503
    %v2685 = vunpack.c.h.b16 %v503
    %v2686 = vunpack.c.l.b16 %v504
    %v2687 = vunpack.c.h.b16 %v504
    %v2688 = vunpack.c.l.b16 %v505
    %v2689 = vunpack.c.h.b16 %v505
    %v2690 = vunpack.c.l.b16 %v506
    %v2691 = vunpack.c.h.b16 %v506
    %v2692 = vunpack.c.l.b16 %v507
    %v2693 = vunpack.c.h.b16 %v507
    %v2694 = vunpack.c.l.b16 %v508
    %v2695 = vunpack.c.h.b16 %v508
    %v2696 = vunpack.c.l.b16 %v509
    %v2697 = vunpack.c.h.b16 %v509
    %v2698 = vunpack.c.l.b16 %v510
    %v2699 = vunpack.c.h.b16 %v510
    %v2700 = vunpack.c.l.b16 %v511
    %v2701 = vunpack.c.h.b16 %v511
    %v2702 = vunpack.c.l.b16 %v512
    %v2703 = vunpack.c.h.b16 %v512
    %v2704 = vunpack.c.l.b16 %v513
    %v2705 = vunpack.c.h.b16 %v513
    %v2706 = vunpack.c.l.b16 %v514
    %v2707 = vunpack.c.h.b16 %v514
    %v2708 = vunpack.c.l.b16 %v515
    %v2709 = vunpack.c.h.b16 %v515
    %v2710 = vunpack.c.l.b16 %v516
    %v2711 = vunpack.c.h.b16 %v516
    %v2712 = vunpack.c.l.b16 %v517
    %v2713 = vunpack.c.h.b16 %v517
    %v2714 = vunpack.c.l.b16 %v518
    %v2715 = vunpack.c.h.b16 %v518
    %v2716 = vunpack.c.l.b16 %v519
    %v2717 = vunpack.c.h.b16 %v519
    %v2718 = vunpack.c.l.b16 %v520
    %v2719 = vunpack.c.h.b16 %v520
    %v2720 = vunpack.c.l.b16 %v521
    %v2721 = vunpack.c.h.b16 %v521
    %v2722 = vunpack.c.l.b16 %v522
    %v2723 = vunpack.c.h.b16 %v522
    %v2724 = vunpack.c.l.b16 %v523
    %v2725 = vunpack.c.h.b16 %v523
    %v2726 = vunpack.c.l.b16 %v524
    %v2727 = vunpack.c.h.b16 %v524
    %v2728 = vunpack.c.l.b16 %v525
    %v2729 = vunpack.c.h.b16 %v525
    %v2730 = vunpack.c.l.b16 %v526
    %v2731 = vunpack.c.h.b16 %v526
    %v2732 = vunpack.c.l.b16 %v527
    %v2733 = vunpack.c.h.b16 %v527
    %v2734 = vunpack.c.l.b16 %v528
    %v2735 = vunpack.c.h.b16 %v528
    %v2736 = vunpack.c.l.b16 %v529
    %v2737 = vunpack.c.h.b16 %v529
    %v2738 = vunpack.c.l.b16 %v530
    %v2739 = vunpack.c.h.b16 %v530
    %v2740 = vunpack.c.l.b16 %v531
    %v2741 = vunpack.c.h.b16 %v531
    %v2742 = vunpack.c.l.b16 %v532
    %v2743 = vunpack.c.h.b16 %v532
    %v2744 = vunpack.c.l.b16 %v533
    %v2745 = vunpack.c.h.b16 %v533
    %v2746 = vunpack.c.l.b16 %v534
    %v2747 = vunpack.c.h.b16 %v534
    %v2748 = vunpack.c.l.b16 %v535
    %v2749 = vunpack.c.h.b16 %v535
    %v2750 = vunpack.c.l.b16 %v536
    %v2751 = vunpack.c.h.b16 %v536
    %v2752 = vunpack.c.l.b16 %v537
    %v2753 = vunpack.c.h.b16 %v537
    %v2754 = vunpack.c.l.b16 %v538
    %v2755 = vunpack.c.h.b16 %v538
    %v2756 = vunpack.c.l.b16 %v539
    %v2757 = vunpack.c.h.b16 %v539
    %v2758 = vunpack.c.l.b16 %v540
    %v2759 = vunpack.c.h.b16 %v540
    %v2760 = vunpack.c.l.b16 %v541
    %v2761 = vunpack.c.h.b16 %v541
    %v2762 = vunpack.c.l.b16 %v542
    %v2763 = vunpack.c.h.b16 %v542
    %v2764 = vunpack.c.l.b16 %v543
    %v2765 = vunpack.c.h.b16 %v543
    %v2766 = vunpack.c.l.b16 %v544
    %v2767 = vunpack.c.h.b16 %v544
    %v2768 = vunpack.c.l.b16 %v545
    %v2769 = vunpack.c.h.b16 %v545
    %v2770 = vunpack.c.l.b16 %v546
    %v2771 = vunpack.c.h.b16 %v546
    %v2772 = vunpack.c.l.b16 %v547
    %v2773 = vunpack.c.h.b16 %v547
    %v2774 = vunpack.c.l.b16 %v548
    %v2775 = vunpack.c.h.b16 %v548
    %v2776 = vunpack.c.l.b16 %v549
    %v2777 = vunpack.c.h.b16 %v549
    %v2778 = vunpack.c.l.b16 %v550
    %v2779 = vunpack.c.h.b16 %v550
    %v2780 = vunpack.c.l.b16 %v551
    %v2781 = vunpack.c.h.b16 %v551
    %v2782 = vunpack.c.l.b16 %v552
    %v2783 = vunpack.c.h.b16 %v552
    %v2784 = vunpack.c.l.b16 %v553
    %v2785 = vunpack.c.h.b16 %v553
    %v2786 = vunpack.c.l.b16 %v554
    %v2787 = vunpack.c.h.b16 %v554
    %v2788 = vunpack.c.l.b16 %v555
    %v2789 = vunpack.c.h.b16 %v555
    %v2790 = vunpack.c.l.b16 %v556
    %v2791 = vunpack.c.h.b16 %v556
    %v2792 = vunpack.c.l.b16 %v557
    %v2793 = vunpack.c.h.b16 %v557
    %v2794 = vunpack.c.l.b16 %v558
    %v2795 = vunpack.c.h.b16 %v558
    %v2796 = vunpack.c.l.b16 %v559
    %v2797 = vunpack.c.h.b16 %v559
    %v2798 = vunpack.c.l.b16 %v560
    %v2799 = vunpack.c.h.b16 %v560
    %v2800 = vunpack.c.l.b16 %v561
    %v2801 = vunpack.c.h.b16 %v561
    %v2802 = vunpack.c.l.b16 %v562
    %v2803 = vunpack.c.h.b16 %v562
    %v2804 = vunpack.c.l.b16 %v563
    %v2805 = vunpack.c.h.b16 %v563
    %v2806 = vunpack.c.l.b16 %v564
    %v2807 = vunpack.c.h.b16 %v564
    %v2808 = vunpack.c.l.b16 %v565
    %v2809 = vunpack.c.h.b16 %v565
    %v2810 = vunpack.c.l.b16 %v566
    %v2811 = vunpack.c.h.b16 %v566
    %v2812 = vunpack.c.l.b16 %v567
    %v2813 = vunpack.c.h.b16 %v567
    %v2814 = vunpack.c.l.b16 %v568
    %v2815 = vunpack.c.h.b16 %v568
    %v2816 = vunpack.c.l.b16 %v569
    %v2817 = vunpack.c.h.b16 %v569
    %v2818 = vunpack.c.l.b16 %v570
    %v2819 = vunpack.c.h.b16 %v570
    %v2820 = vunpack.c.l.b16 %v571
    %v2821 = vunpack.c.h.b16 %v571
    %v2822 = vunpack.c.l.b16 %v572
    %v2823 = vunpack.c.h.b16 %v572
    %v2824 = vunpack.c.l.b16 %v573
    %v2825 = vunpack.c.h.b16 %v573
    %v2826 = vunpack.c.l.b16 %v574
    %v2827 = vunpack.c.h.b16 %v574
    %v2828 = vunpack.c.l.b16 %v575
    %v2829 = vunpack.c.h.b16 %v575
    %v2830 = vunpack.c.l.b16 %v576
    %v2831 = vunpack.c.h.b16 %v576
    %v2832 = vunpack.c.l.b16 %v577
    %v2833 = vunpack.c.h.b16 %v577
    %v2834 = vunpack.c.l.b16 %v578
    %v2835 = vunpack.c.h.b16 %v578
    %v2836 = vunpack.c.l.b16 %v579
    %v2837 = vunpack.c.h.b16 %v579
    %v2838 = vunpack.c.l.b16 %v580
    %v2839 = vunpack.c.h.b16 %v580
    %v2840 = vunpack.c.l.b16 %v581
    %v2841 = vunpack.c.h.b16 %v581
    %v2842 = vunpack.c.l.b16 %v582
    %v2843 = vunpack.c.h.b16 %v582
    %v2844 = vunpack.c.l.b16 %v583
    %v2845 = vunpack.c.h.b16 %v583
    %v2846 = vunpack.c.l.b16 %v584
    %v2847 = vunpack.c.h.b16 %v584
    %v2848 = vunpack.c.l.b16 %v585
    %v2849 = vunpack.c.h.b16 %v585
    %v2850 = vunpack.c.l.b16 %v586
    %v2851 = vunpack.c.h.b16 %v586
    %v2852 = vunpack.c.l.b16 %v587
    %v2853 = vunpack.c.h.b16 %v587
    %v2854 = vunpack.c.l.b16 %v588
    %v2855 = vunpack.c.h.b16 %v588
    %v2856 = vunpack.c.l.b16 %v589
    %v2857 = vunpack.c.h.b16 %v589
    %v2858 = vunpack.c.l.b16 %v590
    %v2859 = vunpack.c.h.b16 %v590
    %v2860 = vunpack.c.l.b16 %v591
    %v2861 = vunpack.c.h.b16 %v591
    %v2862 = vunpack.c.l.b16 %v592
    %v2863 = vunpack.c.h.b16 %v592
    %v2864 = vunpack.c.l.b16 %v593
    %v2865 = vunpack.c.h.b16 %v593
    %v2866 = vunpack.c.l.b16 %v594
    %v2867 = vunpack.c.h.b16 %v594
    %v2868 = vunpack.c.l.b16 %v595
    %v2869 = vunpack.c.h.b16 %v595
    %v2870 = vunpack.c.l.b16 %v596
    %v2871 = vunpack.c.h.b16 %v596
    %v2872 = vunpack.c.l.b16 %v597
    %v2873 = vunpack.c.h.b16 %v597
    %v2874 = vunpack.c.l.b16 %v598
    %v2875 = vunpack.c.h.b16 %v598
    %v2876 = vunpack.c.l.b16 %v599
    %v2877 = vunpack.c.h.b16 %v599
    %v2878 = vunpack.c.l.b16 %v600
    %v2879 = vunpack.c.h.b16 %v600
    %v2880 = vunpack.c.l.b16 %v601
    %v2881 = vunpack.c.h.b16 %v601
    %v2882 = vunpack.c.l.b16 %v602
    %v2883 = vunpack.c.h.b16 %v602
    %v2884 = vunpack.c.l.b16 %v603
    %v2885 = vunpack.c.h.b16 %v603
    %v2886 = vunpack.c.l.b16 %v604
    %v2887 = vunpack.c.h.b16 %v604
    %v2888 = vunpack.c.l.b16 %v605
    %v2889 = vunpack.c.h.b16 %v605
    %v2890 = vunpack.c.l.b16 %v606
    %v2891 = vunpack.c.h.b16 %v606
    %v2892 = vunpack.c.l.b16 %v607
    %v2893 = vunpack.c.h.b16 %v607
    %v2894 = vunpack.c.l.b16 %v608
    %v2895 = vunpack.c.h.b16 %v608
    %v2896 = vunpack.c.l.b16 %v609
    %v2897 = vunpack.c.h.b16 %v609
    %v2898 = vunpack.c.l.b16 %v610
    %v2899 = vunpack.c.h.b16 %v610
    %v2900 = vunpack.c.l.b16 %v611
    %v2901 = vunpack.c.h.b16 %v611
    %v2902 = vunpack.c.l.b16 %v612
    %v2903 = vunpack.c.h.b16 %v612
    %v2904 = vunpack.c.l.b16 %v613
    %v2905 = vunpack.c.h.b16 %v613
    %v2906 = vunpack.c.l.b16 %v614
    %v2907 = vunpack.c.h.b16 %v614
    %v2908 = vunpack.c.l.b16 %v615
    %v2909 = vunpack.c.h.b16 %v615
    %v2910 = vunpack.c.l.b16 %v616
    %v2911 = vunpack.c.h.b16 %v616
    %v2912 = vunpack.c.l.b16 %v617
    %v2913 = vunpack.c.h.b16 %v617
    %v2914 = vunpack.c.l.b16 %v618
    %v2915 = vunpack.c.h.b16 %v618
    %v2916 = vunpack.c.l.b16 %v619
    %v2917 = vunpack.c.h.b16 %v619
    %v2918 = vunpack.c.l.b16 %v620
    %v2919 = vunpack.c.h.b16 %v620
    %v2920 = vunpack.c.l.b16 %v621
    %v2921 = vunpack.c.h.b16 %v621
    %v2922 = vunpack.c.l.b16 %v622
    %v2923 = vunpack.c.h.b16 %v622
    %v2924 = vunpack.c.l.b16 %v623
    %v2925 = vunpack.c.h.b16 %v623
    %v2926 = vunpack.c.l.b16 %v624
    %v2927 = vunpack.c.h.b16 %v624
    %v2928 = vunpack.c.l.b16 %v625
    %v2929 = vunpack.c.h.b16 %v625
    %v2930 = vunpack.c.l.b16 %v626
    %v2931 = vunpack.c.h.b16 %v626
    %v2932 = vunpack.c.l.b16 %v627
    %v2933 = vunpack.c.h.b16 %v627
    %v2934 = vunpack.c.l.b16 %v628
    %v2935 = vunpack.c.h.b16 %v628
    %v2936 = vunpack.c.l.b16 %v629
    %v2937 = vunpack.c.h.b16 %v629
    %v2938 = vunpack.c.l.b16 %v630
    %v2939 = vunpack.c.h.b16 %v630
    %v2940 = vunpack.c.l.b16 %v631
    %v2941 = vunpack.c.h.b16 %v631
    %v2942 = vunpack.c.l.b16 %v632
    %v2943 = vunpack.c.h.b16 %v632
    %v2944 = vunpack.c.l.b16 %v633
    %v2945 = vunpack.c.h.b16 %v633
    %v2946 = vunpack.c.l.b16 %v634
    %v2947 = vunpack.c.h.b16 %v634
    %v2948 = vunpack.c.l.b16 %v635
    %v2949 = vunpack.c.h.b16 %v635
    %v2950 = vunpack.c.l.b16 %v636
    %v2951 = vunpack.c.h.b16 %v636
    %v2952 = vunpack.c.l.b16 %v637
    %v2953 = vunpack.c.h.b16 %v637
    %v2954 = vunpack.c.l.b16 %v638
    %v2955 = vunpack.c.h.b16 %v638
    %v2956 = vunpack.c.l.b16 %v639
    %v2957 = vunpack.c.h.b16 %v639
    %v2958 = vunpack.c.l.b16 %v640
    %v2959 = vunpack.c.h.b16 %v640
    %v2960 = vunpack.c.l.b16 %v641
    %v2961 = vunpack.c.h.b16 %v641
    %v2962 = vunpack.c.l.b16 %v642
    %v2963 = vunpack.c.h.b16 %v642
    %v2964 = vunpack.c.l.b16 %v643
    %v2965 = vunpack.c.h.b16 %v643
    %v2966 = vunpack.c.l.b16 %v644
    %v2967 = vunpack.c.h.b16 %v644
    %v2968 = vunpack.c.l.b16 %v645
    %v2969 = vunpack.c.h.b16 %v645
    %v2970 = vunpack.c.l.b16 %v646
    %v2971 = vunpack.c.h.b16 %v646
    %v2972 = vunpack.c.l.b16 %v647
    %v2973 = vunpack.c.h.b16 %v647
    %v2974 = vunpack.c.l.b16 %v648
    %v2975 = vunpack.c.h.b16 %v648
    %v2976 = vunpack.c.l.b16 %v649
    %v2977 = vunpack.c.h.b16 %v649
    %v2978 = vunpack.c.l.b16 %v650
    %v2979 = vunpack.c.h.b16 %v650
    %v2980 = vunpack.c.l.b16 %v651
    %v2981 = vunpack.c.h.b16 %v651
    %v2982 = vunpack.c.l.b16 %v652
    %v2983 = vunpack.c.h.b16 %v652
    %v2984 = vunpack.c.l.b16 %v653
    %v2985 = vunpack.c.h.b16 %v653
    %v2986 = vunpack.c.l.b16 %v654
    %v2987 = vunpack.c.h.b16 %v654
    %v2988 = vunpack.c.l.b16 %v655
    %v2989 = vunpack.c.h.b16 %v655
    %v2990 = vunpack.c.l.b16 %v656
    %v2991 = vunpack.c.h.b16 %v656
    %v2992 = vunpack.c.l.b16 %v657
    %v2993 = vunpack.c.h.b16 %v657
    %v2994 = vunpack.c.l.b16 %v658
    %v2995 = vunpack.c.h.b16 %v658
    %v2996 = vunpack.c.l.b16 %v659
    %v2997 = vunpack.c.h.b16 %v659
    %v2998 = vunpack.c.l.b16 %v660
    %v2999 = vunpack.c.h.b16 %v660
    %v3000 = vunpack.c.l.b16 %v661
    %v3001 = vunpack.c.h.b16 %v661
    %v3002 = vunpack.c.l.b16 %v662
    %v3003 = vunpack.c.h.b16 %v662
    %v3004 = vunpack.c.l.b16 %v663
    %v3005 = vunpack.c.h.b16 %v663
    %v3006 = vunpack.c.l.b16 %v664
    %v3007 = vunpack.c.h.b16 %v664
    %v3008 = vunpack.c.l.b16 %v665
    %v3009 = vunpack.c.h.b16 %v665
    %v3010 = vunpack.c.l.b16 %v666
    %v3011 = vunpack.c.h.b16 %v666
    %v3012 = vunpack.c.l.b16 %v667
    %v3013 = vunpack.c.h.b16 %v667
    %v3014 = vunpack.c.l.b16 %v668
    %v3015 = vunpack.c.h.b16 %v668
    %v3016 = vunpack.c.l.b16 %v669
    %v3017 = vunpack.c.h.b16 %v669
    %v3018 = vunpack.c.l.b16 %v670
    %v3019 = vunpack.c.h.b16 %v670
    %v3020 = vunpack.c.l.b16 %v671
    %v3021 = vunpack.c.h.b16 %v671
    %v3022 = vunpack.c.l.b16 %v672
    %v3023 = vunpack.c.h.b16 %v672
    %v3024 = vunpack.c.l.b16 %v673
    %v3025 = vunpack.c.h.b16 %v673
    %v3026 = vunpack.c.l.b16 %v674
    %v3027 = vunpack.c.h.b16 %v674
    %v3028 = vunpack.c.l.b16 %v675
    %v3029 = vunpack.c.h.b16 %v675
    %v3030 = vunpack.c.l.b16 %v676
    %v3031 = vunpack.c.h.b16 %v676
    %v3032 = vunpack.c.l.b16 %v677
    %v3033 = vunpack.c.h.b16 %v677
    %v3034 = vunpack.c.l.b16 %v678
    %v3035 = vunpack.c.h.b16 %v678
    %v3036 = vunpack.c.l.b16 %v679
    %v3037 = vunpack.c.h.b16 %v679
    %v3038 = vunpack.c.l.b16 %v680
    %v3039 = vunpack.c.h.b16 %v680
    %v3040 = vunpack.c.l.b16 %v681
    %v3041 = vunpack.c.h.b16 %v681
    %v3042 = vunpack.c.l.b16 %v682
    %v3043 = vunpack.c.h.b16 %v682
    %v3044 = vunpack.c.l.b16 %v683
    %v3045 = vunpack.c.h.b16 %v683
    %v3046 = vunpack.c.l.b16 %v684
    %v3047 = vunpack.c.h.b16 %v684
    %v3048 = vunpack.c.l.b16 %v685
    %v3049 = vunpack.c.h.b16 %v685
    %v3050 = vunpack.c.l.b16 %v686
    %v3051 = vunpack.c.h.b16 %v686
    %v3052 = vunpack.c.l.b16 %v687
    %v3053 = vunpack.c.h.b16 %v687
    %v3054 = vunpack.c.l.b16 %v688
    %v3055 = vunpack.c.h.b16 %v688
    %v3056 = vunpack.c.l.b16 %v689
    %v3057 = vunpack.c.h.b16 %v689
    %v3058 = vunpack.c.l.b16 %v690
    %v3059 = vunpack.c.h.b16 %v690
    %v3060 = vunpack.c.l.b16 %v691
    %v3061 = vunpack.c.h.b16 %v691
    %v3062 = vunpack.c.l.b16 %v692
    %v3063 = vunpack.c.h.b16 %v692
    %v3064 = vunpack.c.l.b16 %v693
    %v3065 = vunpack.c.h.b16 %v693
    %v3066 = vunpack.c.l.b16 %v694
    %v3067 = vunpack.c.h.b16 %v694
    %v3068 = vunpack.c.l.b16 %v695
    %v3069 = vunpack.c.h.b16 %v695
    %v3070 = vunpack.c.l.b16 %v696
    %v3071 = vunpack.c.h.b16 %v696
    %v3072 = vunpack.c.l.b16 %v697
    %v3073 = vunpack.c.h.b16 %v697
    %v3074 = vunpack.c.l.b16 %v698
    %v3075 = vunpack.c.h.b16 %v698
    %v3076 = vunpack.c.l.b16 %v699
    %v3077 = vunpack.c.h.b16 %v699
    %v3078 = vunpack.c.l.b16 %v700
    %v3079 = vunpack.c.h.b16 %v700
    %v3080 = vunpack.c.l.b16 %v701
    %v3081 = vunpack.c.h.b16 %v701
    %v3082 = vunpack.c.l.b16 %v702
    %v3083 = vunpack.c.h.b16 %v702
    %v3084 = vunpack.c.l.b16 %v703
    %v3085 = vunpack.c.h.b16 %v703
    %v3086 = vunpack.c.l.b16 %v704
    %v3087 = vunpack.c.h.b16 %v704
    %v3088 = vunpack.c.l.b16 %v705
    %v3089 = vunpack.c.h.b16 %v705
    %v3090 = vunpack.c.l.b16 %v706
    %v3091 = vunpack.c.h.b16 %v706
    %v3092 = vunpack.c.l.b16 %v707
    %v3093 = vunpack.c.h.b16 %v707
    %v3094 = vunpack.c.l.b16 %v708
    %v3095 = vunpack.c.h.b16 %v708
    %v3096 = vunpack.c.l.b16 %v709
    %v3097 = vunpack.c.h.b16 %v709
    %v3098 = vunpack.c.l.b16 %v710
    %v3099 = vunpack.c.h.b16 %v710
    %v3100 = vunpack.c.l.b16 %v711
    %v3101 = vunpack.c.h.b16 %v711
    %v3102 = vunpack.c.l.b16 %v712
    %v3103 = vunpack.c.h.b16 %v712
    %v3104 = vunpack.c.l.b16 %v713
    %v3105 = vunpack.c.h.b16 %v713
    %v3106 = vunpack.c.l.b16 %v714
    %v3107 = vunpack.c.h.b16 %v714
    %v3108 = vunpack.c.l.b16 %v715
    %v3109 = vunpack.c.h.b16 %v715
    %v3110 = vunpack.c.l.b16 %v716
    %v3111 = vunpack.c.h.b16 %v716
    %v3112 = vunpack.c.l.b16 %v717
    %v3113 = vunpack.c.h.b16 %v717
    %v3114 = vunpack.c.l.b16 %v718
    %v3115 = vunpack.c.h.b16 %v718
    %v3116 = vunpack.c.l.b16 %v719
    %v3117 = vunpack.c.h.b16 %v719
    %v3118 = vunpack.c.l.b16 %v720
    %v3119 = vunpack.c.h.b16 %v720
    %v3120 = vunpack.c.l.b16 %v721
    %v3121 = vunpack.c.h.b16 %v721
    %v3122 = vunpack.c.l.b16 %v722
    %v3123 = vunpack.c.h.b16 %v722
    %v3124 = vunpack.c.l.b16 %v723
    %v3125 = vunpack.c.h.b16 %v723
    %v3126 = vunpack.c.l.b16 %v724
    %v3127 = vunpack.c.h.b16 %v724
    %v3128 = vunpack.c.l.b16 %v725
    %v3129 = vunpack.c.h.b16 %v725
    %v3130 = vunpack.c.l.b16 %v726
    %v3131 = vunpack.c.h.b16 %v726
    %v3132 = vunpack.c.l.b16 %v727
    %v3133 = vunpack.c.h.b16 %v727
    %v3134 = vunpack.c.l.b16 %v728
    %v3135 = vunpack.c.h.b16 %v728
    %v3136 = vunpack.c.l.b16 %v729
    %v3137 = vunpack.c.h.b16 %v729
    %v3138 = vunpack.c.l.b16 %v730
    %v3139 = vunpack.c.h.b16 %v730
    %v3140 = vunpack.c.l.b16 %v731
    %v3141 = vunpack.c.h.b16 %v731
    %v3142 = vunpack.c.l.b16 %v732
    %v3143 = vunpack.c.h.b16 %v732
    %v3144 = vunpack.c.l.b16 %v733
    %v3145 = vunpack.c.h.b16 %v733
    %v3146 = vunpack.c.l.b16 %v734
    %v3147 = vunpack.c.h.b16 %v734
    %v3148 = vunpack.c.l.b16 %v735
    %v3149 = vunpack.c.h.b16 %v735
    %v3150 = vunpack.c.l.b16 %v736
    %v3151 = vunpack.c.h.b16 %v736
    %v3152 = vunpack.c.l.b16 %v737
    %v3153 = vunpack.c.h.b16 %v737
    %v3154 = vunpack.c.l.b16 %v738
    %v3155 = vunpack.c.h.b16 %v738
    %v3156 = vunpack.c.l.b16 %v739
    %v3157 = vunpack.c.h.b16 %v739
    %v3158 = vunpack.c.l.b16 %v740
    %v3159 = vunpack.c.h.b16 %v740
    %v3160 = vunpack.c.l.b16 %v741
    %v3161 = vunpack.c.h.b16 %v741
    %v3162 = vunpack.c.l.b16 %v742
    %v3163 = vunpack.c.h.b16 %v742
    %v3164 = vunpack.c.l.b16 %v743
    %v3165 = vunpack.c.h.b16 %v743
    %v3166 = vunpack.c.l.b16 %v744
    %v3167 = vunpack.c.h.b16 %v744
    %v3168 = vunpack.c.l.b16 %v745
    %v3169 = vunpack.c.h.b16 %v745
    %v3170 = vunpack.c.l.b16 %v746
    %v3171 = vunpack.c.h.b16 %v746
    %v3172 = vunpack.c.l.b16 %v747
    %v3173 = vunpack.c.h.b16 %v747
    %v3174 = vunpack.c.l.b16 %v748
    %v3175 = vunpack.c.h.b16 %v748
    %v3176 = vunpack.c.l.b16 %v749
    %v3177 = vunpack.c.h.b16 %v749
    %v3178 = vunpack.c.l.b16 %v750
    %v3179 = vunpack.c.h.b16 %v750
    %v3180 = vunpack.c.l.b16 %v751
    %v3181 = vunpack.c.h.b16 %v751
    %v3182 = vunpack.c.l.b16 %v752
    %v3183 = vunpack.c.h.b16 %v752
    %v3184 = vunpack.c.l.b16 %v753
    %v3185 = vunpack.c.h.b16 %v753
    %v3186 = vunpack.c.l.b16 %v754
    %v3187 = vunpack.c.h.b16 %v754
    %v3188 = vunpack.c.l.b16 %v755
    %v3189 = vunpack.c.h.b16 %v755
    %v3190 = vunpack.c.l.b16 %v756
    %v3191 = vunpack.c.h.b16 %v756
    %v3192 = vunpack.c.l.b16 %v757
    %v3193 = vunpack.c.h.b16 %v757
    %v3194 = vunpack.c.l.b16 %v758
    %v3195 = vunpack.c.h.b16 %v758
    %v3196 = vunpack.c.l.b16 %v759
    %v3197 = vunpack.c.h.b16 %v759
    %v3198 = vunpack.c.l.b16 %v760
    %v3199 = vunpack.c.h.b16 %v760
    %v3200 = vunpack.c.l.b16 %v761
    %v3201 = vunpack.c.h.b16 %v761
    %v3202 = vunpack.c.l.b16 %v762
    %v3203 = vunpack.c.h.b16 %v762
    %v3204 = vunpack.c.l.b16 %v763
    %v3205 = vunpack.c.h.b16 %v763
    %v3206 = vunpack.c.l.b16 %v764
    %v3207 = vunpack.c.h.b16 %v764
    %v3208 = vunpack.c.l.b16 %v765
    %v3209 = vunpack.c.h.b16 %v765
    %v3210 = vunpack.c.l.b16 %v766
    %v3211 = vunpack.c.h.b16 %v766
    %v3212 = vunpack.c.l.b16 %v767
    %v3213 = vunpack.c.h.b16 %v767
    %v3214 = vunpack.c.l.b16 %v768
    %v3215 = vunpack.c.h.b16 %v768
    %v3216 = vunpack.c.l.b16 %v769
    %v3217 = vunpack.c.h.b16 %v769
    %v3218 = vunpack.c.l.b16 %v770
    %v3219 = vunpack.c.h.b16 %v770
    %v3220 = vunpack.c.l.b16 %v771
    %v3221 = vunpack.c.h.b16 %v771
    %v3222 = vunpack.c.l.b16 %v772
    %v3223 = vunpack.c.h.b16 %v772
    %v3224 = vunpack.c.l.b16 %v773
    %v3225 = vunpack.c.h.b16 %v773
    %v3226 = vunpack.c.l.b16 %v774
    %v3227 = vunpack.c.h.b16 %v774
    %v3228 = vunpack.c.l.b16 %v775
    %v3229 = vunpack.c.h.b16 %v775
    %v3230 = vunpack.c.l.b16 %v776
    %v3231 = vunpack.c.h.b16 %v776
    %v3232 = vunpack.c.l.b16 %v777
    %v3233 = vunpack.c.h.b16 %v777
    %v3234 = vunpack.c.l.b16 %v778
    %v3235 = vunpack.c.h.b16 %v778
    %v3236 = vunpack.c.l.b16 %v779
    %v3237 = vunpack.c.h.b16 %v779
    %v3238 = vunpack.c.l.b16 %v780
    %v3239 = vunpack.c.h.b16 %v780
    %v3240 = vunpack.c.l.b16 %v781
    %v3241 = vunpack.c.h.b16 %v781
    %v3242 = vunpack.c.l.b16 %v782
    %v3243 = vunpack.c.h.b16 %v782
    %v3244 = vunpack.c.l.b16 %v783
    %v3245 = vunpack.c.h.b16 %v783
    %v3246 = vunpack.c.l.b16 %v784
    %v3247 = vunpack.c.h.b16 %v784
    %v3248 = vunpack.c.l.b16 %v785
    %v3249 = vunpack.c.h.b16 %v785
    %v3250 = vunpack.c.l.b16 %v786
    %v3251 = vunpack.c.h.b16 %v786
    %v3252 = vunpack.c.l.b16 %v787
    %v3253 = vunpack.c.h.b16 %v787
    %v3254 = vunpack.c.l.b16 %v788
    %v3255 = vunpack.c.h.b16 %v788
    %v3256 = vunpack.c.l.b16 %v789
    %v3257 = vunpack.c.h.b16 %v789
    %v3258 = vunpack.c.l.b16 %v790
    %v3259 = vunpack.c.h.b16 %v790
    %v3260 = vunpack.c.l.b16 %v791
    %v3261 = vunpack.c.h.b16 %v791
    %v3262 = vunpack.c.l.b16 %v792
    %v3263 = vunpack.c.h.b16 %v792
    %v3264 = vunpack.c.l.b16 %v793
    %v3265 = vunpack.c.h.b16 %v793
    %v3266 = vunpack.c.l.b16 %v794
    %v3267 = vunpack.c.h.b16 %v794
    %v3268 = vunpack.c.l.b16 %v795
    %v3269 = vunpack.c.h.b16 %v795
    %v3270 = vunpack.c.l.b16 %v796
    %v3271 = vunpack.c.h.b16 %v796
    %v3272 = vunpack.c.l.b16 %v797
    %v3273 = vunpack.c.h.b16 %v797
    %v3274 = vunpack.c.l.b16 %v798
    %v3275 = vunpack.c.h.b16 %v798
    %v3276 = vunpack.c.l.b16 %v799
    %v3277 = vunpack.c.h.b16 %v799
    %v3278 = vunpack.c.l.b16 %v800
    %v3279 = vunpack.c.h.b16 %v800
    %v3280 = vunpack.c.l.b16 %v801
    %v3281 = vunpack.c.h.b16 %v801
    %v3282 = vunpack.c.l.b16 %v802
    %v3283 = vunpack.c.h.b16 %v802
    %v3284 = vunpack.c.l.b16 %v803
    %v3285 = vunpack.c.h.b16 %v803
    %v3286 = vunpack.c.l.b16 %v804
    %v3287 = vunpack.c.h.b16 %v804
    %v3288 = vunpack.c.l.b16 %v805
    %v3289 = vunpack.c.h.b16 %v805
    %v3290 = vunpack.c.l.b16 %v806
    %v3291 = vunpack.c.h.b16 %v806
    %v3292 = vunpack.c.l.b16 %v807
    %v3293 = vunpack.c.h.b16 %v807
    %v3294 = vunpack.c.l.b16 %v808
    %v3295 = vunpack.c.h.b16 %v808
    %v3296 = vunpack.c.l.b16 %v809
    %v3297 = vunpack.c.h.b16 %v809
    %v3298 = vunpack.c.l.b16 %v810
    %v3299 = vunpack.c.h.b16 %v810
    %v3300 = vunpack.c.l.b16 %v811
    %v3301 = vunpack.c.h.b16 %v811
    %v3302 = vunpack.c.l.b16 %v812
    %v3303 = vunpack.c.h.b16 %v812
    %v3304 = vunpack.c.l.b16 %v813
    %v3305 = vunpack.c.h.b16 %v813
    %v3306 = vunpack.c.l.b16 %v814
    %v3307 = vunpack.c.h.b16 %v814
    %v3308 = vunpack.c.l.b16 %v815
    %v3309 = vunpack.c.h.b16 %v815
    %v3310 = vunpack.c.l.b16 %v816
    %v3311 = vunpack.c.h.b16 %v816
    %v3312 = vunpack.c.l.b16 %v817
    %v3313 = vunpack.c.h.b16 %v817
    %v3314 = vunpack.c.l.b16 %v818
    %v3315 = vunpack.c.h.b16 %v818
    %v3316 = vunpack.c.l.b16 %v819
    %v3317 = vunpack.c.h.b16 %v819
    %v3318 = vunpack.c.l.b16 %v820
    %v3319 = vunpack.c.h.b16 %v820
    %v3320 = vunpack.c.l.b16 %v821
    %v3321 = vunpack.c.h.b16 %v821
    %v3322 = vunpack.c.l.b16 %v822
    %v3323 = vunpack.c.h.b16 %v822
    %v3324 = vunpack.c.l.b16 %v823
    %v3325 = vunpack.c.h.b16 %v823
    %v3326 = vunpack.c.l.b16 %v824
    %v3327 = vunpack.c.h.b16 %v824
    %v3328 = vunpack.c.l.b16 %v825
    %v3329 = vunpack.c.h.b16 %v825
    %v3330 = vunpack.c.l.b16 %v826
    %v3331 = vunpack.c.h.b16 %v826
    %v3332 = vunpack.c.l.b16 %v827
    %v3333 = vunpack.c.h.b16 %v827
    %v3334 = vunpack.c.l.b16 %v828
    %v3335 = vunpack.c.h.b16 %v828
    %v3336 = vunpack.c.l.b16 %v829
    %v3337 = vunpack.c.h.b16 %v829
    %v3338 = vunpack.c.l.b16 %v830
    %v3339 = vunpack.c.h.b16 %v830
    %v3340 = vunpack.c.l.b16 %v831
    %v3341 = vunpack.c.h.b16 %v831
    %v3342 = vunpack.c.l.b16 %v832
    %v3343 = vunpack.c.h.b16 %v832
    %v3344 = vunpack.c.l.b16 %v833
    %v3345 = vunpack.c.h.b16 %v833
    %v3346 = vunpack.c.l.b16 %v834
    %v3347 = vunpack.c.h.b16 %v834
    %v3348 = vunpack.c.l.b16 %v835
    %v3349 = vunpack.c.h.b16 %v835
    %v3350 = vunpack.c.l.b16 %v836
    %v3351 = vunpack.c.h.b16 %v836
    %v3352 = vunpack.c.l.b16 %v837
    %v3353 = vunpack.c.h.b16 %v837
    %v3354 = vunpack.c.l.b16 %v838
    %v3355 = vunpack.c.h.b16 %v838
    %v3356 = vunpack.c.l.b16 %v839
    %v3357 = vunpack.c.h.b16 %v839
    %v3358 = vunpack.c.l.b16 %v840
    %v3359 = vunpack.c.h.b16 %v840
    %v3360 = vunpack.c.l.b16 %v841
    %v3361 = vunpack.c.h.b16 %v841
    %v3362 = vunpack.c.l.b16 %v842
    %v3363 = vunpack.c.h.b16 %v842
    %v3364 = vunpack.c.l.b16 %v843
    %v3365 = vunpack.c.h.b16 %v843
    %v3366 = vunpack.c.l.b16 %v844
    %v3367 = vunpack.c.h.b16 %v844
    %v3368 = vunpack.c.l.b16 %v845
    %v3369 = vunpack.c.h.b16 %v845
    %v3370 = vunpack.c.l.b16 %v846
    %v3371 = vunpack.c.h.b16 %v846
    %v3372 = vunpack.c.l.b16 %v847
    %v3373 = vunpack.c.h.b16 %v847
    %v3374 = vunpack.c.l.b16 %v848
    %v3375 = vunpack.c.h.b16 %v848
    %v3376 = vunpack.c.l.b16 %v849
    %v3377 = vunpack.c.h.b16 %v849
    %v3378 = vunpack.c.l.b16 %v850
    %v3379 = vunpack.c.h.b16 %v850
    %v3380 = vunpack.c.l.b16 %v851
    %v3381 = vunpack.c.h.b16 %v851
    %v3382 = vunpack.c.l.b16 %v852
    %v3383 = vunpack.c.h.b16 %v852
    %v3384 = vunpack.c.l.b16 %v853
    %v3385 = vunpack.c.h.b16 %v853
    %v3386 = vunpack.c.l.b16 %v854
    %v3387 = vunpack.c.h.b16 %v854
    %v3388 = vunpack.c.l.b16 %v855
    %v3389 = vunpack.c.h.b16 %v855
    %v3390 = vunpack.c.l.b16 %v856
    %v3391 = vunpack.c.h.b16 %v856
    %v3392 = vunpack.c.l.b16 %v857
    %v3393 = vunpack.c.h.b16 %v857
    %v3394 = vunpack.c.l.b16 %v858
    %v3395 = vunpack.c.h.b16 %v858
    %v3396 = vunpack.c.l.b16 %v859
    %v3397 = vunpack.c.h.b16 %v859
    %v3398 = vunpack.c.l.b16 %v860
    %v3399 = vunpack.c.h.b16 %v860
    %v3400 = vunpack.c.l.b16 %v861
    %v3401 = vunpack.c.h.b16 %v861
    %v3402 = vunpack.c.l.b16 %v862
    %v3403 = vunpack.c.h.b16 %v862
    %v3404 = vunpack.c.l.b16 %v863
    %v3405 = vunpack.c.h.b16 %v863
    %v3406 = vunpack.c.l.b16 %v864
    %v3407 = vunpack.c.h.b16 %v864
    %v3408 = vunpack.c.l.b16 %v865
    %v3409 = vunpack.c.h.b16 %v865
    %v3410 = vunpack.c.l.b16 %v866
    %v3411 = vunpack.c.h.b16 %v866
    %v3412 = vunpack.c.l.b16 %v867
    %v3413 = vunpack.c.h.b16 %v867
    %v3414 = vunpack.c.l.b16 %v868
    %v3415 = vunpack.c.h.b16 %v868
    %v3416 = vunpack.c.l.b16 %v869
    %v3417 = vunpack.c.h.b16 %v869
    %v3418 = vunpack.c.l.b16 %v870
    %v3419 = vunpack.c.h.b16 %v870
    %v3420 = vunpack.c.l.b16 %v871
    %v3421 = vunpack.c.h.b16 %v871
    %v3422 = vunpack.c.l.b16 %v872
    %v3423 = vunpack.c.h.b16 %v872
    %v3424 = vunpack.c.l.b16 %v873
    %v3425 = vunpack.c.h.b16 %v873
    %v3426 = vunpack.c.l.b16 %v874
    %v3427 = vunpack.c.h.b16 %v874
    %v3428 = vunpack.c.l.b16 %v875
    %v3429 = vunpack.c.h.b16 %v875
    %v3430 = vunpack.c.l.b16 %v876
    %v3431 = vunpack.c.h.b16 %v876
    %v3432 = vunpack.c.l.b16 %v877
    %v3433 = vunpack.c.h.b16 %v877
    %v3434 = vunpack.c.l.b16 %v878
    %v3435 = vunpack.c.h.b16 %v878
    %v3436 = vunpack.c.l.b16 %v879
    %v3437 = vunpack.c.h.b16 %v879
    %v3438 = vunpack.c.l.b16 %v880
    %v3439 = vunpack.c.h.b16 %v880
    %v3440 = vunpack.c.l.b16 %v881
    %v3441 = vunpack.c.h.b16 %v881
    %v3442 = vunpack.c.l.b16 %v882
    %v3443 = vunpack.c.h.b16 %v882
    %v3444 = vunpack.c.l.b16 %v883
    %v3445 = vunpack.c.h.b16 %v883
    %v3446 = vunpack.c.l.b16 %v884
    %v3447 = vunpack.c.h.b16 %v884
    %v3448 = vunpack.c.l.b16 %v885
    %v3449 = vunpack.c.h.b16 %v885
    %v3450 = vunpack.c.l.b16 %v886
    %v3451 = vunpack.c.h.b16 %v886
    %v3452 = vunpack.c.l.b16 %v887
    %v3453 = vunpack.c.h.b16 %v887
    %v3454 = vunpack.c.l.b16 %v888
    %v3455 = vunpack.c.h.b16 %v888
    %v3456 = vunpack.c.l.b16 %v889
    %v3457 = vunpack.c.h.b16 %v889
    %v3458 = vunpack.c.l.b16 %v890
    %v3459 = vunpack.c.h.b16 %v890
    %v3460 = vunpack.c.l.b16 %v891
    %v3461 = vunpack.c.h.b16 %v891
    %v3462 = vunpack.c.l.b16 %v892
    %v3463 = vunpack.c.h.b16 %v892
    %v3464 = vunpack.c.l.b16 %v893
    %v3465 = vunpack.c.h.b16 %v893
    %v3466 = vunpack.c.l.b16 %v894
    %v3467 = vunpack.c.h.b16 %v894
    %v3468 = vunpack.c.l.b16 %v895
    %v3469 = vunpack.c.h.b16 %v895
    %v3470 = vunpack.c.l.b16 %v896
    %v3471 = vunpack.c.h.b16 %v896
    %v3472 = vunpack.c.l.b16 %v897
    %v3473 = vunpack.c.h.b16 %v897
    %v3474 = vunpack.c.l.b16 %v898
    %v3475 = vunpack.c.h.b16 %v898
    %v3476 = vunpack.c.l.b16 %v899
    %v3477 = vunpack.c.h.b16 %v899
    %v3478 = vunpack.c.l.b16 %v900
    %v3479 = vunpack.c.h.b16 %v900
    %v3480 = vunpack.c.l.b16 %v901
    %v3481 = vunpack.c.h.b16 %v901
    %v3482 = vunpack.c.l.b16 %v902
    %v3483 = vunpack.c.h.b16 %v902
    %v3484 = vpack.c.b16 %v1886, %v1884
    %v3485 = vpack.c.b16 %v1887, %v1885
    %v3486 = vpack.c.b16 %v1890, %v1888
    %v3487 = vpack.c.b16 %v1891, %v1889
    %v3488 = vpack.c.b16 %v1894, %v1892
    %v3489 = vpack.c.b16 %v1895, %v1893
    %v3490 = vpack.c.b16 %v1898, %v1896
    %v3491 = vpack.c.b16 %v1899, %v1897
    %v3492 = vpack.c.b16 %v1902, %v1900
    %v3493 = vpack.c.b16 %v1903, %v1901
    %v3494 = vpack.c.b16 %v1906, %v1904
    %v3495 = vpack.c.b16 %v1907, %v1905
    %v3496 = vpack.c.b16 %v1910, %v1908
    %v3497 = vpack.c.b16 %v1911, %v1909
    %v3498 = vpack.c.b16 %v1914, %v1912
    %v3499 = vpack.c.b16 %v1915, %v1913
    %v3500 = vpack.c.b16 %v1918, %v1916
    %v3501 = vpack.c.b16 %v1919, %v1917
    %v3502 = vpack.c.b16 %v1922, %v1920
    %v3503 = vpack.c.b16 %v1923, %v1921
    %v3504 = vpack.c.b16 %v1926, %v1924
    %v3505 = vpack.c.b16 %v1927, %v1925
    %v3506 = vpack.c.b16 %v1930, %v1928
    %v3507 = vpack.c.b16 %v1931, %v1929
    %v3508 = vpack.c.b16 %v1934, %v1932
    %v3509 = vpack.c.b16 %v1935, %v1933
    %v3510 = vpack.c.b16 %v1938, %v1936
    %v3511 = vpack.c.b16 %v1939, %v1937
    %v3512 = vpack.c.b16 %v1942, %v1940
    %v3513 = vpack.c.b16 %v1943, %v1941
    %v3514 = vpack.c.b16 %v1946, %v1944
    %v3515 = vpack.c.b16 %v1947, %v1945
    %v3516 = vpack.c.b16 %v1950, %v1948
    %v3517 = vpack.c.b16 %v1951, %v1949
    %v3518 = vpack.c.b16 %v1954, %v1952
    %v3519 = vpack.c.b16 %v1955, %v1953
    %v3520 = vpack.c.b16 %v1958, %v1956
    %v3521 = vpack.c.b16 %v1959, %v1957
    %v3522 = vpack.c.b16 %v1962, %v1960
    %v3523 = vpack.c.b16 %v1963, %v1961
    %v3524 = vpack.c.b16 %v1966, %v1964
    %v3525 = vpack.c.b16 %v1967, %v1965
    %v3526 = vpack.c.b16 %v1970, %v1968
    %v3527 = vpack.c.b16 %v1971, %v1969
    %v3528 = vpack.c.b16 %v1974, %v1972
    %v3529 = vpack.c.b16 %v1975, %v1973
    %v3530 = vpack.c.b16 %v1978, %v1976
    %v3531 = vpack.c.b16 %v1979, %v1977
    %v3532 = vpack.c.b16 %v1982, %v1980
    %v3533 = vpack.c.b16 %v1983, %v1981
    %v3534 = vpack.c.b16 %v1986, %v1984
    %v3535 = vpack.c.b16 %v1987, %v1985
    %v3536 = vpack.c.b16 %v1990, %v1988
    %v3537 = vpack.c.b16 %v1991, %v1989
    %v3538 = vpack.c.b16 %v1994, %v1992
    %v3539 = vpack.c.b16 %v1995, %v1993
    %v3540 = vpack.c.b16 %v1998, %v1996
    %v3541 = vpack.c.b16 %v1999, %v1997
    %v3542 = vpack.c.b16 %v2002, %v2000
    %v3543 = vpack.c.b16 %v2003, %v2001
    %v3544 = vpack.c.b16 %v2006, %v2004
    %v3545 = vpack.c.b16 %v2007, %v2005
    %v3546 = vpack.c.b16 %v2010, %v2008
    %v3547 = vpack.c.b16 %v2011, %v2009
    %v3548 = vpack.c.b16 %v2014, %v2012
    %v3549 = vpack.c.b16 %v2015, %v2013
    %v3550 = vpack.c.b16 %v2018, %v2016
    %v3551 = vpack.c.b16 %v2019, %v2017
    %v3552 = vpack.c.b16 %v2022, %v2020
    %v3553 = vpack.c.b16 %v2023, %v2021
    %v3554 = vpack.c.b16 %v2026, %v2024
    %v3555 = vpack.c.b16 %v2027, %v2025
    %v3556 = vpack.c.b16 %v2030, %v2028
    %v3557 = vpack.c.b16 %v2031, %v2029
    %v3558 = vpack.c.b16 %v2034, %v2032
    %v3559 = vpack.c.b16 %v2035, %v2033
    %v3560 = vpack.c.b16 %v2038, %v2036
    %v3561 = vpack.c.b16 %v2039, %v2037
    %v3562 = vpack.c.b16 %v2042, %v2040
    %v3563 = vpack.c.b16 %v2043, %v2041
    %v3564 = vpack.c.b16 %v2046, %v2044
    %v3565 = vpack.c.b16 %v2047, %v2045
    %v3566 = vpack.c.b16 %v2050, %v2048
    %v3567 = vpack.c.b16 %v2051, %v2049
    %v3568 = vpack.c.b16 %v2054, %v2052
    %v3569 = vpack.c.b16 %v2055, %v2053
    %v3570 = vpack.c.b16 %v2058, %v2056
    %v3571 = vpack.c.b16 %v2059, %v2057
    %v3572 = vpack.c.b16 %v2062, %v2060
    %v3573 = vpack.c.b16 %v2063, %v2061
    %v3574 = vpack.c.b16 %v2066, %v2064
    %v3575 = vpack.c.b16 %v2067, %v2065
    %v3576 = vpack.c.b16 %v2070, %v2068
    %v3577 = vpack.c.b16 %v2071, %v2069
    %v3578 = vpack.c.b16 %v2074, %v2072
    %v3579 = vpack.c.b16 %v2075, %v2073
    %v3580 = vpack.c.b16 %v2078, %v2076
    %v3581 = vpack.c.b16 %v2079, %v2077
    %v3582 = vpack.c.b16 %v2082, %v2080
    %v3583 = vpack.c.b16 %v2083, %v2081
    %v3584 = vpack.c.b16 %v2086, %v2084
    %v3585 = vpack.c.b16 %v2087, %v2085
    %v3586 = vpack.c.b16 %v2090, %v2088
    %v3587 = vpack.c.b16 %v2091, %v2089
    %v3588 = vpack.c.b16 %v2094, %v2092
    %v3589 = vpack.c.b16 %v2095, %v2093
    %v3590 = vpack.c.b16 %v2098, %v2096
    %v3591 = vpack.c.b16 %v2099, %v2097
    %v3592 = vpack.c.b16 %v2102, %v2100
    %v3593 = vpack.c.b16 %v2103, %v2101
    %v3594 = vpack.c.b16 %v2106, %v2104
    %v3595 = vpack.c.b16 %v2107, %v2105
    %v3596 = vpack.c.b16 %v2110, %v2108
    %v3597 = vpack.c.b16 %v2111, %v2109
    %v3598 = vpack.c.b16 %v2114, %v2112
    %v3599 = vpack.c.b16 %v2115, %v2113
    %v3600 = vpack.c.b16 %v2118, %v2116
    %v3601 = vpack.c.b16 %v2119, %v2117
    %v3602 = vpack.c.b16 %v2122, %v2120
    %v3603 = vpack.c.b16 %v2123, %v2121
    %v3604 = vpack.c.b16 %v2126, %v2124
    %v3605 = vpack.c.b16 %v2127, %v2125
    %v3606 = vpack.c.b16 %v2130, %v2128
    %v3607 = vpack.c.b16 %v2131, %v2129
    %v3608 = vpack.c.b16 %v2134, %v2132
    %v3609 = vpack.c.b16 %v2135, %v2133
    %v3610 = vpack.c.b16 %v2138, %v2136
    %v3611 = vpack.c.b16 %v2139, %v2137
    %v3612 = vpack.c.b16 %v2142, %v2140
    %v3613 = vpack.c.b16 %v2143, %v2141
    %v3614 = vpack.c.b16 %v2146, %v2144
    %v3615 = vpack.c.b16 %v2147, %v2145
    %v3616 = vpack.c.b16 %v2150, %v2148
    %v3617 = vpack.c.b16 %v2151, %v2149
    %v3618 = vpack.c.b16 %v2154, %v2152
    %v3619 = vpack.c.b16 %v2155, %v2153
    %v3620 = vpack.c.b16 %v2158, %v2156
    %v3621 = vpack.c.b16 %v2159, %v2157
    %v3622 = vpack.c.b16 %v2162, %v2160
    %v3623 = vpack.c.b16 %v2163, %v2161
    %v3624 = vpack.c.b16 %v2166, %v2164
    %v3625 = vpack.c.b16 %v2167, %v2165
    %v3626 = vpack.c.b16 %v2170, %v2168
    %v3627 = vpack.c.b16 %v2171, %v2169
    %v3628 = vpack.c.b16 %v2174, %v2172
    %v3629 = vpack.c.b16 %v2175, %v2173
    %v3630 = vpack.c.b16 %v2178, %v2176
    %v3631 = vpack.c.b16 %v2179, %v2177
    %v3632 = vpack.c.b16 %v2182, %v2180
    %v3633 = vpack.c.b16 %v2183, %v2181
    %v3634 = vpack.c.b16 %v2186, %v2184
    %v3635 = vpack.c.b16 %v2187, %v2185
    %v3636 = vpack.c.b16 %v2190, %v2188
    %v3637 = vpack.c.b16 %v2191, %v2189
    %v3638 = vpack.c.b16 %v2194, %v2192
    %v3639 = vpack.c.b16 %v2195, %v2193
    %v3640 = vpack.c.b16 %v2198, %v2196
    %v3641 = vpack.c.b16 %v2199, %v2197
    %v3642 = vpack.c.b16 %v2202, %v2200
    %v3643 = vpack.c.b16 %v2203, %v2201
    %v3644 = vpack.c.b16 %v2206, %v2204
    %v3645 = vpack.c.b16 %v2207, %v2205
    %v3646 = vpack.c.b16 %v2210, %v2208
    %v3647 = vpack.c.b16 %v2211, %v2209
    %v3648 = vpack.c.b16 %v2214, %v2212
    %v3649 = vpack.c.b16 %v2215, %v2213
    %v3650 = vpack.c.b16 %v2218, %v2216
    %v3651 = vpack.c.b16 %v2219, %v2217
    %v3652 = vpack.c.b16 %v2222, %v2220
    %v3653 = vpack.c.b16 %v2223, %v2221
    %v3654 = vpack.c.b16 %v2226, %v2224
    %v3655 = vpack.c.b16 %v2227, %v2225
    %v3656 = vpack.c.b16 %v2230, %v2228
    %v3657 = vpack.c.b16 %v2231, %v2229
    %v3658 = vpack.c.b16 %v2234, %v2232
    %v3659 = vpack.c.b16 %v2235, %v2233
    %v3660 = vpack.c.b16 %v2238, %v2236
    %v3661 = vpack.c.b16 %v2239, %v2237
    %v3662 = vpack.c.b16 %v2242, %v2240
    %v3663 = vpack.c.b16 %v2243, %v2241
    %v3664 = vpack.c.b16 %v2246, %v2244
    %v3665 = vpack.c.b16 %v2247, %v2245
    %v3666 = vpack.c.b16 %v2250, %v2248
    %v3667 = vpack.c.b16 %v2251, %v2249
    %v3668 = vpack.c.b16 %v2254, %v2252
    %v3669 = vpack.c.b16 %v2255, %v2253
    %v3670 = vpack.c.b16 %v2258, %v2256
    %v3671 = vpack.c.b16 %v2259, %v2257
    %v3672 = vpack.c.b16 %v2262, %v2260
    %v3673 = vpack.c.b16 %v2263, %v2261
    %v3674 = vpack.c.b16 %v2266, %v2264
    %v3675 = vpack.c.b16 %v2267, %v2265
    %v3676 = vpack.c.b16 %v2270, %v2268
    %v3677 = vpack.c.b16 %v2271, %v2269
    %v3678 = vpack.c.b16 %v2274, %v2272
    %v3679 = vpack.c.b16 %v2275, %v2273
    %v3680 = vpack.c.b16 %v2278, %v2276
    %v3681 = vpack.c.b16 %v2279, %v2277
    %v3682 = vpack.c.b16 %v2282, %v2280
    %v3683 = vpack.c.b16 %v2283, %v2281
    %v3684 = vpack.c.b16 %v2286, %v2284
    %v3685 = vpack.c.b16 %v2287, %v2285
    %v3686 = vpack.c.b16 %v2290, %v2288
    %v3687 = vpack.c.b16 %v2291, %v2289
    %v3688 = vpack.c.b16 %v2294, %v2292
    %v3689 = vpack.c.b16 %v2295, %v2293
    %v3690 = vpack.c.b16 %v2298, %v2296
    %v3691 = vpack.c.b16 %v2299, %v2297
    %v3692 = vpack.c.b16 %v2302, %v2300
    %v3693 = vpack.c.b16 %v2303, %v2301
    %v3694 = vpack.c.b16 %v2306, %v2304
    %v3695 = vpack.c.b16 %v2307, %v2305
    %v3696 = vpack.c.b16 %v2310, %v2308
    %v3697 = vpack.c.b16 %v2311, %v2309
    %v3698 = vpack.c.b16 %v2314, %v2312
    %v3699 = vpack.c.b16 %v2315, %v2313
    %v3700 = vpack.c.b16 %v2318, %v2316
    %v3701 = vpack.c.b16 %v2319, %v2317
    %v3702 = vpack.c.b16 %v2322, %v2320
    %v3703 = vpack.c.b16 %v2323, %v2321
    %v3704 = vpack.c.b16 %v2326, %v2324
    %v3705 = vpack.c.b16 %v2327, %v2325
    %v3706 = vpack.c.b16 %v2330, %v2328
    %v3707 = vpack.c.b16 %v2331, %v2329
    %v3708 = vpack.c.b16 %v2334, %v2332
    %v3709 = vpack.c.b16 %v2335, %v2333
    %v3710 = vpack.c.b16 %v2338, %v2336
    %v3711 = vpack.c.b16 %v2339, %v2337
    %v3712 = vpack.c.b16 %v2342, %v2340
    %v3713 = vpack.c.b16 %v2343, %v2341
    %v3714 = vpack.c.b16 %v2346, %v2344
    %v3715 = vpack.c.b16 %v2347, %v2345
    %v3716 = vpack.c.b16 %v2350, %v2348
    %v3717 = vpack.c.b16 %v2351, %v2349
    %v3718 = vpack.c.b16 %v2354, %v2352
    %v3719 = vpack.c.b16 %v2355, %v2353
    %v3720 = vpack.c.b16 %v2358, %v2356
    %v3721 = vpack.c.b16 %v2359, %v2357
    %v3722 = vpack.c.b16 %v2362, %v2360
    %v3723 = vpack.c.b16 %v2363, %v2361
    %v3724 = vpack.c.b16 %v2366, %v2364
    %v3725 = vpack.c.b16 %v2367, %v2365
    %v3726 = vpack.c.b16 %v2370, %v2368
    %v3727 = vpack.c.b16 %v2371, %v2369
    %v3728 = vpack.c.b16 %v2374, %v2372
    %v3729 = vpack.c.b16 %v2375, %v2373
    %v3730 = vpack.c.b16 %v2378, %v2376
    %v3731 = vpack.c.b16 %v2379, %v2377
    %v3732 = vpack.c.b16 %v2382, %v2380
    %v3733 = vpack.c.b16 %v2383, %v2381
    %v3734 = vpack.c.b16 %v2386, %v2384
    %v3735 = vpack.c.b16 %v2387, %v2385
    %v3736 = vpack.c.b16 %v2390, %v2388
    %v3737 = vpack.c.b16 %v2391, %v2389
    %v3738 = vpack.c.b16 %v2394, %v2392
    %v3739 = vpack.c.b16 %v2395, %v2393
    %v3740 = vpack.c.b16 %v2398, %v2396
    %v3741 = vpack.c.b16 %v2399, %v2397
    %v3742 = vpack.c.b16 %v2402, %v2400
    %v3743 = vpack.c.b16 %v2403, %v2401
    %v3744 = vpack.c.b16 %v2406, %v2404
    %v3745 = vpack.c.b16 %v2407, %v2405
    %v3746 = vpack.c.b16 %v2410, %v2408
    %v3747 = vpack.c.b16 %v2411, %v2409
    %v3748 = vpack.c.b16 %v2414, %v2412
    %v3749 = vpack.c.b16 %v2415, %v2413
    %v3750 = vpack.c.b16 %v2418, %v2416
    %v3751 = vpack.c.b16 %v2419, %v2417
    %v3752 = vpack.c.b16 %v2422, %v2420
    %v3753 = vpack.c.b16 %v2423, %v2421
    %v3754 = vpack.c.b16 %v2426, %v2424
    %v3755 = vpack.c.b16 %v2427, %v2425
    %v3756 = vpack.c.b16 %v2430, %v2428
    %v3757 = vpack.c.b16 %v2431, %v2429
    %v3758 = vpack.c.b16 %v2434, %v2432
    %v3759 = vpack.c.b16 %v2435, %v2433
    %v3760 = vpack.c.b16 %v2438, %v2436
    %v3761 = vpack.c.b16 %v2439, %v2437
    %v3762 = vpack.c.b16 %v2442, %v2440
    %v3763 = vpack.c.b16 %v2443, %v2441
    %v3764 = vpack.c.b16 %v2446, %v2444
    %v3765 = vpack.c.b16 %v2447, %v2445
    %v3766 = vpack.c.b16 %v2450, %v2448
    %v3767 = vpack.c.b16 %v2451, %v2449
    %v3768 = vpack.c.b16 %v2454, %v2452
    %v3769 = vpack.c.b16 %v2455, %v2453
    %v3770 = vpack.c.b16 %v2458, %v2456
    %v3771 = vpack.c.b16 %v2459, %v2457
    %v3772 = vpack.c.b16 %v2462, %v2460
    %v3773 = vpack.c.b16 %v2463, %v2461
    %v3774 = vpack.c.b16 %v2466, %v2464
    %v3775 = vpack.c.b16 %v2467, %v2465
    %v3776 = vpack.c.b16 %v2470, %v2468
    %v3777 = vpack.c.b16 %v2471, %v2469
    %v3778 = vpack.c.b16 %v2474, %v2472
    %v3779 = vpack.c.b16 %v2475, %v2473
    %v3780 = vpack.c.b16 %v2478, %v2476
    %v3781 = vpack.c.b16 %v2479, %v2477
    %v3782 = vpack.c.b16 %v2482, %v2480
    %v3783 = vpack.c.b16 %v2483, %v2481
    %v3784 = vpack.c.b16 %v2486, %v2484
    %v3785 = vpack.c.b16 %v2487, %v2485
    %v3786 = vpack.c.b16 %v2490, %v2488
    %v3787 = vpack.c.b16 %v2491, %v2489
    %v3788 = vpack.c.b16 %v2494, %v2492
    %v3789 = vpack.c.b16 %v2495, %v2493
    %v3790 = vpack.c.b16 %v2498, %v2496
    %v3791 = vpack.c.b16 %v2499, %v2497
    %v3792 = vpack.c.b16 %v2502, %v2500
    %v3793 = vpack.c.b16 %v2503, %v2501
    %v3794 = vpack.c.b16 %v2506, %v2504
    %v3795 = vpack.c.b16 %v2507, %v2505
    %v3796 = vpack.c.b16 %v2510, %v2508
    %v3797 = vpack.c.b16 %v2511, %v2509
    %v3798 = vpack.c.b16 %v2514, %v2512
    %v3799 = vpack.c.b16 %v2515, %v2513
    %v3800 = vpack.c.b16 %v2518, %v2516
    %v3801 = vpack.c.b16 %v2519, %v2517
    %v3802 = vpack.c.b16 %v2522, %v2520
    %v3803 = vpack.c.b16 %v2523, %v2521
    %v3804 = vpack.c.b16 %v2526, %v2524
    %v3805 = vpack.c.b16 %v2527, %v2525
    %v3806 = vpack.c.b16 %v2530, %v2528
    %v3807 = vpack.c.b16 %v2531, %v2529
    %v3808 = vpack.c.b16 %v2534, %v2532
    %v3809 = vpack.c.b16 %v2535, %v2533
    %v3810 = vpack.c.b16 %v2538, %v2536
    %v3811 = vpack.c.b16 %v2539, %v2537
    %v3812 = vpack.c.b16 %v2542, %v2540
    %v3813 = vpack.c.b16 %v2543, %v2541
    %v3814 = vpack.c.b16 %v2546, %v2544
    %v3815 = vpack.c.b16 %v2547, %v2545
    %v3816 = vpack.c.b16 %v2550, %v2548
    %v3817 = vpack.c.b16 %v2551, %v2549
    %v3818 = vpack.c.b16 %v2554, %v2552
    %v3819 = vpack.c.b16 %v2555, %v2553
    %v3820 = vpack.c.b16 %v2558, %v2556
    %v3821 = vpack.c.b16 %v2559, %v2557
    %v3822 = vpack.c.b16 %v2562, %v2560
    %v3823 = vpack.c.b16 %v2563, %v2561
    %v3824 = vpack.c.b16 %v2566, %v2564
    %v3825 = vpack.c.b16 %v2567, %v2565
    %v3826 = vpack.c.b16 %v2570, %v2568
    %v3827 = vpack.c.b16 %v2571, %v2569
    %v3828 = vpack.c.b16 %v2574, %v2572
    %v3829 = vpack.c.b16 %v2575, %v2573
    %v3830 = vpack.c.b16 %v2578, %v2576
    %v3831 = vpack.c.b16 %v2579, %v2577
    %v3832 = vpack.c.b16 %v2582, %v2580
    %v3833 = vpack.c.b16 %v2583, %v2581
    %v3834 = vpack.c.b16 %v2586, %v2584
    %v3835 = vpack.c.b16 %v2587, %v2585
    %v3836 = vpack.c.b16 %v2590, %v2588
    %v3837 = vpack.c.b16 %v2591, %v2589
    %v3838 = vpack.c.b16 %v2594, %v2592
    %v3839 = vpack.c.b16 %v2595, %v2593
    %v3840 = vpack.c.b16 %v2598, %v2596
    %v3841 = vpack.c.b16 %v2599, %v2597
    %v3842 = vpack.c.b16 %v2602, %v2600
    %v3843 = vpack.c.b16 %v2603, %v2601
    %v3844 = vpack.c.b16 %v2606, %v2604
    %v3845 = vpack.c.b16 %v2607, %v2605
    %v3846 = vpack.c.b16 %v2610, %v2608
    %v3847 = vpack.c.b16 %v2611, %v2609
    %v3848 = vpack.c.b16 %v2614, %v2612
    %v3849 = vpack.c.b16 %v2615, %v2613
    %v3850 = vpack.c.b16 %v2618, %v2616
    %v3851 = vpack.c.b16 %v2619, %v2617
    %v3852 = vpack.c.b16 %v2622, %v2620
    %v3853 = vpack.c.b16 %v2623, %v2621
    %v3854 = vpack.c.b16 %v2626, %v2624
    %v3855 = vpack.c.b16 %v2627, %v2625
    %v3856 = vpack.c.b16 %v2630, %v2628
    %v3857 = vpack.c.b16 %v2631, %v2629
    %v3858 = vpack.c.b16 %v2634, %v2632
    %v3859 = vpack.c.b16 %v2635, %v2633
    %v3860 = vpack.c.b16 %v2638, %v2636
    %v3861 = vpack.c.b16 %v2639, %v2637
    %v3862 = vpack.c.b16 %v2642, %v2640
    %v3863 = vpack.c.b16 %v2643, %v2641
    %v3864 = vpack.c.b16 %v2646, %v2644
    %v3865 = vpack.c.b16 %v2647, %v2645
    %v3866 = vpack.c.b16 %v2650, %v2648
    %v3867 = vpack.c.b16 %v2651, %v2649
    %v3868 = vpack.c.b16 %v2654, %v2652
    %v3869 = vpack.c.b16 %v2655, %v2653
    %v3870 = vpack.c.b16 %v2658, %v2656
    %v3871 = vpack.c.b16 %v2659, %v2657
    %v3872 = vpack.c.b16 %v2662, %v2660
    %v3873 = vpack.c.b16 %v2663, %v2661
    %v3874 = vpack.c.b16 %v2666, %v2664
    %v3875 = vpack.c.b16 %v2667, %v2665
    %v3876 = vpack.c.b16 %v2670, %v2668
    %v3877 = vpack.c.b16 %v2671, %v2669
    %v3878 = vpack.c.b16 %v2674, %v2672
    %v3879 = vpack.c.b16 %v2675, %v2673
    %v3880 = vpack.c.b16 %v2678, %v2676
    %v3881 = vpack.c.b16 %v2679, %v2677
    %v3882 = vpack.c.b16 %v2682, %v2680
    %v3883 = vpack.c.b16 %v2683, %v2681
    %v3884 = vpack.c.b16 %v2686, %v2684
    %v3885 = vpack.c.b16 %v2687, %v2685
    %v3886 = vpack.c.b16 %v2690, %v2688
    %v3887 = vpack.c.b16 %v2691, %v2689
    %v3888 = vpack.c.b16 %v2694, %v2692
    %v3889 = vpack.c.b16 %v2695, %v2693
    %v3890 = vpack.c.b16 %v2698, %v2696
    %v3891 = vpack.c.b16 %v2699, %v2697
    %v3892 = vpack.c.b16 %v2702, %v2700
    %v3893 = vpack.c.b16 %v2703, %v2701
    %v3894 = vpack.c.b16 %v2706, %v2704
    %v3895 = vpack.c.b16 %v2707, %v2705
    %v3896 = vpack.c.b16 %v2710, %v2708
    %v3897 = vpack.c.b16 %v2711, %v2709
    %v3898 = vpack.c.b16 %v2714, %v2712
    %v3899 = vpack.c.b16 %v2715, %v2713
    %v3900 = vpack.c.b16 %v2718, %v2716
    %v3901 = vpack.c.b16 %v2719, %v2717
    %v3902 = vpack.c.b16 %v2722, %v2720
    %v3903 = vpack.c.b16 %v2723, %v2721
    %v3904 = vpack.c.b16 %v2726, %v2724
    %v3905 = vpack.c.b16 %v2727, %v2725
    %v3906 = vpack.c.b16 %v2730, %v2728
    %v3907 = vpack.c.b16 %v2731, %v2729
    %v3908 = vpack.c.b16 %v2734, %v2732
    %v3909 = vpack.c.b16 %v2735, %v2733
    %v3910 = vpack.c.b16 %v2738, %v2736
    %v3911 = vpack.c.b16 %v2739, %v2737
    %v3912 = vpack.c.b16 %v2742, %v2740
    %v3913 = vpack.c.b16 %v2743, %v2741
    %v3914 = vpack.c.b16 %v2746, %v2744
    %v3915 = vpack.c.b16 %v2747, %v2745
    %v3916 = vpack.c.b16 %v2750, %v2748
    %v3917 = vpack.c.b16 %v2751, %v2749
    %v3918 = vpack.c.b16 %v2754, %v2752
    %v3919 = vpack.c.b16 %v2755, %v2753
    %v3920 = vpack.c.b16 %v2758, %v2756
    %v3921 = vpack.c.b16 %v2759, %v2757
    %v3922 = vpack.c.b16 %v2762, %v2760
    %v3923 = vpack.c.b16 %v2763, %v2761
    %v3924 = vpack.c.b16 %v2766, %v2764
    %v3925 = vpack.c.b16 %v2767, %v2765
    %v3926 = vpack.c.b16 %v2770, %v2768
    %v3927 = vpack.c.b16 %v2771, %v2769
    %v3928 = vpack.c.b16 %v2774, %v2772
    %v3929 = vpack.c.b16 %v2775, %v2773
    %v3930 = vpack.c.b16 %v2778, %v2776
    %v3931 = vpack.c.b16 %v2779, %v2777
    %v3932 = vpack.c.b16 %v2782, %v2780
    %v3933 = vpack.c.b16 %v2783, %v2781
    %v3934 = vpack.c.b16 %v2786, %v2784
    %v3935 = vpack.c.b16 %v2787, %v2785
    %v3936 = vpack.c.b16 %v2790, %v2788
    %v3937 = vpack.c.b16 %v2791, %v2789
    %v3938 = vpack.c.b16 %v2794, %v2792
    %v3939 = vpack.c.b16 %v2795, %v2793
    %v3940 = vpack.c.b16 %v2798, %v2796
    %v3941 = vpack.c.b16 %v2799, %v2797
    %v3942 = vpack.c.b16 %v2802, %v2800
    %v3943 = vpack.c.b16 %v2803, %v2801
    %v3944 = vpack.c.b16 %v2806, %v2804
    %v3945 = vpack.c.b16 %v2807, %v2805
    %v3946 = vpack.c.b16 %v2810, %v2808
    %v3947 = vpack.c.b16 %v2811, %v2809
    %v3948 = vpack.c.b16 %v2814, %v2812
    %v3949 = vpack.c.b16 %v2815, %v2813
    %v3950 = vpack.c.b16 %v2818, %v2816
    %v3951 = vpack.c.b16 %v2819, %v2817
    %v3952 = vpack.c.b16 %v2822, %v2820
    %v3953 = vpack.c.b16 %v2823, %v2821
    %v3954 = vpack.c.b16 %v2826, %v2824
    %v3955 = vpack.c.b16 %v2827, %v2825
    %v3956 = vpack.c.b16 %v2830, %v2828
    %v3957 = vpack.c.b16 %v2831, %v2829
    %v3958 = vpack.c.b16 %v2834, %v2832
    %v3959 = vpack.c.b16 %v2835, %v2833
    %v3960 = vpack.c.b16 %v2838, %v2836
    %v3961 = vpack.c.b16 %v2839, %v2837
    %v3962 = vpack.c.b16 %v2842, %v2840
    %v3963 = vpack.c.b16 %v2843, %v2841
    %v3964 = vpack.c.b16 %v2846, %v2844
    %v3965 = vpack.c.b16 %v2847, %v2845
    %v3966 = vpack.c.b16 %v2850, %v2848
    %v3967 = vpack.c.b16 %v2851, %v2849
    %v3968 = vpack.c.b16 %v2854, %v2852
    %v3969 = vpack.c.b16 %v2855, %v2853
    %v3970 = vpack.c.b16 %v2858, %v2856
    %v3971 = vpack.c.b16 %v2859, %v2857
    %v3972 = vpack.c.b16 %v2862, %v2860
    %v3973 = vpack.c.b16 %v2863, %v2861
    %v3974 = vpack.c.b16 %v2866, %v2864
    %v3975 = vpack.c.b16 %v2867, %v2865
    %v3976 = vpack.c.b16 %v2870, %v2868
    %v3977 = vpack.c.b16 %v2871, %v2869
    %v3978 = vpack.c.b16 %v2874, %v2872
    %v3979 = vpack.c.b16 %v2875, %v2873
    %v3980 = vpack.c.b16 %v2878, %v2876
    %v3981 = vpack.c.b16 %v2879, %v2877
    %v3982 = vpack.c.b16 %v2882, %v2880
    %v3983 = vpack.c.b16 %v2883, %v2881
    %v3984 = vpack.c.b16 %v2886, %v2884
    %v3985 = vpack.c.b16 %v2887, %v2885
    %v3986 = vpack.c.b16 %v2890, %v2888
    %v3987 = vpack.c.b16 %v2891, %v2889
    %v3988 = vpack.c.b16 %v2894, %v2892
    %v3989 = vpack.c.b16 %v2895, %v2893
    %v3990 = vpack.c.b16 %v2898, %v2896
    %v3991 = vpack.c.b16 %v2899, %v2897
    %v3992 = vpack.c.b16 %v2902, %v2900
    %v3993 = vpack.c.b16 %v2903, %v2901
    %v3994 = vpack.c.b16 %v2906, %v2904
    %v3995 = vpack.c.b16 %v2907, %v2905
    %v3996 = vpack.c.b16 %v2910, %v2908
    %v3997 = vpack.c.b16 %v2911, %v2909
    %v3998 = vpack.c.b16 %v2914, %v2912
    %v3999 = vpack.c.b16 %v2915, %v2913
    %v4000 = vpack.c.b16 %v2918, %v2916
    %v4001 = vpack.c.b16 %v2919, %v2917
    %v4002 = vpack.c.b16 %v2922, %v2920
    %v4003 = vpack.c.b16 %v2923, %v2921
    %v4004 = vpack.c.b16 %v2926, %v2924
    %v4005 = vpack.c.b16 %v2927, %v2925
    %v4006 = vpack.c.b16 %v2930, %v2928
    %v4007 = vpack.c.b16 %v2931, %v2929
    %v4008 = vpack.c.b16 %v2934, %v2932
    %v4009 = vpack.c.b16 %v2935, %v2933
    %v4010 = vpack.c.b16 %v2938, %v2936
    %v4011 = vpack.c.b16 %v2939, %v2937
    %v4012 = vpack.c.b16 %v2942, %v2940
    %v4013 = vpack.c.b16 %v2943, %v2941
    %v4014 = vpack.c.b16 %v2946, %v2944
    %v4015 = vpack.c.b16 %v2947, %v2945
    %v4016 = vpack.c.b16 %v2950, %v2948
    %v4017 = vpack.c.b16 %v2951, %v2949
    %v4018 = vpack.c.b16 %v2954, %v2952
    %v4019 = vpack.c.b16 %v2955, %v2953
    %v4020 = vpack.c.b16 %v2958, %v2956
    %v4021 = vpack.c.b16 %v2959, %v2957
    %v4022 = vpack.c.b16 %v2962, %v2960
    %v4023 = vpack.c.b16 %v2963, %v2961
    %v4024 = vpack.c.b16 %v2966, %v2964
    %v4025 = vpack.c.b16 %v2967, %v2965
    %v4026 = vpack.c.b16 %v2970, %v2968
    %v4027 = vpack.c.b16 %v2971, %v2969
    %v4028 = vpack.c.b16 %v2974, %v2972
    %v4029 = vpack.c.b16 %v2975, %v2973
    %v4030 = vpack.c.b16 %v2978, %v2976
    %v4031 = vpack.c.b16 %v2979, %v2977
    %v4032 = vpack.c.b16 %v2982, %v2980
    %v4033 = vpack.c.b16 %v2983, %v2981
    %v4034 = vpack.c.b16 %v2986, %v2984
    %v4035 = vpack.c.b16 %v2987, %v2985
    %v4036 = vpack.c.b16 %v2990, %v2988
    %v4037 = vpack.c.b16 %v2991, %v2989
    %v4038 = vpack.c.b16 %v2994, %v2992
    %v4039 = vpack.c.b16 %v2995, %v2993
    %v4040 = vpack.c.b16 %v2998, %v2996
    %v4041 = vpack.c.b16 %v2999, %v2997
    %v4042 = vpack.c.b16 %v3002, %v3000
    %v4043 = vpack.c.b16 %v3003, %v3001
    %v4044 = vpack.c.b16 %v3006, %v3004
    %v4045 = vpack.c.b16 %v3007, %v3005
    %v4046 = vpack.c.b16 %v3010, %v3008
    %v4047 = vpack.c.b16 %v3011, %v3009
    %v4048 = vpack.c.b16 %v3014, %v3012
    %v4049 = vpack.c.b16 %v3015, %v3013
    %v4050 = vpack.c.b16 %v3018, %v3016
    %v4051 = vpack.c.b16 %v3019, %v3017
    %v4052 = vpack.c.b16 %v3022, %v3020
    %v4053 = vpack.c.b16 %v3023, %v3021
    %v4054 = vpack.c.b16 %v3026, %v3024
    %v4055 = vpack.c.b16 %v3027, %v3025
    %v4056 = vpack.c.b16 %v3030, %v3028
    %v4057 = vpack.c.b16 %v3031, %v3029
    %v4058 = vpack.c.b16 %v3034, %v3032
    %v4059 = vpack.c.b16 %v3035, %v3033
    %v4060 = vpack.c.b16 %v3038, %v3036
    %v4061 = vpack.c.b16 %v3039, %v3037
    %v4062 = vpack.c.b16 %v3042, %v3040
    %v4063 = vpack.c.b16 %v3043, %v3041
    %v4064 = vpack.c.b16 %v3046, %v3044
    %v4065 = vpack.c.b16 %v3047, %v3045
    %v4066 = vpack.c.b16 %v3050, %v3048
    %v4067 = vpack.c.b16 %v3051, %v3049
    %v4068 = vpack.c.b16 %v3054, %v3052
    %v4069 = vpack.c.b16 %v3055, %v3053
    %v4070 = vpack.c.b16 %v3058, %v3056
    %v4071 = vpack.c.b16 %v3059, %v3057
    %v4072 = vpack.c.b16 %v3062, %v3060
    %v4073 = vpack.c.b16 %v3063, %v3061
    %v4074 = vpack.c.b16 %v3066, %v3064
    %v4075 = vpack.c.b16 %v3067, %v3065
    %v4076 = vpack.c.b16 %v3070, %v3068
    %v4077 = vpack.c.b16 %v3071, %v3069
    %v4078 = vpack.c.b16 %v3074, %v3072
    %v4079 = vpack.c.b16 %v3075, %v3073
    %v4080 = vpack.c.b16 %v3078, %v3076
    %v4081 = vpack.c.b16 %v3079, %v3077
    %v4082 = vpack.c.b16 %v3082, %v3080
    %v4083 = vpack.c.b16 %v3083, %v3081
    %v4084 = vpack.c.b16 %v3086, %v3084
    %v4085 = vpack.c.b16 %v3087, %v3085
    %v4086 = vpack.c.b16 %v3090, %v3088
    %v4087 = vpack.c.b16 %v3091, %v3089
    %v4088 = vpack.c.b16 %v3094, %v3092
    %v4089 = vpack.c.b16 %v3095, %v3093
    %v4090 = vpack.c.b16 %v3098, %v3096
    %v4091 = vpack.c.b16 %v3099, %v3097
    %v4092 = vpack.c.b16 %v3102, %v3100
    %v4093 = vpack.c.b16 %v3103, %v3101
    %v4094 = vpack.c.b16 %v3106, %v3104
    %v4095 = vpack.c.b16 %v3107, %v3105
    %v4096 = vpack.c.b16 %v3110, %v3108
    %v4097 = vpack.c.b16 %v3111, %v3109
    %v4098 = vpack.c.b16 %v3114, %v3112
    %v4099 = vpack.c.b16 %v3115, %v3113
    %v4100 = vpack.c.b16 %v3118, %v3116
    %v4101 = vpack.c.b16 %v3119, %v3117
    %v4102 = vpack.c.b16 %v3122, %v3120
    %v4103 = vpack.c.b16 %v3123, %v3121
    %v4104 = vpack.c.b16 %v3126, %v3124
    %v4105 = vpack.c.b16 %v3127, %v3125
    %v4106 = vpack.c.b16 %v3130, %v3128
    %v4107 = vpack.c.b16 %v3131, %v3129
    %v4108 = vpack.c.b16 %v3134, %v3132
    %v4109 = vpack.c.b16 %v3135, %v3133
    %v4110 = vpack.c.b16 %v3138, %v3136
    %v4111 = vpack.c.b16 %v3139, %v3137
    %v4112 = vpack.c.b16 %v3142, %v3140
    %v4113 = vpack.c.b16 %v3143, %v3141
    %v4114 = vpack.c.b16 %v3146, %v3144
    %v4115 = vpack.c.b16 %v3147, %v3145
    %v4116 = vpack.c.b16 %v3150, %v3148
    %v4117 = vpack.c.b16 %v3151, %v3149
    %v4118 = vpack.c.b16 %v3154, %v3152
    %v4119 = vpack.c.b16 %v3155, %v3153
    %v4120 = vpack.c.b16 %v3158, %v3156
    %v4121 = vpack.c.b16 %v3159, %v3157
    %v4122 = vpack.c.b16 %v3162, %v3160
    %v4123 = vpack.c.b16 %v3163, %v3161
    %v4124 = vpack.c.b16 %v3166, %v3164
    %v4125 = vpack.c.b16 %v3167, %v3165
    %v4126 = vpack.c.b16 %v3170, %v3168
    %v4127 = vpack.c.b16 %v3171, %v3169
    %v4128 = vpack.c.b16 %v3174, %v3172
    %v4129 = vpack.c.b16 %v3175, %v3173
    %v4130 = vpack.c.b16 %v3178, %v3176
    %v4131 = vpack.c.b16 %v3179, %v3177
    %v4132 = vpack.c.b16 %v3182, %v3180
    %v4133 = vpack.c.b16 %v3183, %v3181
    %v4134 = vpack.c.b16 %v3186, %v3184
    %v4135 = vpack.c.b16 %v3187, %v3185
    %v4136 = vpack.c.b16 %v3190, %v3188
    %v4137 = vpack.c.b16 %v3191, %v3189
    %v4138 = vpack.c.b16 %v3194, %v3192
    %v4139 = vpack.c.b16 %v3195, %v3193
    %v4140 = vpack.c.b16 %v3198, %v3196
    %v4141 = vpack.c.b16 %v3199, %v3197
    %v4142 = vpack.c.b16 %v3202, %v3200
    %v4143 = vpack.c.b16 %v3203, %v3201
    %v4144 = vpack.c.b16 %v3206, %v3204
    %v4145 = vpack.c.b16 %v3207, %v3205
    %v4146 = vpack.c.b16 %v3210, %v3208
    %v4147 = vpack.c.b16 %v3211, %v3209
    %v4148 = vpack.c.b16 %v3214, %v3212
    %v4149 = vpack.c.b16 %v3215, %v3213
    %v4150 = vpack.c.b16 %v3218, %v3216
    %v4151 = vpack.c.b16 %v3219, %v3217
    %v4152 = vpack.c.b16 %v3222, %v3220
    %v4153 = vpack.c.b16 %v3223, %v3221
    %v4154 = vpack.c.b16 %v3226, %v3224
    %v4155 = vpack.c.b16 %v3227, %v3225
    %v4156 = vpack.c.b16 %v3230, %v3228
    %v4157 = vpack.c.b16 %v3231, %v3229
    %v4158 = vpack.c.b16 %v3234, %v3232
    %v4159 = vpack.c.b16 %v3235, %v3233
    %v4160 = vpack.c.b16 %v3238, %v3236
    %v4161 = vpack.c.b16 %v3239, %v3237
    %v4162 = vpack.c.b16 %v3242, %v3240
    %v4163 = vpack.c.b16 %v3243, %v3241
    %v4164 = vpack.c.b16 %v3246, %v3244
    %v4165 = vpack.c.b16 %v3247, %v3245
    %v4166 = vpack.c.b16 %v3250, %v3248
    %v4167 = vpack.c.b16 %v3251, %v3249
    %v4168 = vpack.c.b16 %v3254, %v3252
    %v4169 = vpack.c.b16 %v3255, %v3253
    %v4170 = vpack.c.b16 %v3258, %v3256
    %v4171 = vpack.c.b16 %v3259, %v3257
    %v4172 = vpack.c.b16 %v3262, %v3260
    %v4173 = vpack.c.b16 %v3263, %v3261
    %v4174 = vpack.c.b16 %v3266, %v3264
    %v4175 = vpack.c.b16 %v3267, %v3265
    %v4176 = vpack.c.b16 %v3270, %v3268
    %v4177 = vpack.c.b16 %v3271, %v3269
    %v4178 = vpack.c.b16 %v3274, %v3272
    %v4179 = vpack.c.b16 %v3275, %v3273
    %v4180 = vpack.c.b16 %v3278, %v3276
    %v4181 = vpack.c.b16 %v3279, %v3277
    %v4182 = vpack.c.b16 %v3282, %v3280
    %v4183 = vpack.c.b16 %v3283, %v3281
    %v4184 = vpack.c.b16 %v3286, %v3284
    %v4185 = vpack.c.b16 %v3287, %v3285
    %v4186 = vpack.c.b16 %v3290, %v3288
    %v4187 = vpack.c.b16 %v3291, %v3289
    %v4188 = vpack.c.b16 %v3294, %v3292
    %v4189 = vpack.c.b16 %v3295, %v3293
    %v4190 = vpack.c.b16 %v3298, %v3296
    %v4191 = vpack.c.b16 %v3299, %v3297
    %v4192 = vpack.c.b16 %v3302, %v3300
    %v4193 = vpack.c.b16 %v3303, %v3301
    %v4194 = vpack.c.b16 %v3306, %v3304
    %v4195 = vpack.c.b16 %v3307, %v3305
    %v4196 = vpack.c.b16 %v3310, %v3308
    %v4197 = vpack.c.b16 %v3311, %v3309
    %v4198 = vpack.c.b16 %v3314, %v3312
    %v4199 = vpack.c.b16 %v3315, %v3313
    %v4200 = vpack.c.b16 %v3318, %v3316
    %v4201 = vpack.c.b16 %v3319, %v3317
    %v4202 = vpack.c.b16 %v3322, %v3320
    %v4203 = vpack.c.b16 %v3323, %v3321
    %v4204 = vpack.c.b16 %v3326, %v3324
    %v4205 = vpack.c.b16 %v3327, %v3325
    %v4206 = vpack.c.b16 %v3330, %v3328
    %v4207 = vpack.c.b16 %v3331, %v3329
    %v4208 = vpack.c.b16 %v3334, %v3332
    %v4209 = vpack.c.b16 %v3335, %v3333
    %v4210 = vpack.c.b16 %v3338, %v3336
    %v4211 = vpack.c.b16 %v3339, %v3337
    %v4212 = vpack.c.b16 %v3342, %v3340
    %v4213 = vpack.c.b16 %v3343, %v3341
    %v4214 = vpack.c.b16 %v3346, %v3344
    %v4215 = vpack.c.b16 %v3347, %v3345
    %v4216 = vpack.c.b16 %v3350, %v3348
    %v4217 = vpack.c.b16 %v3351, %v3349
    %v4218 = vpack.c.b16 %v3354, %v3352
    %v4219 = vpack.c.b16 %v3355, %v3353
    %v4220 = vpack.c.b16 %v3358, %v3356
    %v4221 = vpack.c.b16 %v3359, %v3357
    %v4222 = vpack.c.b16 %v3362, %v3360
    %v4223 = vpack.c.b16 %v3363, %v3361
    %v4224 = vpack.c.b16 %v3366, %v3364
    %v4225 = vpack.c.b16 %v3367, %v3365
    %v4226 = vpack.c.b16 %v3370, %v3368
    %v4227 = vpack.c.b16 %v3371, %v3369
    %v4228 = vpack.c.b16 %v3374, %v3372
    %v4229 = vpack.c.b16 %v3375, %v3373
    %v4230 = vpack.c.b16 %v3378, %v3376
    %v4231 = vpack.c.b16 %v3379, %v3377
    %v4232 = vpack.c.b16 %v3382, %v3380
    %v4233 = vpack.c.b16 %v3383, %v3381
    %v4234 = vpack.c.b16 %v3386, %v3384
    %v4235 = vpack.c.b16 %v3387, %v3385
    %v4236 = vpack.c.b16 %v3390, %v3388
    %v4237 = vpack.c.b16 %v3391, %v3389
    %v4238 = vpack.c.b16 %v3394, %v3392
    %v4239 = vpack.c.b16 %v3395, %v3393
    %v4240 = vpack.c.b16 %v3398, %v3396
    %v4241 = vpack.c.b16 %v3399, %v3397
    %v4242 = vpack.c.b16 %v3402, %v3400
    %v4243 = vpack.c.b16 %v3403, %v3401
    %v4244 = vpack.c.b16 %v3406, %v3404
    %v4245 = vpack.c.b16 %v3407, %v3405
    %v4246 = vpack.c.b16 %v3410, %v3408
    %v4247 = vpack.c.b16 %v3411, %v3409
    %v4248 = vpack.c.b16 %v3414, %v3412
    %v4249 = vpack.c.b16 %v3415, %v3413
    %v4250 = vpack.c.b16 %v3418, %v3416
    %v4251 = vpack.c.b16 %v3419, %v3417
    %v4252 = vpack.c.b16 %v3422, %v3420
    %v4253 = vpack.c.b16 %v3423, %v3421
    %v4254 = vpack.c.b16 %v3426, %v3424
    %v4255 = vpack.c.b16 %v3427, %v3425
    %v4256 = vpack.c.b16 %v3430, %v3428
    %v4257 = vpack.c.b16 %v3431, %v3429
    %v4258 = vpack.c.b16 %v3434, %v3432
    %v4259 = vpack.c.b16 %v3435, %v3433
    %v4260 = vpack.c.b16 %v3438, %v3436
    %v4261 = vpack.c.b16 %v3439, %v3437
    %v4262 = vpack.c.b16 %v3442, %v3440
    %v4263 = vpack.c.b16 %v3443, %v3441
    %v4264 = vpack.c.b16 %v3446, %v3444
    %v4265 = vpack.c.b16 %v3447, %v3445
    %v4266 = vpack.c.b16 %v3450, %v3448
    %v4267 = vpack.c.b16 %v3451, %v3449
    %v4268 = vpack.c.b16 %v3454, %v3452
    %v4269 = vpack.c.b16 %v3455, %v3453
    %v4270 = vpack.c.b16 %v3458, %v3456
    %v4271 = vpack.c.b16 %v3459, %v3457
    %v4272 = vpack.c.b16 %v3462, %v3460
    %v4273 = vpack.c.b16 %v3463, %v3461
    %v4274 = vpack.c.b16 %v3466, %v3464
    %v4275 = vpack.c.b16 %v3467, %v3465
    %v4276 = vpack.c.b16 %v3470, %v3468
    %v4277 = vpack.c.b16 %v3471, %v3469
    %v4278 = vpack.c.b16 %v3474, %v3472
    %v4279 = vpack.c.b16 %v3475, %v3473
    %v4280 = vpack.c.b16 %v3478, %v3476
    %v4281 = vpack.c.b16 %v3479, %v3477
    %v4282 = vpack.c.b16 %v3482, %v3480
    %v4283 = vpack.c.b16 %v3483, %v3481
    %5084 = vmatpush.bf16.msra.mxu0 %v3498
    %5085 = vmatpush.bf16.msra.mxu0 %v3496
    %5086 = vmatpush.bf16.msra.mxu0 %v3494
    %5087 = vmatpush.bf16.msra.mxu0 %v3492
    %5088 = vmatpush.bf16.msra.mxu0 %v3490
    %5089 = vmatpush.bf16.msra.mxu0 %v3488
    %5090 = vmatpush.bf16.msra.mxu0 %v3486
    %5091 = vmatpush.bf16.msra.mxu0 %v3484
    %5092 = vmatmul.bf16.gmra.mxu0 %v984
    %v5093 = vpop.f32.mrf.mxu0
    %v5094 = vadd.f32 %v905, %v5093
    %v5095 = vpop.f32.mrf.mxu0
    %5096 = vdwg.mxu0
    %5097 = vmatpush.bf16.msra.mxu0 %v3514
    %5098 = vmatpush.bf16.msra.mxu0 %v3512
    %5099 = vmatpush.bf16.msra.mxu0 %v3510
    %5100 = vmatpush.bf16.msra.mxu0 %v3508
    %5101 = vmatpush.bf16.msra.mxu0 %v3506
    %5102 = vmatpush.bf16.msra.mxu0 %v3504
    %5103 = vmatpush.bf16.msra.mxu0 %v3502
    %5104 = vmatpush.bf16.msra.mxu0 %v3500
    %5105 = vmatmul.bf16.gmra.mxu0 %v985
    %v5106 = vpop.f32.mrf.mxu0
    %v5107 = vadd.f32 %v5094, %v5106
    %v5108 = vpop.f32.mrf.mxu0
    %5109 = vdwg.mxu0
    %5110 = vmatpush.bf16.msra.mxu0 %v3530
    %5111 = vmatpush.bf16.msra.mxu0 %v3528
    %5112 = vmatpush.bf16.msra.mxu0 %v3526
    %5113 = vmatpush.bf16.msra.mxu0 %v3524
    %5114 = vmatpush.bf16.msra.mxu0 %v3522
    %5115 = vmatpush.bf16.msra.mxu0 %v3520
    %5116 = vmatpush.bf16.msra.mxu0 %v3518
    %5117 = vmatpush.bf16.msra.mxu0 %v3516
    %5118 = vmatmul.bf16.gmra.mxu0 %v986
    %v5119 = vpop.f32.mrf.mxu0
    %v5120 = vadd.f32 %v5107, %v5119
    %v5121 = vpop.f32.mrf.mxu0
    %5122 = vdwg.mxu0
    %5123 = vmatpush.bf16.msra.mxu0 %v3546
    %5124 = vmatpush.bf16.msra.mxu0 %v3544
    %5125 = vmatpush.bf16.msra.mxu0 %v3542
    %5126 = vmatpush.bf16.msra.mxu0 %v3540
    %5127 = vmatpush.bf16.msra.mxu0 %v3538
    %5128 = vmatpush.bf16.msra.mxu0 %v3536
    %5129 = vmatpush.bf16.msra.mxu0 %v3534
    %5130 = vmatpush.bf16.msra.mxu0 %v3532
    %5131 = vmatmul.bf16.gmra.mxu0 %v987
    %v5132 = vpop.f32.mrf.mxu0
    %v5133 = vadd.f32 %v5120, %v5132
    %v5134 = vpop.f32.mrf.mxu0
    %5135 = vdwg.mxu0
    %5136 = vmatpush.bf16.msra.mxu0 %v3562
    %5137 = vmatpush.bf16.msra.mxu0 %v3560
    %5138 = vmatpush.bf16.msra.mxu0 %v3558
    %5139 = vmatpush.bf16.msra.mxu0 %v3556
    %5140 = vmatpush.bf16.msra.mxu0 %v3554
    %5141 = vmatpush.bf16.msra.mxu0 %v3552
    %5142 = vmatpush.bf16.msra.mxu0 %v3550
    %5143 = vmatpush.bf16.msra.mxu0 %v3548
    %5144 = vmatmul.bf16.gmra.mxu0 %v988
    %v5145 = vpop.f32.mrf.mxu0
    %v5146 = vadd.f32 %v5133, %v5145
    %v5147 = vpop.f32.mrf.mxu0
    %5148 = vdwg.mxu0
    %5149 = vmatpush.bf16.msra.mxu0 %v3578
    %5150 = vmatpush.bf16.msra.mxu0 %v3576
    %5151 = vmatpush.bf16.msra.mxu0 %v3574
    %5152 = vmatpush.bf16.msra.mxu0 %v3572
    %5153 = vmatpush.bf16.msra.mxu0 %v3570
    %5154 = vmatpush.bf16.msra.mxu0 %v3568
    %5155 = vmatpush.bf16.msra.mxu0 %v3566
    %5156 = vmatpush.bf16.msra.mxu0 %v3564
    %5157 = vmatmul.bf16.gmra.mxu0 %v989
    %v5158 = vpop.f32.mrf.mxu0
    %v5159 = vadd.f32 %v5146, %v5158
    %v5160 = vpop.f32.mrf.mxu0
    %5161 = vdwg.mxu0
    %5162 = vmatpush.bf16.msra.mxu0 %v3594
    %5163 = vmatpush.bf16.msra.mxu0 %v3592
    %5164 = vmatpush.bf16.msra.mxu0 %v3590
    %5165 = vmatpush.bf16.msra.mxu0 %v3588
    %5166 = vmatpush.bf16.msra.mxu0 %v3586
    %5167 = vmatpush.bf16.msra.mxu0 %v3584
    %5168 = vmatpush.bf16.msra.mxu0 %v3582
    %5169 = vmatpush.bf16.msra.mxu0 %v3580
    %5170 = vmatmul.bf16.gmra.mxu0 %v990
    %v5171 = vpop.f32.mrf.mxu0
    %v5172 = vadd.f32 %v5159, %v5171
    %v5173 = vpop.f32.mrf.mxu0
    %5174 = vdwg.mxu0
    %5175 = vmatpush.bf16.msra.mxu0 %v3610
    %5176 = vmatpush.bf16.msra.mxu0 %v3608
    %5177 = vmatpush.bf16.msra.mxu0 %v3606
    %5178 = vmatpush.bf16.msra.mxu0 %v3604
    %5179 = vmatpush.bf16.msra.mxu0 %v3602
    %5180 = vmatpush.bf16.msra.mxu0 %v3600
    %5181 = vmatpush.bf16.msra.mxu0 %v3598
    %5182 = vmatpush.bf16.msra.mxu0 %v3596
    %5183 = vmatmul.bf16.gmra.mxu0 %v991
    %v5184 = vpop.f32.mrf.mxu0
    %v5185 = vadd.f32 %v5172, %v5184
    %v5186 = vpop.f32.mrf.mxu0
    %5187 = vdwg.mxu0
    %5188 = vmatpush.bf16.msra.mxu0 %v3626
    %5189 = vmatpush.bf16.msra.mxu0 %v3624
    %5190 = vmatpush.bf16.msra.mxu0 %v3622
    %5191 = vmatpush.bf16.msra.mxu0 %v3620
    %5192 = vmatpush.bf16.msra.mxu0 %v3618
    %5193 = vmatpush.bf16.msra.mxu0 %v3616
    %5194 = vmatpush.bf16.msra.mxu0 %v3614
    %5195 = vmatpush.bf16.msra.mxu0 %v3612
    %5196 = vmatmul.bf16.gmra.mxu0 %v992
    %v5197 = vpop.f32.mrf.mxu0
    %v5198 = vadd.f32 %v5185, %v5197
    %v5199 = vpop.f32.mrf.mxu0
    %5200 = vdwg.mxu0
    %5201 = vmatpush.bf16.msra.mxu0 %v3642
    %5202 = vmatpush.bf16.msra.mxu0 %v3640
    %5203 = vmatpush.bf16.msra.mxu0 %v3638
    %5204 = vmatpush.bf16.msra.mxu0 %v3636
    %5205 = vmatpush.bf16.msra.mxu0 %v3634
    %5206 = vmatpush.bf16.msra.mxu0 %v3632
    %5207 = vmatpush.bf16.msra.mxu0 %v3630
    %5208 = vmatpush.bf16.msra.mxu0 %v3628
    %5209 = vmatmul.bf16.gmra.mxu0 %v993
    %v5210 = vpop.f32.mrf.mxu0
    %v5211 = vadd.f32 %v5198, %v5210
    %v5212 = vpop.f32.mrf.mxu0
    %5213 = vdwg.mxu0
    %5214 = vmatpush.bf16.msra.mxu0 %v3658
    %5215 = vmatpush.bf16.msra.mxu0 %v3656
    %5216 = vmatpush.bf16.msra.mxu0 %v3654
    %5217 = vmatpush.bf16.msra.mxu0 %v3652
    %5218 = vmatpush.bf16.msra.mxu0 %v3650
    %5219 = vmatpush.bf16.msra.mxu0 %v3648
    %5220 = vmatpush.bf16.msra.mxu0 %v3646
    %5221 = vmatpush.bf16.msra.mxu0 %v3644
    %5222 = vmatmul.bf16.gmra.mxu0 %v994
    %v5223 = vpop.f32.mrf.mxu0
    %v5224 = vadd.f32 %v5211, %v5223
    %v5225 = vpop.f32.mrf.mxu0
    %5226 = vdwg.mxu0
    %5227 = vmatpush.bf16.msra.mxu0 %v3674
    %5228 = vmatpush.bf16.msra.mxu0 %v3672
    %5229 = vmatpush.bf16.msra.mxu0 %v3670
    %5230 = vmatpush.bf16.msra.mxu0 %v3668
    %5231 = vmatpush.bf16.msra.mxu0 %v3666
    %5232 = vmatpush.bf16.msra.mxu0 %v3664
    %5233 = vmatpush.bf16.msra.mxu0 %v3662
    %5234 = vmatpush.bf16.msra.mxu0 %v3660
    %5235 = vmatmul.bf16.gmra.mxu0 %v995
    %v5236 = vpop.f32.mrf.mxu0
    %v5237 = vadd.f32 %v5224, %v5236
    %v5238 = vpop.f32.mrf.mxu0
    %5239 = vdwg.mxu0
    %5240 = vmatpush.bf16.msra.mxu0 %v3690
    %5241 = vmatpush.bf16.msra.mxu0 %v3688
    %5242 = vmatpush.bf16.msra.mxu0 %v3686
    %5243 = vmatpush.bf16.msra.mxu0 %v3684
    %5244 = vmatpush.bf16.msra.mxu0 %v3682
    %5245 = vmatpush.bf16.msra.mxu0 %v3680
    %5246 = vmatpush.bf16.msra.mxu0 %v3678
    %5247 = vmatpush.bf16.msra.mxu0 %v3676
    %5248 = vmatmul.bf16.gmra.mxu0 %v996
    %v5249 = vpop.f32.mrf.mxu0
    %v5250 = vadd.f32 %v5237, %v5249
    %v5251 = vpop.f32.mrf.mxu0
    %5252 = vdwg.mxu0
    %5253 = vmatpush.bf16.msra.mxu0 %v3706
    %5254 = vmatpush.bf16.msra.mxu0 %v3704
    %5255 = vmatpush.bf16.msra.mxu0 %v3702
    %5256 = vmatpush.bf16.msra.mxu0 %v3700
    %5257 = vmatpush.bf16.msra.mxu0 %v3698
    %5258 = vmatpush.bf16.msra.mxu0 %v3696
    %5259 = vmatpush.bf16.msra.mxu0 %v3694
    %5260 = vmatpush.bf16.msra.mxu0 %v3692
    %5261 = vmatmul.bf16.gmra.mxu0 %v997
    %v5262 = vpop.f32.mrf.mxu0
    %v5263 = vadd.f32 %v5250, %v5262
    %v5264 = vpop.f32.mrf.mxu0
    %5265 = vdwg.mxu0
    %5266 = vmatpush.bf16.msra.mxu0 %v3722
    %5267 = vmatpush.bf16.msra.mxu0 %v3720
    %5268 = vmatpush.bf16.msra.mxu0 %v3718
    %5269 = vmatpush.bf16.msra.mxu0 %v3716
    %5270 = vmatpush.bf16.msra.mxu0 %v3714
    %5271 = vmatpush.bf16.msra.mxu0 %v3712
    %5272 = vmatpush.bf16.msra.mxu0 %v3710
    %5273 = vmatpush.bf16.msra.mxu0 %v3708
    %5274 = vmatmul.bf16.gmra.mxu0 %v998
    %v5275 = vpop.f32.mrf.mxu0
    %v5276 = vadd.f32 %v5263, %v5275
    %v5277 = vpop.f32.mrf.mxu0
    %5278 = vdwg.mxu0
    %5279 = vmatpush.bf16.msra.mxu0 %v3738
    %5280 = vmatpush.bf16.msra.mxu0 %v3736
    %5281 = vmatpush.bf16.msra.mxu0 %v3734
    %5282 = vmatpush.bf16.msra.mxu0 %v3732
    %5283 = vmatpush.bf16.msra.mxu0 %v3730
    %5284 = vmatpush.bf16.msra.mxu0 %v3728
    %5285 = vmatpush.bf16.msra.mxu0 %v3726
    %5286 = vmatpush.bf16.msra.mxu0 %v3724
    %5287 = vmatmul.bf16.gmra.mxu0 %v999
    %v5288 = vpop.f32.mrf.mxu0
    %v5289 = vadd.f32 %v5276, %v5288
    %v5290 = vpop.f32.mrf.mxu0
    %5291 = vdwg.mxu0
    %5292 = vmatpush.bf16.msra.mxu0 %v3754
    %5293 = vmatpush.bf16.msra.mxu0 %v3752
    %5294 = vmatpush.bf16.msra.mxu0 %v3750
    %5295 = vmatpush.bf16.msra.mxu0 %v3748
    %5296 = vmatpush.bf16.msra.mxu0 %v3746
    %5297 = vmatpush.bf16.msra.mxu0 %v3744
    %5298 = vmatpush.bf16.msra.mxu0 %v3742
    %5299 = vmatpush.bf16.msra.mxu0 %v3740
    %5300 = vmatmul.bf16.gmra.mxu0 %v1000
    %v5301 = vpop.f32.mrf.mxu0
    %v5302 = vadd.f32 %v5289, %v5301
    %v5303 = vpop.f32.mrf.mxu0
    %5304 = vdwg.mxu0
    %5305 = vmatpush.bf16.msra.mxu0 %v3770
    %5306 = vmatpush.bf16.msra.mxu0 %v3768
    %5307 = vmatpush.bf16.msra.mxu0 %v3766
    %5308 = vmatpush.bf16.msra.mxu0 %v3764
    %5309 = vmatpush.bf16.msra.mxu0 %v3762
    %5310 = vmatpush.bf16.msra.mxu0 %v3760
    %5311 = vmatpush.bf16.msra.mxu0 %v3758
    %5312 = vmatpush.bf16.msra.mxu0 %v3756
    %5313 = vmatmul.bf16.gmra.mxu0 %v1001
    %v5314 = vpop.f32.mrf.mxu0
    %v5315 = vadd.f32 %v5302, %v5314
    %v5316 = vpop.f32.mrf.mxu0
    %5317 = vdwg.mxu0
    %5318 = vmatpush.bf16.msra.mxu0 %v3786
    %5319 = vmatpush.bf16.msra.mxu0 %v3784
    %5320 = vmatpush.bf16.msra.mxu0 %v3782
    %5321 = vmatpush.bf16.msra.mxu0 %v3780
    %5322 = vmatpush.bf16.msra.mxu0 %v3778
    %5323 = vmatpush.bf16.msra.mxu0 %v3776
    %5324 = vmatpush.bf16.msra.mxu0 %v3774
    %5325 = vmatpush.bf16.msra.mxu0 %v3772
    %5326 = vmatmul.bf16.gmra.mxu0 %v1002
    %v5327 = vpop.f32.mrf.mxu0
    %v5328 = vadd.f32 %v5315, %v5327
    %v5329 = vpop.f32.mrf.mxu0
    %5330 = vdwg.mxu0
    %5331 = vmatpush.bf16.msra.mxu0 %v3802
    %5332 = vmatpush.bf16.msra.mxu0 %v3800
    %5333 = vmatpush.bf16.msra.mxu0 %v3798
    %5334 = vmatpush.bf16.msra.mxu0 %v3796
    %5335 = vmatpush.bf16.msra.mxu0 %v3794
    %5336 = vmatpush.bf16.msra.mxu0 %v3792
    %5337 = vmatpush.bf16.msra.mxu0 %v3790
    %5338 = vmatpush.bf16.msra.mxu0 %v3788
    %5339 = vmatmul.bf16.gmra.mxu0 %v1003
    %v5340 = vpop.f32.mrf.mxu0
    %v5341 = vadd.f32 %v5328, %v5340
    %v5342 = vpop.f32.mrf.mxu0
    %5343 = vdwg.mxu0
    %5344 = vmatpush.bf16.msra.mxu0 %v3818
    %5345 = vmatpush.bf16.msra.mxu0 %v3816
    %5346 = vmatpush.bf16.msra.mxu0 %v3814
    %5347 = vmatpush.bf16.msra.mxu0 %v3812
    %5348 = vmatpush.bf16.msra.mxu0 %v3810
    %5349 = vmatpush.bf16.msra.mxu0 %v3808
    %5350 = vmatpush.bf16.msra.mxu0 %v3806
    %5351 = vmatpush.bf16.msra.mxu0 %v3804
    %5352 = vmatmul.bf16.gmra.mxu0 %v1004
    %v5353 = vpop.f32.mrf.mxu0
    %v5354 = vadd.f32 %v5341, %v5353
    %v5355 = vpop.f32.mrf.mxu0
    %5356 = vdwg.mxu0
    %5357 = vmatpush.bf16.msra.mxu0 %v3834
    %5358 = vmatpush.bf16.msra.mxu0 %v3832
    %5359 = vmatpush.bf16.msra.mxu0 %v3830
    %5360 = vmatpush.bf16.msra.mxu0 %v3828
    %5361 = vmatpush.bf16.msra.mxu0 %v3826
    %5362 = vmatpush.bf16.msra.mxu0 %v3824
    %5363 = vmatpush.bf16.msra.mxu0 %v3822
    %5364 = vmatpush.bf16.msra.mxu0 %v3820
    %5365 = vmatmul.bf16.gmra.mxu0 %v1005
    %v5366 = vpop.f32.mrf.mxu0
    %v5367 = vadd.f32 %v5354, %v5366
    %v5368 = vpop.f32.mrf.mxu0
    %5369 = vdwg.mxu0
    %5370 = vmatpush.bf16.msra.mxu0 %v3850
    %5371 = vmatpush.bf16.msra.mxu0 %v3848
    %5372 = vmatpush.bf16.msra.mxu0 %v3846
    %5373 = vmatpush.bf16.msra.mxu0 %v3844
    %5374 = vmatpush.bf16.msra.mxu0 %v3842
    %5375 = vmatpush.bf16.msra.mxu0 %v3840
    %5376 = vmatpush.bf16.msra.mxu0 %v3838
    %5377 = vmatpush.bf16.msra.mxu0 %v3836
    %5378 = vmatmul.bf16.gmra.mxu0 %v1006
    %v5379 = vpop.f32.mrf.mxu0
    %v5380 = vadd.f32 %v5367, %v5379
    %v5381 = vpop.f32.mrf.mxu0
    %5382 = vdwg.mxu0
    %5383 = vmatpush.bf16.msra.mxu0 %v3866
    %5384 = vmatpush.bf16.msra.mxu0 %v3864
    %5385 = vmatpush.bf16.msra.mxu0 %v3862
    %5386 = vmatpush.bf16.msra.mxu0 %v3860
    %5387 = vmatpush.bf16.msra.mxu0 %v3858
    %5388 = vmatpush.bf16.msra.mxu0 %v3856
    %5389 = vmatpush.bf16.msra.mxu0 %v3854
    %5390 = vmatpush.bf16.msra.mxu0 %v3852
    %5391 = vmatmul.bf16.gmra.mxu0 %v1007
    %v5392 = vpop.f32.mrf.mxu0
    %v5393 = vadd.f32 %v5380, %v5392
    %v5394 = vpop.f32.mrf.mxu0
    %5395 = vdwg.mxu0
    %5396 = vmatpush.bf16.msra.mxu0 %v3882
    %5397 = vmatpush.bf16.msra.mxu0 %v3880
    %5398 = vmatpush.bf16.msra.mxu0 %v3878
    %5399 = vmatpush.bf16.msra.mxu0 %v3876
    %5400 = vmatpush.bf16.msra.mxu0 %v3874
    %5401 = vmatpush.bf16.msra.mxu0 %v3872
    %5402 = vmatpush.bf16.msra.mxu0 %v3870
    %5403 = vmatpush.bf16.msra.mxu0 %v3868
    %5404 = vmatmul.bf16.gmra.mxu0 %v1008
    %v5405 = vpop.f32.mrf.mxu0
    %v5406 = vadd.f32 %v5393, %v5405
    %v5407 = vpop.f32.mrf.mxu0
    %5408 = vdwg.mxu0
    %5409 = vmatpush.bf16.msra.mxu0 %v3898
    %5410 = vmatpush.bf16.msra.mxu0 %v3896
    %5411 = vmatpush.bf16.msra.mxu0 %v3894
    %5412 = vmatpush.bf16.msra.mxu0 %v3892
    %5413 = vmatpush.bf16.msra.mxu0 %v3890
    %5414 = vmatpush.bf16.msra.mxu0 %v3888
    %5415 = vmatpush.bf16.msra.mxu0 %v3886
    %5416 = vmatpush.bf16.msra.mxu0 %v3884
    %5417 = vmatmul.bf16.gmra.mxu0 %v1009
    %v5418 = vpop.f32.mrf.mxu0
    %v5419 = vadd.f32 %v5406, %v5418
    %v5420 = vpop.f32.mrf.mxu0
    %5421 = vdwg.mxu0
    %5422 = vmatpush.bf16.msra.mxu0 %v3914
    %5423 = vmatpush.bf16.msra.mxu0 %v3912
    %5424 = vmatpush.bf16.msra.mxu0 %v3910
    %5425 = vmatpush.bf16.msra.mxu0 %v3908
    %5426 = vmatpush.bf16.msra.mxu0 %v3906
    %5427 = vmatpush.bf16.msra.mxu0 %v3904
    %5428 = vmatpush.bf16.msra.mxu0 %v3902
    %5429 = vmatpush.bf16.msra.mxu0 %v3900
    %5430 = vmatmul.bf16.gmra.mxu0 %v1010
    %v5431 = vpop.f32.mrf.mxu0
    %v5432 = vadd.f32 %v5419, %v5431
    %v5433 = vpop.f32.mrf.mxu0
    %5434 = vdwg.mxu0
    %5435 = vmatpush.bf16.msra.mxu0 %v3930
    %5436 = vmatpush.bf16.msra.mxu0 %v3928
    %5437 = vmatpush.bf16.msra.mxu0 %v3926
    %5438 = vmatpush.bf16.msra.mxu0 %v3924
    %5439 = vmatpush.bf16.msra.mxu0 %v3922
    %5440 = vmatpush.bf16.msra.mxu0 %v3920
    %5441 = vmatpush.bf16.msra.mxu0 %v3918
    %5442 = vmatpush.bf16.msra.mxu0 %v3916
    %5443 = vmatmul.bf16.gmra.mxu0 %v1011
    %v5444 = vpop.f32.mrf.mxu0
    %v5445 = vadd.f32 %v5432, %v5444
    %v5446 = vpop.f32.mrf.mxu0
    %5447 = vdwg.mxu0
    %5448 = vmatpush.bf16.msra.mxu0 %v3946
    %5449 = vmatpush.bf16.msra.mxu0 %v3944
    %5450 = vmatpush.bf16.msra.mxu0 %v3942
    %5451 = vmatpush.bf16.msra.mxu0 %v3940
    %5452 = vmatpush.bf16.msra.mxu0 %v3938
    %5453 = vmatpush.bf16.msra.mxu0 %v3936
    %5454 = vmatpush.bf16.msra.mxu0 %v3934
    %5455 = vmatpush.bf16.msra.mxu0 %v3932
    %5456 = vmatmul.bf16.gmra.mxu0 %v1012
    %v5457 = vpop.f32.mrf.mxu0
    %v5458 = vadd.f32 %v5445, %v5457
    %v5459 = vpop.f32.mrf.mxu0
    %5460 = vdwg.mxu0
    %5461 = vmatpush.bf16.msra.mxu0 %v3962
    %5462 = vmatpush.bf16.msra.mxu0 %v3960
    %5463 = vmatpush.bf16.msra.mxu0 %v3958
    %5464 = vmatpush.bf16.msra.mxu0 %v3956
    %5465 = vmatpush.bf16.msra.mxu0 %v3954
    %5466 = vmatpush.bf16.msra.mxu0 %v3952
    %5467 = vmatpush.bf16.msra.mxu0 %v3950
    %5468 = vmatpush.bf16.msra.mxu0 %v3948
    %5469 = vmatmul.bf16.gmra.mxu0 %v1013
    %v5470 = vpop.f32.mrf.mxu0
    %v5471 = vadd.f32 %v5458, %v5470
    %v5472 = vpop.f32.mrf.mxu0
    %5473 = vdwg.mxu0
    %5474 = vmatpush.bf16.msra.mxu0 %v3978
    %5475 = vmatpush.bf16.msra.mxu0 %v3976
    %5476 = vmatpush.bf16.msra.mxu0 %v3974
    %5477 = vmatpush.bf16.msra.mxu0 %v3972
    %5478 = vmatpush.bf16.msra.mxu0 %v3970
    %5479 = vmatpush.bf16.msra.mxu0 %v3968
    %5480 = vmatpush.bf16.msra.mxu0 %v3966
    %5481 = vmatpush.bf16.msra.mxu0 %v3964
    %5482 = vmatmul.bf16.gmra.mxu0 %v1014
    %v5483 = vpop.f32.mrf.mxu0
    %v5484 = vadd.f32 %v5471, %v5483
    %v5485 = vpop.f32.mrf.mxu0
    %5486 = vdwg.mxu0
    %5487 = vmatpush.bf16.msra.mxu0 %v3994
    %5488 = vmatpush.bf16.msra.mxu0 %v3992
    %5489 = vmatpush.bf16.msra.mxu0 %v3990
    %5490 = vmatpush.bf16.msra.mxu0 %v3988
    %5491 = vmatpush.bf16.msra.mxu0 %v3986
    %5492 = vmatpush.bf16.msra.mxu0 %v3984
    %5493 = vmatpush.bf16.msra.mxu0 %v3982
    %5494 = vmatpush.bf16.msra.mxu0 %v3980
    %5495 = vmatmul.bf16.gmra.mxu0 %v1015
    %v5496 = vpop.f32.mrf.mxu0
    %v5497 = vadd.f32 %v5484, %v5496
    %v5498 = vpop.f32.mrf.mxu0
    %5499 = vdwg.mxu0
    %5500 = vmatpush.bf16.msra.mxu0 %v4010
    %5501 = vmatpush.bf16.msra.mxu0 %v4008
    %5502 = vmatpush.bf16.msra.mxu0 %v4006
    %5503 = vmatpush.bf16.msra.mxu0 %v4004
    %5504 = vmatpush.bf16.msra.mxu0 %v4002
    %5505 = vmatpush.bf16.msra.mxu0 %v4000
    %5506 = vmatpush.bf16.msra.mxu0 %v3998
    %5507 = vmatpush.bf16.msra.mxu0 %v3996
    %5508 = vmatmul.bf16.gmra.mxu0 %v1016
    %v5509 = vpop.f32.mrf.mxu0
    %v5510 = vadd.f32 %v5497, %v5509
    %v5511 = vpop.f32.mrf.mxu0
    %5512 = vdwg.mxu0
    %5513 = vmatpush.bf16.msra.mxu0 %v4026
    %5514 = vmatpush.bf16.msra.mxu0 %v4024
    %5515 = vmatpush.bf16.msra.mxu0 %v4022
    %5516 = vmatpush.bf16.msra.mxu0 %v4020
    %5517 = vmatpush.bf16.msra.mxu0 %v4018
    %5518 = vmatpush.bf16.msra.mxu0 %v4016
    %5519 = vmatpush.bf16.msra.mxu0 %v4014
    %5520 = vmatpush.bf16.msra.mxu0 %v4012
    %5521 = vmatmul.bf16.gmra.mxu0 %v1017
    %v5522 = vpop.f32.mrf.mxu0
    %v5523 = vadd.f32 %v5510, %v5522
    %v5524 = vpop.f32.mrf.mxu0
    %5525 = vdwg.mxu0
    %5526 = vmatpush.bf16.msra.mxu0 %v4042
    %5527 = vmatpush.bf16.msra.mxu0 %v4040
    %5528 = vmatpush.bf16.msra.mxu0 %v4038
    %5529 = vmatpush.bf16.msra.mxu0 %v4036
    %5530 = vmatpush.bf16.msra.mxu0 %v4034
    %5531 = vmatpush.bf16.msra.mxu0 %v4032
    %5532 = vmatpush.bf16.msra.mxu0 %v4030
    %5533 = vmatpush.bf16.msra.mxu0 %v4028
    %5534 = vmatmul.bf16.gmra.mxu0 %v1018
    %v5535 = vpop.f32.mrf.mxu0
    %v5536 = vadd.f32 %v5523, %v5535
    %v5537 = vpop.f32.mrf.mxu0
    %5538 = vdwg.mxu0
    %5539 = vmatpush.bf16.msra.mxu0 %v4058
    %5540 = vmatpush.bf16.msra.mxu0 %v4056
    %5541 = vmatpush.bf16.msra.mxu0 %v4054
    %5542 = vmatpush.bf16.msra.mxu0 %v4052
    %5543 = vmatpush.bf16.msra.mxu0 %v4050
    %5544 = vmatpush.bf16.msra.mxu0 %v4048
    %5545 = vmatpush.bf16.msra.mxu0 %v4046
    %5546 = vmatpush.bf16.msra.mxu0 %v4044
    %5547 = vmatmul.bf16.gmra.mxu0 %v1019
    %v5548 = vpop.f32.mrf.mxu0
    %v5549 = vadd.f32 %v5536, %v5548
    %v5550 = vpop.f32.mrf.mxu0
    %5551 = vdwg.mxu0
    %5552 = vmatpush.bf16.msra.mxu0 %v4074
    %5553 = vmatpush.bf16.msra.mxu0 %v4072
    %5554 = vmatpush.bf16.msra.mxu0 %v4070
    %5555 = vmatpush.bf16.msra.mxu0 %v4068
    %5556 = vmatpush.bf16.msra.mxu0 %v4066
    %5557 = vmatpush.bf16.msra.mxu0 %v4064
    %5558 = vmatpush.bf16.msra.mxu0 %v4062
    %5559 = vmatpush.bf16.msra.mxu0 %v4060
    %5560 = vmatmul.bf16.gmra.mxu0 %v1020
    %v5561 = vpop.f32.mrf.mxu0
    %v5562 = vadd.f32 %v5549, %v5561
    %v5563 = vpop.f32.mrf.mxu0
    %5564 = vdwg.mxu0
    %5565 = vmatpush.bf16.msra.mxu0 %v4090
    %5566 = vmatpush.bf16.msra.mxu0 %v4088
    %5567 = vmatpush.bf16.msra.mxu0 %v4086
    %5568 = vmatpush.bf16.msra.mxu0 %v4084
    %5569 = vmatpush.bf16.msra.mxu0 %v4082
    %5570 = vmatpush.bf16.msra.mxu0 %v4080
    %5571 = vmatpush.bf16.msra.mxu0 %v4078
    %5572 = vmatpush.bf16.msra.mxu0 %v4076
    %5573 = vmatmul.bf16.gmra.mxu0 %v1021
    %v5574 = vpop.f32.mrf.mxu0
    %v5575 = vadd.f32 %v5562, %v5574
    %v5576 = vpop.f32.mrf.mxu0
    %5577 = vdwg.mxu0
    %5578 = vmatpush.bf16.msra.mxu0 %v4106
    %5579 = vmatpush.bf16.msra.mxu0 %v4104
    %5580 = vmatpush.bf16.msra.mxu0 %v4102
    %5581 = vmatpush.bf16.msra.mxu0 %v4100
    %5582 = vmatpush.bf16.msra.mxu0 %v4098
    %5583 = vmatpush.bf16.msra.mxu0 %v4096
    %5584 = vmatpush.bf16.msra.mxu0 %v4094
    %5585 = vmatpush.bf16.msra.mxu0 %v4092
    %5586 = vmatmul.bf16.gmra.mxu0 %v1022
    %v5587 = vpop.f32.mrf.mxu0
    %v5588 = vadd.f32 %v5575, %v5587
    %v5589 = vpop.f32.mrf.mxu0
    %5590 = vdwg.mxu0
    %5591 = vmatpush.bf16.msra.mxu0 %v4122
    %5592 = vmatpush.bf16.msra.mxu0 %v4120
    %5593 = vmatpush.bf16.msra.mxu0 %v4118
    %5594 = vmatpush.bf16.msra.mxu0 %v4116
    %5595 = vmatpush.bf16.msra.mxu0 %v4114
    %5596 = vmatpush.bf16.msra.mxu0 %v4112
    %5597 = vmatpush.bf16.msra.mxu0 %v4110
    %5598 = vmatpush.bf16.msra.mxu0 %v4108
    %5599 = vmatmul.bf16.gmra.mxu0 %v1023
    %v5600 = vpop.f32.mrf.mxu0
    %v5601 = vadd.f32 %v5588, %v5600
    %v5602 = vpop.f32.mrf.mxu0
    %5603 = vdwg.mxu0
    %5604 = vmatpush.bf16.msra.mxu0 %v4138
    %5605 = vmatpush.bf16.msra.mxu0 %v4136
    %5606 = vmatpush.bf16.msra.mxu0 %v4134
    %5607 = vmatpush.bf16.msra.mxu0 %v4132
    %5608 = vmatpush.bf16.msra.mxu0 %v4130
    %5609 = vmatpush.bf16.msra.mxu0 %v4128
    %5610 = vmatpush.bf16.msra.mxu0 %v4126
    %5611 = vmatpush.bf16.msra.mxu0 %v4124
    %5612 = vmatmul.bf16.gmra.mxu0 %v1024
    %v5613 = vpop.f32.mrf.mxu0
    %v5614 = vadd.f32 %v5601, %v5613
    %v5615 = vpop.f32.mrf.mxu0
    %5616 = vdwg.mxu0
    %5617 = vmatpush.bf16.msra.mxu0 %v4154
    %5618 = vmatpush.bf16.msra.mxu0 %v4152
    %5619 = vmatpush.bf16.msra.mxu0 %v4150
    %5620 = vmatpush.bf16.msra.mxu0 %v4148
    %5621 = vmatpush.bf16.msra.mxu0 %v4146
    %5622 = vmatpush.bf16.msra.mxu0 %v4144
    %5623 = vmatpush.bf16.msra.mxu0 %v4142
    %5624 = vmatpush.bf16.msra.mxu0 %v4140
    %5625 = vmatmul.bf16.gmra.mxu0 %v1025
    %v5626 = vpop.f32.mrf.mxu0
    %v5627 = vadd.f32 %v5614, %v5626
    %v5628 = vpop.f32.mrf.mxu0
    %5629 = vdwg.mxu0
    %5630 = vmatpush.bf16.msra.mxu0 %v4170
    %5631 = vmatpush.bf16.msra.mxu0 %v4168
    %5632 = vmatpush.bf16.msra.mxu0 %v4166
    %5633 = vmatpush.bf16.msra.mxu0 %v4164
    %5634 = vmatpush.bf16.msra.mxu0 %v4162
    %5635 = vmatpush.bf16.msra.mxu0 %v4160
    %5636 = vmatpush.bf16.msra.mxu0 %v4158
    %5637 = vmatpush.bf16.msra.mxu0 %v4156
    %5638 = vmatmul.bf16.gmra.mxu0 %v1026
    %v5639 = vpop.f32.mrf.mxu0
    %v5640 = vadd.f32 %v5627, %v5639
    %v5641 = vpop.f32.mrf.mxu0
    %5642 = vdwg.mxu0
    %5643 = vmatpush.bf16.msra.mxu0 %v4186
    %5644 = vmatpush.bf16.msra.mxu0 %v4184
    %5645 = vmatpush.bf16.msra.mxu0 %v4182
    %5646 = vmatpush.bf16.msra.mxu0 %v4180
    %5647 = vmatpush.bf16.msra.mxu0 %v4178
    %5648 = vmatpush.bf16.msra.mxu0 %v4176
    %5649 = vmatpush.bf16.msra.mxu0 %v4174
    %5650 = vmatpush.bf16.msra.mxu0 %v4172
    %5651 = vmatmul.bf16.gmra.mxu0 %v1027
    %v5652 = vpop.f32.mrf.mxu0
    %v5653 = vadd.f32 %v5640, %v5652
    %v5654 = vpop.f32.mrf.mxu0
    %5655 = vdwg.mxu0
    %5656 = vmatpush.bf16.msra.mxu0 %v4202
    %5657 = vmatpush.bf16.msra.mxu0 %v4200
    %5658 = vmatpush.bf16.msra.mxu0 %v4198
    %5659 = vmatpush.bf16.msra.mxu0 %v4196
    %5660 = vmatpush.bf16.msra.mxu0 %v4194
    %5661 = vmatpush.bf16.msra.mxu0 %v4192
    %5662 = vmatpush.bf16.msra.mxu0 %v4190
    %5663 = vmatpush.bf16.msra.mxu0 %v4188
    %5664 = vmatmul.bf16.gmra.mxu0 %v1028
    %v5665 = vpop.f32.mrf.mxu0
    %v5666 = vadd.f32 %v5653, %v5665
    %v5667 = vpop.f32.mrf.mxu0
    %5668 = vdwg.mxu0
    %5669 = vmatpush.bf16.msra.mxu0 %v4218
    %5670 = vmatpush.bf16.msra.mxu0 %v4216
    %5671 = vmatpush.bf16.msra.mxu0 %v4214
    %5672 = vmatpush.bf16.msra.mxu0 %v4212
    %5673 = vmatpush.bf16.msra.mxu0 %v4210
    %5674 = vmatpush.bf16.msra.mxu0 %v4208
    %5675 = vmatpush.bf16.msra.mxu0 %v4206
    %5676 = vmatpush.bf16.msra.mxu0 %v4204
    %5677 = vmatmul.bf16.gmra.mxu0 %v1029
    %v5678 = vpop.f32.mrf.mxu0
    %v5679 = vadd.f32 %v5666, %v5678
    %v5680 = vpop.f32.mrf.mxu0
    %5681 = vdwg.mxu0
    %5682 = vmatpush.bf16.msra.mxu0 %v4234
    %5683 = vmatpush.bf16.msra.mxu0 %v4232
    %5684 = vmatpush.bf16.msra.mxu0 %v4230
    %5685 = vmatpush.bf16.msra.mxu0 %v4228
    %5686 = vmatpush.bf16.msra.mxu0 %v4226
    %5687 = vmatpush.bf16.msra.mxu0 %v4224
    %5688 = vmatpush.bf16.msra.mxu0 %v4222
    %5689 = vmatpush.bf16.msra.mxu0 %v4220
    %5690 = vmatmul.bf16.gmra.mxu0 %v1030
    %v5691 = vpop.f32.mrf.mxu0
    %v5692 = vadd.f32 %v5679, %v5691
    %v5693 = vpop.f32.mrf.mxu0
    %5694 = vdwg.mxu0
    %5695 = vmatpush.bf16.msra.mxu0 %v4250
    %5696 = vmatpush.bf16.msra.mxu0 %v4248
    %5697 = vmatpush.bf16.msra.mxu0 %v4246
    %5698 = vmatpush.bf16.msra.mxu0 %v4244
    %5699 = vmatpush.bf16.msra.mxu0 %v4242
    %5700 = vmatpush.bf16.msra.mxu0 %v4240
    %5701 = vmatpush.bf16.msra.mxu0 %v4238
    %5702 = vmatpush.bf16.msra.mxu0 %v4236
    %5703 = vmatmul.bf16.gmra.mxu0 %v1031
    %v5704 = vpop.f32.mrf.mxu0
    %v5705 = vadd.f32 %v5692, %v5704
    %v5706 = vpop.f32.mrf.mxu0
    %5707 = vdwg.mxu0
    %5708 = vmatpush.bf16.msra.mxu0 %v4266
    %5709 = vmatpush.bf16.msra.mxu0 %v4264
    %5710 = vmatpush.bf16.msra.mxu0 %v4262
    %5711 = vmatpush.bf16.msra.mxu0 %v4260
    %5712 = vmatpush.bf16.msra.mxu0 %v4258
    %5713 = vmatpush.bf16.msra.mxu0 %v4256
    %5714 = vmatpush.bf16.msra.mxu0 %v4254
    %5715 = vmatpush.bf16.msra.mxu0 %v4252
    %5716 = vmatmul.bf16.gmra.mxu0 %v1032
    %v5717 = vpop.f32.mrf.mxu0
    %v5718 = vadd.f32 %v5705, %v5717
    %v5719 = vpop.f32.mrf.mxu0
    %5720 = vdwg.mxu0
    %5721 = vmatpush.bf16.msra.mxu0 %v4282
    %5722 = vmatpush.bf16.msra.mxu0 %v4280
    %5723 = vmatpush.bf16.msra.mxu0 %v4278
    %5724 = vmatpush.bf16.msra.mxu0 %v4276
    %5725 = vmatpush.bf16.msra.mxu0 %v4274
    %5726 = vmatpush.bf16.msra.mxu0 %v4272
    %5727 = vmatpush.bf16.msra.mxu0 %v4270
    %5728 = vmatpush.bf16.msra.mxu0 %v4268
    %5729 = vmatmul.bf16.gmra.mxu0 %v1033
    %v5730 = vpop.f32.mrf.mxu0
    %v5731 = vadd.f32 %v5718, %v5730
    %v5732 = vpop.f32.mrf.mxu0
    %5733 = vdwg.mxu0
    %5734 = vmatpush.bf16.msra.mxu0 %v3499
    %5735 = vmatpush.bf16.msra.mxu0 %v3497
    %5736 = vmatpush.bf16.msra.mxu0 %v3495
    %5737 = vmatpush.bf16.msra.mxu0 %v3493
    %5738 = vmatpush.bf16.msra.mxu0 %v3491
    %5739 = vmatpush.bf16.msra.mxu0 %v3489
    %5740 = vmatpush.bf16.msra.mxu0 %v3487
    %5741 = vmatpush.bf16.msra.mxu0 %v3485
    %5742 = vmatmul.bf16.gmra.mxu0 %v984
    %v5743 = vpop.f32.mrf.mxu0
    %v5744 = vadd.f32 %v906, %v5743
    %v5745 = vpop.f32.mrf.mxu0
    %5746 = vdwg.mxu0
    %5747 = vmatpush.bf16.msra.mxu0 %v3515
    %5748 = vmatpush.bf16.msra.mxu0 %v3513
    %5749 = vmatpush.bf16.msra.mxu0 %v3511
    %5750 = vmatpush.bf16.msra.mxu0 %v3509
    %5751 = vmatpush.bf16.msra.mxu0 %v3507
    %5752 = vmatpush.bf16.msra.mxu0 %v3505
    %5753 = vmatpush.bf16.msra.mxu0 %v3503
    %5754 = vmatpush.bf16.msra.mxu0 %v3501
    %5755 = vmatmul.bf16.gmra.mxu0 %v985
    %v5756 = vpop.f32.mrf.mxu0
    %v5757 = vadd.f32 %v5744, %v5756
    %v5758 = vpop.f32.mrf.mxu0
    %5759 = vdwg.mxu0
    %5760 = vmatpush.bf16.msra.mxu0 %v3531
    %5761 = vmatpush.bf16.msra.mxu0 %v3529
    %5762 = vmatpush.bf16.msra.mxu0 %v3527
    %5763 = vmatpush.bf16.msra.mxu0 %v3525
    %5764 = vmatpush.bf16.msra.mxu0 %v3523
    %5765 = vmatpush.bf16.msra.mxu0 %v3521
    %5766 = vmatpush.bf16.msra.mxu0 %v3519
    %5767 = vmatpush.bf16.msra.mxu0 %v3517
    %5768 = vmatmul.bf16.gmra.mxu0 %v986
    %v5769 = vpop.f32.mrf.mxu0
    %v5770 = vadd.f32 %v5757, %v5769
    %v5771 = vpop.f32.mrf.mxu0
    %5772 = vdwg.mxu0
    %5773 = vmatpush.bf16.msra.mxu0 %v3547
    %5774 = vmatpush.bf16.msra.mxu0 %v3545
    %5775 = vmatpush.bf16.msra.mxu0 %v3543
    %5776 = vmatpush.bf16.msra.mxu0 %v3541
    %5777 = vmatpush.bf16.msra.mxu0 %v3539
    %5778 = vmatpush.bf16.msra.mxu0 %v3537
    %5779 = vmatpush.bf16.msra.mxu0 %v3535
    %5780 = vmatpush.bf16.msra.mxu0 %v3533
    %5781 = vmatmul.bf16.gmra.mxu0 %v987
    %v5782 = vpop.f32.mrf.mxu0
    %v5783 = vadd.f32 %v5770, %v5782
    %v5784 = vpop.f32.mrf.mxu0
    %5785 = vdwg.mxu0
    %5786 = vmatpush.bf16.msra.mxu0 %v3563
    %5787 = vmatpush.bf16.msra.mxu0 %v3561
    %5788 = vmatpush.bf16.msra.mxu0 %v3559
    %5789 = vmatpush.bf16.msra.mxu0 %v3557
    %5790 = vmatpush.bf16.msra.mxu0 %v3555
    %5791 = vmatpush.bf16.msra.mxu0 %v3553
    %5792 = vmatpush.bf16.msra.mxu0 %v3551
    %5793 = vmatpush.bf16.msra.mxu0 %v3549
    %5794 = vmatmul.bf16.gmra.mxu0 %v988
    %v5795 = vpop.f32.mrf.mxu0
    %v5796 = vadd.f32 %v5783, %v5795
    %v5797 = vpop.f32.mrf.mxu0
    %5798 = vdwg.mxu0
    %5799 = vmatpush.bf16.msra.mxu0 %v3579
    %5800 = vmatpush.bf16.msra.mxu0 %v3577
    %5801 = vmatpush.bf16.msra.mxu0 %v3575
    %5802 = vmatpush.bf16.msra.mxu0 %v3573
    %5803 = vmatpush.bf16.msra.mxu0 %v3571
    %5804 = vmatpush.bf16.msra.mxu0 %v3569
    %5805 = vmatpush.bf16.msra.mxu0 %v3567
    %5806 = vmatpush.bf16.msra.mxu0 %v3565
    %5807 = vmatmul.bf16.gmra.mxu0 %v989
    %v5808 = vpop.f32.mrf.mxu0
    %v5809 = vadd.f32 %v5796, %v5808
    %v5810 = vpop.f32.mrf.mxu0
    %5811 = vdwg.mxu0
    %5812 = vmatpush.bf16.msra.mxu0 %v3595
    %5813 = vmatpush.bf16.msra.mxu0 %v3593
    %5814 = vmatpush.bf16.msra.mxu0 %v3591
    %5815 = vmatpush.bf16.msra.mxu0 %v3589
    %5816 = vmatpush.bf16.msra.mxu0 %v3587
    %5817 = vmatpush.bf16.msra.mxu0 %v3585
    %5818 = vmatpush.bf16.msra.mxu0 %v3583
    %5819 = vmatpush.bf16.msra.mxu0 %v3581
    %5820 = vmatmul.bf16.gmra.mxu0 %v990
    %v5821 = vpop.f32.mrf.mxu0
    %v5822 = vadd.f32 %v5809, %v5821
    %v5823 = vpop.f32.mrf.mxu0
    %5824 = vdwg.mxu0
    %5825 = vmatpush.bf16.msra.mxu0 %v3611
    %5826 = vmatpush.bf16.msra.mxu0 %v3609
    %5827 = vmatpush.bf16.msra.mxu0 %v3607
    %5828 = vmatpush.bf16.msra.mxu0 %v3605
    %5829 = vmatpush.bf16.msra.mxu0 %v3603
    %5830 = vmatpush.bf16.msra.mxu0 %v3601
    %5831 = vmatpush.bf16.msra.mxu0 %v3599
    %5832 = vmatpush.bf16.msra.mxu0 %v3597
    %5833 = vmatmul.bf16.gmra.mxu0 %v991
    %v5834 = vpop.f32.mrf.mxu0
    %v5835 = vadd.f32 %v5822, %v5834
    %v5836 = vpop.f32.mrf.mxu0
    %5837 = vdwg.mxu0
    %5838 = vmatpush.bf16.msra.mxu0 %v3627
    %5839 = vmatpush.bf16.msra.mxu0 %v3625
    %5840 = vmatpush.bf16.msra.mxu0 %v3623
    %5841 = vmatpush.bf16.msra.mxu0 %v3621
    %5842 = vmatpush.bf16.msra.mxu0 %v3619
    %5843 = vmatpush.bf16.msra.mxu0 %v3617
    %5844 = vmatpush.bf16.msra.mxu0 %v3615
    %5845 = vmatpush.bf16.msra.mxu0 %v3613
    %5846 = vmatmul.bf16.gmra.mxu0 %v992
    %v5847 = vpop.f32.mrf.mxu0
    %v5848 = vadd.f32 %v5835, %v5847
    %v5849 = vpop.f32.mrf.mxu0
    %5850 = vdwg.mxu0
    %5851 = vmatpush.bf16.msra.mxu0 %v3643
    %5852 = vmatpush.bf16.msra.mxu0 %v3641
    %5853 = vmatpush.bf16.msra.mxu0 %v3639
    %5854 = vmatpush.bf16.msra.mxu0 %v3637
    %5855 = vmatpush.bf16.msra.mxu0 %v3635
    %5856 = vmatpush.bf16.msra.mxu0 %v3633
    %5857 = vmatpush.bf16.msra.mxu0 %v3631
    %5858 = vmatpush.bf16.msra.mxu0 %v3629
    %5859 = vmatmul.bf16.gmra.mxu0 %v993
    %v5860 = vpop.f32.mrf.mxu0
    %v5861 = vadd.f32 %v5848, %v5860
    %v5862 = vpop.f32.mrf.mxu0
    %5863 = vdwg.mxu0
    %5864 = vmatpush.bf16.msra.mxu0 %v3659
    %5865 = vmatpush.bf16.msra.mxu0 %v3657
    %5866 = vmatpush.bf16.msra.mxu0 %v3655
    %5867 = vmatpush.bf16.msra.mxu0 %v3653
    %5868 = vmatpush.bf16.msra.mxu0 %v3651
    %5869 = vmatpush.bf16.msra.mxu0 %v3649
    %5870 = vmatpush.bf16.msra.mxu0 %v3647
    %5871 = vmatpush.bf16.msra.mxu0 %v3645
    %5872 = vmatmul.bf16.gmra.mxu0 %v994
    %v5873 = vpop.f32.mrf.mxu0
    %v5874 = vadd.f32 %v5861, %v5873
    %v5875 = vpop.f32.mrf.mxu0
    %5876 = vdwg.mxu0
    %5877 = vmatpush.bf16.msra.mxu0 %v3675
    %5878 = vmatpush.bf16.msra.mxu0 %v3673
    %5879 = vmatpush.bf16.msra.mxu0 %v3671
    %5880 = vmatpush.bf16.msra.mxu0 %v3669
    %5881 = vmatpush.bf16.msra.mxu0 %v3667
    %5882 = vmatpush.bf16.msra.mxu0 %v3665
    %5883 = vmatpush.bf16.msra.mxu0 %v3663
    %5884 = vmatpush.bf16.msra.mxu0 %v3661
    %5885 = vmatmul.bf16.gmra.mxu0 %v995
    %v5886 = vpop.f32.mrf.mxu0
    %v5887 = vadd.f32 %v5874, %v5886
    %v5888 = vpop.f32.mrf.mxu0
    %5889 = vdwg.mxu0
    %5890 = vmatpush.bf16.msra.mxu0 %v3691
    %5891 = vmatpush.bf16.msra.mxu0 %v3689
    %5892 = vmatpush.bf16.msra.mxu0 %v3687
    %5893 = vmatpush.bf16.msra.mxu0 %v3685
    %5894 = vmatpush.bf16.msra.mxu0 %v3683
    %5895 = vmatpush.bf16.msra.mxu0 %v3681
    %5896 = vmatpush.bf16.msra.mxu0 %v3679
    %5897 = vmatpush.bf16.msra.mxu0 %v3677
    %5898 = vmatmul.bf16.gmra.mxu0 %v996
    %v5899 = vpop.f32.mrf.mxu0
    %v5900 = vadd.f32 %v5887, %v5899
    %v5901 = vpop.f32.mrf.mxu0
    %5902 = vdwg.mxu0
    %5903 = vmatpush.bf16.msra.mxu0 %v3707
    %5904 = vmatpush.bf16.msra.mxu0 %v3705
    %5905 = vmatpush.bf16.msra.mxu0 %v3703
    %5906 = vmatpush.bf16.msra.mxu0 %v3701
    %5907 = vmatpush.bf16.msra.mxu0 %v3699
    %5908 = vmatpush.bf16.msra.mxu0 %v3697
    %5909 = vmatpush.bf16.msra.mxu0 %v3695
    %5910 = vmatpush.bf16.msra.mxu0 %v3693
    %5911 = vmatmul.bf16.gmra.mxu0 %v997
    %v5912 = vpop.f32.mrf.mxu0
    %v5913 = vadd.f32 %v5900, %v5912
    %v5914 = vpop.f32.mrf.mxu0
    %5915 = vdwg.mxu0
    %5916 = vmatpush.bf16.msra.mxu0 %v3723
    %5917 = vmatpush.bf16.msra.mxu0 %v3721
    %5918 = vmatpush.bf16.msra.mxu0 %v3719
    %5919 = vmatpush.bf16.msra.mxu0 %v3717
    %5920 = vmatpush.bf16.msra.mxu0 %v3715
    %5921 = vmatpush.bf16.msra.mxu0 %v3713
    %5922 = vmatpush.bf16.msra.mxu0 %v3711
    %5923 = vmatpush.bf16.msra.mxu0 %v3709
    %5924 = vmatmul.bf16.gmra.mxu0 %v998
    %v5925 = vpop.f32.mrf.mxu0
    %v5926 = vadd.f32 %v5913, %v5925
    %v5927 = vpop.f32.mrf.mxu0
    %5928 = vdwg.mxu0
    %5929 = vmatpush.bf16.msra.mxu0 %v3739
    %5930 = vmatpush.bf16.msra.mxu0 %v3737
    %5931 = vmatpush.bf16.msra.mxu0 %v3735
    %5932 = vmatpush.bf16.msra.mxu0 %v3733
    %5933 = vmatpush.bf16.msra.mxu0 %v3731
    %5934 = vmatpush.bf16.msra.mxu0 %v3729
    %5935 = vmatpush.bf16.msra.mxu0 %v3727
    %5936 = vmatpush.bf16.msra.mxu0 %v3725
    %5937 = vmatmul.bf16.gmra.mxu0 %v999
    %v5938 = vpop.f32.mrf.mxu0
    %v5939 = vadd.f32 %v5926, %v5938
    %v5940 = vpop.f32.mrf.mxu0
    %5941 = vdwg.mxu0
    %5942 = vmatpush.bf16.msra.mxu0 %v3755
    %5943 = vmatpush.bf16.msra.mxu0 %v3753
    %5944 = vmatpush.bf16.msra.mxu0 %v3751
    %5945 = vmatpush.bf16.msra.mxu0 %v3749
    %5946 = vmatpush.bf16.msra.mxu0 %v3747
    %5947 = vmatpush.bf16.msra.mxu0 %v3745
    %5948 = vmatpush.bf16.msra.mxu0 %v3743
    %5949 = vmatpush.bf16.msra.mxu0 %v3741
    %5950 = vmatmul.bf16.gmra.mxu0 %v1000
    %v5951 = vpop.f32.mrf.mxu0
    %v5952 = vadd.f32 %v5939, %v5951
    %v5953 = vpop.f32.mrf.mxu0
    %5954 = vdwg.mxu0
    %5955 = vmatpush.bf16.msra.mxu0 %v3771
    %5956 = vmatpush.bf16.msra.mxu0 %v3769
    %5957 = vmatpush.bf16.msra.mxu0 %v3767
    %5958 = vmatpush.bf16.msra.mxu0 %v3765
    %5959 = vmatpush.bf16.msra.mxu0 %v3763
    %5960 = vmatpush.bf16.msra.mxu0 %v3761
    %5961 = vmatpush.bf16.msra.mxu0 %v3759
    %5962 = vmatpush.bf16.msra.mxu0 %v3757
    %5963 = vmatmul.bf16.gmra.mxu0 %v1001
    %v5964 = vpop.f32.mrf.mxu0
    %v5965 = vadd.f32 %v5952, %v5964
    %v5966 = vpop.f32.mrf.mxu0
    %5967 = vdwg.mxu0
    %5968 = vmatpush.bf16.msra.mxu0 %v3787
    %5969 = vmatpush.bf16.msra.mxu0 %v3785
    %5970 = vmatpush.bf16.msra.mxu0 %v3783
    %5971 = vmatpush.bf16.msra.mxu0 %v3781
    %5972 = vmatpush.bf16.msra.mxu0 %v3779
    %5973 = vmatpush.bf16.msra.mxu0 %v3777
    %5974 = vmatpush.bf16.msra.mxu0 %v3775
    %5975 = vmatpush.bf16.msra.mxu0 %v3773
    %5976 = vmatmul.bf16.gmra.mxu0 %v1002
    %v5977 = vpop.f32.mrf.mxu0
    %v5978 = vadd.f32 %v5965, %v5977
    %v5979 = vpop.f32.mrf.mxu0
    %5980 = vdwg.mxu0
    %5981 = vmatpush.bf16.msra.mxu0 %v3803
    %5982 = vmatpush.bf16.msra.mxu0 %v3801
    %5983 = vmatpush.bf16.msra.mxu0 %v3799
    %5984 = vmatpush.bf16.msra.mxu0 %v3797
    %5985 = vmatpush.bf16.msra.mxu0 %v3795
    %5986 = vmatpush.bf16.msra.mxu0 %v3793
    %5987 = vmatpush.bf16.msra.mxu0 %v3791
    %5988 = vmatpush.bf16.msra.mxu0 %v3789
    %5989 = vmatmul.bf16.gmra.mxu0 %v1003
    %v5990 = vpop.f32.mrf.mxu0
    %v5991 = vadd.f32 %v5978, %v5990
    %v5992 = vpop.f32.mrf.mxu0
    %5993 = vdwg.mxu0
    %5994 = vmatpush.bf16.msra.mxu0 %v3819
    %5995 = vmatpush.bf16.msra.mxu0 %v3817
    %5996 = vmatpush.bf16.msra.mxu0 %v3815
    %5997 = vmatpush.bf16.msra.mxu0 %v3813
    %5998 = vmatpush.bf16.msra.mxu0 %v3811
    %5999 = vmatpush.bf16.msra.mxu0 %v3809
    %6000 = vmatpush.bf16.msra.mxu0 %v3807
    %6001 = vmatpush.bf16.msra.mxu0 %v3805
    %6002 = vmatmul.bf16.gmra.mxu0 %v1004
    %v6003 = vpop.f32.mrf.mxu0
    %v6004 = vadd.f32 %v5991, %v6003
    %v6005 = vpop.f32.mrf.mxu0
    %6006 = vdwg.mxu0
    %6007 = vmatpush.bf16.msra.mxu0 %v3835
    %6008 = vmatpush.bf16.msra.mxu0 %v3833
    %6009 = vmatpush.bf16.msra.mxu0 %v3831
    %6010 = vmatpush.bf16.msra.mxu0 %v3829
    %6011 = vmatpush.bf16.msra.mxu0 %v3827
    %6012 = vmatpush.bf16.msra.mxu0 %v3825
    %6013 = vmatpush.bf16.msra.mxu0 %v3823
    %6014 = vmatpush.bf16.msra.mxu0 %v3821
    %6015 = vmatmul.bf16.gmra.mxu0 %v1005
    %v6016 = vpop.f32.mrf.mxu0
    %v6017 = vadd.f32 %v6004, %v6016
    %v6018 = vpop.f32.mrf.mxu0
    %6019 = vdwg.mxu0
    %6020 = vmatpush.bf16.msra.mxu0 %v3851
    %6021 = vmatpush.bf16.msra.mxu0 %v3849
    %6022 = vmatpush.bf16.msra.mxu0 %v3847
    %6023 = vmatpush.bf16.msra.mxu0 %v3845
    %6024 = vmatpush.bf16.msra.mxu0 %v3843
    %6025 = vmatpush.bf16.msra.mxu0 %v3841
    %6026 = vmatpush.bf16.msra.mxu0 %v3839
    %6027 = vmatpush.bf16.msra.mxu0 %v3837
    %6028 = vmatmul.bf16.gmra.mxu0 %v1006
    %v6029 = vpop.f32.mrf.mxu0
    %v6030 = vadd.f32 %v6017, %v6029
    %v6031 = vpop.f32.mrf.mxu0
    %6032 = vdwg.mxu0
    %6033 = vmatpush.bf16.msra.mxu0 %v3867
    %6034 = vmatpush.bf16.msra.mxu0 %v3865
    %6035 = vmatpush.bf16.msra.mxu0 %v3863
    %6036 = vmatpush.bf16.msra.mxu0 %v3861
    %6037 = vmatpush.bf16.msra.mxu0 %v3859
    %6038 = vmatpush.bf16.msra.mxu0 %v3857
    %6039 = vmatpush.bf16.msra.mxu0 %v3855
    %6040 = vmatpush.bf16.msra.mxu0 %v3853
    %6041 = vmatmul.bf16.gmra.mxu0 %v1007
    %v6042 = vpop.f32.mrf.mxu0
    %v6043 = vadd.f32 %v6030, %v6042
    %v6044 = vpop.f32.mrf.mxu0
    %6045 = vdwg.mxu0
    %6046 = vmatpush.bf16.msra.mxu0 %v3883
    %6047 = vmatpush.bf16.msra.mxu0 %v3881
    %6048 = vmatpush.bf16.msra.mxu0 %v3879
    %6049 = vmatpush.bf16.msra.mxu0 %v3877
    %6050 = vmatpush.bf16.msra.mxu0 %v3875
    %6051 = vmatpush.bf16.msra.mxu0 %v3873
    %6052 = vmatpush.bf16.msra.mxu0 %v3871
    %6053 = vmatpush.bf16.msra.mxu0 %v3869
    %6054 = vmatmul.bf16.gmra.mxu0 %v1008
    %v6055 = vpop.f32.mrf.mxu0
    %v6056 = vadd.f32 %v6043, %v6055
    %v6057 = vpop.f32.mrf.mxu0
    %6058 = vdwg.mxu0
    %6059 = vmatpush.bf16.msra.mxu0 %v3899
    %6060 = vmatpush.bf16.msra.mxu0 %v3897
    %6061 = vmatpush.bf16.msra.mxu0 %v3895
    %6062 = vmatpush.bf16.msra.mxu0 %v3893
    %6063 = vmatpush.bf16.msra.mxu0 %v3891
    %6064 = vmatpush.bf16.msra.mxu0 %v3889
    %6065 = vmatpush.bf16.msra.mxu0 %v3887
    %6066 = vmatpush.bf16.msra.mxu0 %v3885
    %6067 = vmatmul.bf16.gmra.mxu0 %v1009
    %v6068 = vpop.f32.mrf.mxu0
    %v6069 = vadd.f32 %v6056, %v6068
    %v6070 = vpop.f32.mrf.mxu0
    %6071 = vdwg.mxu0
    %6072 = vmatpush.bf16.msra.mxu0 %v3915
    %6073 = vmatpush.bf16.msra.mxu0 %v3913
    %6074 = vmatpush.bf16.msra.mxu0 %v3911
    %6075 = vmatpush.bf16.msra.mxu0 %v3909
    %6076 = vmatpush.bf16.msra.mxu0 %v3907
    %6077 = vmatpush.bf16.msra.mxu0 %v3905
    %6078 = vmatpush.bf16.msra.mxu0 %v3903
    %6079 = vmatpush.bf16.msra.mxu0 %v3901
    %6080 = vmatmul.bf16.gmra.mxu0 %v1010
    %v6081 = vpop.f32.mrf.mxu0
    %v6082 = vadd.f32 %v6069, %v6081
    %v6083 = vpop.f32.mrf.mxu0
    %6084 = vdwg.mxu0
    %6085 = vmatpush.bf16.msra.mxu0 %v3931
    %6086 = vmatpush.bf16.msra.mxu0 %v3929
    %6087 = vmatpush.bf16.msra.mxu0 %v3927
    %6088 = vmatpush.bf16.msra.mxu0 %v3925
    %6089 = vmatpush.bf16.msra.mxu0 %v3923
    %6090 = vmatpush.bf16.msra.mxu0 %v3921
    %6091 = vmatpush.bf16.msra.mxu0 %v3919
    %6092 = vmatpush.bf16.msra.mxu0 %v3917
    %6093 = vmatmul.bf16.gmra.mxu0 %v1011
    %v6094 = vpop.f32.mrf.mxu0
    %v6095 = vadd.f32 %v6082, %v6094
    %v6096 = vpop.f32.mrf.mxu0
    %6097 = vdwg.mxu0
    %6098 = vmatpush.bf16.msra.mxu0 %v3947
    %6099 = vmatpush.bf16.msra.mxu0 %v3945
    %6100 = vmatpush.bf16.msra.mxu0 %v3943
    %6101 = vmatpush.bf16.msra.mxu0 %v3941
    %6102 = vmatpush.bf16.msra.mxu0 %v3939
    %6103 = vmatpush.bf16.msra.mxu0 %v3937
    %6104 = vmatpush.bf16.msra.mxu0 %v3935
    %6105 = vmatpush.bf16.msra.mxu0 %v3933
    %6106 = vmatmul.bf16.gmra.mxu0 %v1012
    %v6107 = vpop.f32.mrf.mxu0
    %v6108 = vadd.f32 %v6095, %v6107
    %v6109 = vpop.f32.mrf.mxu0
    %6110 = vdwg.mxu0
    %6111 = vmatpush.bf16.msra.mxu0 %v3963
    %6112 = vmatpush.bf16.msra.mxu0 %v3961
    %6113 = vmatpush.bf16.msra.mxu0 %v3959
    %6114 = vmatpush.bf16.msra.mxu0 %v3957
    %6115 = vmatpush.bf16.msra.mxu0 %v3955
    %6116 = vmatpush.bf16.msra.mxu0 %v3953
    %6117 = vmatpush.bf16.msra.mxu0 %v3951
    %6118 = vmatpush.bf16.msra.mxu0 %v3949
    %6119 = vmatmul.bf16.gmra.mxu0 %v1013
    %v6120 = vpop.f32.mrf.mxu0
    %v6121 = vadd.f32 %v6108, %v6120
    %v6122 = vpop.f32.mrf.mxu0
    %6123 = vdwg.mxu0
    %6124 = vmatpush.bf16.msra.mxu0 %v3979
    %6125 = vmatpush.bf16.msra.mxu0 %v3977
    %6126 = vmatpush.bf16.msra.mxu0 %v3975
    %6127 = vmatpush.bf16.msra.mxu0 %v3973
    %6128 = vmatpush.bf16.msra.mxu0 %v3971
    %6129 = vmatpush.bf16.msra.mxu0 %v3969
    %6130 = vmatpush.bf16.msra.mxu0 %v3967
    %6131 = vmatpush.bf16.msra.mxu0 %v3965
    %6132 = vmatmul.bf16.gmra.mxu0 %v1014
    %v6133 = vpop.f32.mrf.mxu0
    %v6134 = vadd.f32 %v6121, %v6133
    %v6135 = vpop.f32.mrf.mxu0
    %6136 = vdwg.mxu0
    %6137 = vmatpush.bf16.msra.mxu0 %v3995
    %6138 = vmatpush.bf16.msra.mxu0 %v3993
    %6139 = vmatpush.bf16.msra.mxu0 %v3991
    %6140 = vmatpush.bf16.msra.mxu0 %v3989
    %6141 = vmatpush.bf16.msra.mxu0 %v3987
    %6142 = vmatpush.bf16.msra.mxu0 %v3985
    %6143 = vmatpush.bf16.msra.mxu0 %v3983
    %6144 = vmatpush.bf16.msra.mxu0 %v3981
    %6145 = vmatmul.bf16.gmra.mxu0 %v1015
    %v6146 = vpop.f32.mrf.mxu0
    %v6147 = vadd.f32 %v6134, %v6146
    %v6148 = vpop.f32.mrf.mxu0
    %6149 = vdwg.mxu0
    %6150 = vmatpush.bf16.msra.mxu0 %v4011
    %6151 = vmatpush.bf16.msra.mxu0 %v4009
    %6152 = vmatpush.bf16.msra.mxu0 %v4007
    %6153 = vmatpush.bf16.msra.mxu0 %v4005
    %6154 = vmatpush.bf16.msra.mxu0 %v4003
    %6155 = vmatpush.bf16.msra.mxu0 %v4001
    %6156 = vmatpush.bf16.msra.mxu0 %v3999
    %6157 = vmatpush.bf16.msra.mxu0 %v3997
    %6158 = vmatmul.bf16.gmra.mxu0 %v1016
    %v6159 = vpop.f32.mrf.mxu0
    %v6160 = vadd.f32 %v6147, %v6159
    %v6161 = vpop.f32.mrf.mxu0
    %6162 = vdwg.mxu0
    %6163 = vmatpush.bf16.msra.mxu0 %v4027
    %6164 = vmatpush.bf16.msra.mxu0 %v4025
    %6165 = vmatpush.bf16.msra.mxu0 %v4023
    %6166 = vmatpush.bf16.msra.mxu0 %v4021
    %6167 = vmatpush.bf16.msra.mxu0 %v4019
    %6168 = vmatpush.bf16.msra.mxu0 %v4017
    %6169 = vmatpush.bf16.msra.mxu0 %v4015
    %6170 = vmatpush.bf16.msra.mxu0 %v4013
    %6171 = vmatmul.bf16.gmra.mxu0 %v1017
    %v6172 = vpop.f32.mrf.mxu0
    %v6173 = vadd.f32 %v6160, %v6172
    %v6174 = vpop.f32.mrf.mxu0
    %6175 = vdwg.mxu0
    %6176 = vmatpush.bf16.msra.mxu0 %v4043
    %6177 = vmatpush.bf16.msra.mxu0 %v4041
    %6178 = vmatpush.bf16.msra.mxu0 %v4039
    %6179 = vmatpush.bf16.msra.mxu0 %v4037
    %6180 = vmatpush.bf16.msra.mxu0 %v4035
    %6181 = vmatpush.bf16.msra.mxu0 %v4033
    %6182 = vmatpush.bf16.msra.mxu0 %v4031
    %6183 = vmatpush.bf16.msra.mxu0 %v4029
    %6184 = vmatmul.bf16.gmra.mxu0 %v1018
    %v6185 = vpop.f32.mrf.mxu0
    %v6186 = vadd.f32 %v6173, %v6185
    %v6187 = vpop.f32.mrf.mxu0
    %6188 = vdwg.mxu0
    %6189 = vmatpush.bf16.msra.mxu0 %v4059
    %6190 = vmatpush.bf16.msra.mxu0 %v4057
    %6191 = vmatpush.bf16.msra.mxu0 %v4055
    %6192 = vmatpush.bf16.msra.mxu0 %v4053
    %6193 = vmatpush.bf16.msra.mxu0 %v4051
    %6194 = vmatpush.bf16.msra.mxu0 %v4049
    %6195 = vmatpush.bf16.msra.mxu0 %v4047
    %6196 = vmatpush.bf16.msra.mxu0 %v4045
    %6197 = vmatmul.bf16.gmra.mxu0 %v1019
    %v6198 = vpop.f32.mrf.mxu0
    %v6199 = vadd.f32 %v6186, %v6198
    %v6200 = vpop.f32.mrf.mxu0
    %6201 = vdwg.mxu0
    %6202 = vmatpush.bf16.msra.mxu0 %v4075
    %6203 = vmatpush.bf16.msra.mxu0 %v4073
    %6204 = vmatpush.bf16.msra.mxu0 %v4071
    %6205 = vmatpush.bf16.msra.mxu0 %v4069
    %6206 = vmatpush.bf16.msra.mxu0 %v4067
    %6207 = vmatpush.bf16.msra.mxu0 %v4065
    %6208 = vmatpush.bf16.msra.mxu0 %v4063
    %6209 = vmatpush.bf16.msra.mxu0 %v4061
    %6210 = vmatmul.bf16.gmra.mxu0 %v1020
    %v6211 = vpop.f32.mrf.mxu0
    %v6212 = vadd.f32 %v6199, %v6211
    %v6213 = vpop.f32.mrf.mxu0
    %6214 = vdwg.mxu0
    %6215 = vmatpush.bf16.msra.mxu0 %v4091
    %6216 = vmatpush.bf16.msra.mxu0 %v4089
    %6217 = vmatpush.bf16.msra.mxu0 %v4087
    %6218 = vmatpush.bf16.msra.mxu0 %v4085
    %6219 = vmatpush.bf16.msra.mxu0 %v4083
    %6220 = vmatpush.bf16.msra.mxu0 %v4081
    %6221 = vmatpush.bf16.msra.mxu0 %v4079
    %6222 = vmatpush.bf16.msra.mxu0 %v4077
    %6223 = vmatmul.bf16.gmra.mxu0 %v1021
    %v6224 = vpop.f32.mrf.mxu0
    %v6225 = vadd.f32 %v6212, %v6224
    %v6226 = vpop.f32.mrf.mxu0
    %6227 = vdwg.mxu0
    %6228 = vmatpush.bf16.msra.mxu0 %v4107
    %6229 = vmatpush.bf16.msra.mxu0 %v4105
    %6230 = vmatpush.bf16.msra.mxu0 %v4103
    %6231 = vmatpush.bf16.msra.mxu0 %v4101
    %6232 = vmatpush.bf16.msra.mxu0 %v4099
    %6233 = vmatpush.bf16.msra.mxu0 %v4097
    %6234 = vmatpush.bf16.msra.mxu0 %v4095
    %6235 = vmatpush.bf16.msra.mxu0 %v4093
    %6236 = vmatmul.bf16.gmra.mxu0 %v1022
    %v6237 = vpop.f32.mrf.mxu0
    %v6238 = vadd.f32 %v6225, %v6237
    %v6239 = vpop.f32.mrf.mxu0
    %6240 = vdwg.mxu0
    %6241 = vmatpush.bf16.msra.mxu0 %v4123
    %6242 = vmatpush.bf16.msra.mxu0 %v4121
    %6243 = vmatpush.bf16.msra.mxu0 %v4119
    %6244 = vmatpush.bf16.msra.mxu0 %v4117
    %6245 = vmatpush.bf16.msra.mxu0 %v4115
    %6246 = vmatpush.bf16.msra.mxu0 %v4113
    %6247 = vmatpush.bf16.msra.mxu0 %v4111
    %6248 = vmatpush.bf16.msra.mxu0 %v4109
    %6249 = vmatmul.bf16.gmra.mxu0 %v1023
    %v6250 = vpop.f32.mrf.mxu0
    %v6251 = vadd.f32 %v6238, %v6250
    %v6252 = vpop.f32.mrf.mxu0
    %6253 = vdwg.mxu0
    %6254 = vmatpush.bf16.msra.mxu0 %v4139
    %6255 = vmatpush.bf16.msra.mxu0 %v4137
    %6256 = vmatpush.bf16.msra.mxu0 %v4135
    %6257 = vmatpush.bf16.msra.mxu0 %v4133
    %6258 = vmatpush.bf16.msra.mxu0 %v4131
    %6259 = vmatpush.bf16.msra.mxu0 %v4129
    %6260 = vmatpush.bf16.msra.mxu0 %v4127
    %6261 = vmatpush.bf16.msra.mxu0 %v4125
    %6262 = vmatmul.bf16.gmra.mxu0 %v1024
    %v6263 = vpop.f32.mrf.mxu0
    %v6264 = vadd.f32 %v6251, %v6263
    %v6265 = vpop.f32.mrf.mxu0
    %6266 = vdwg.mxu0
    %6267 = vmatpush.bf16.msra.mxu0 %v4155
    %6268 = vmatpush.bf16.msra.mxu0 %v4153
    %6269 = vmatpush.bf16.msra.mxu0 %v4151
    %6270 = vmatpush.bf16.msra.mxu0 %v4149
    %6271 = vmatpush.bf16.msra.mxu0 %v4147
    %6272 = vmatpush.bf16.msra.mxu0 %v4145
    %6273 = vmatpush.bf16.msra.mxu0 %v4143
    %6274 = vmatpush.bf16.msra.mxu0 %v4141
    %6275 = vmatmul.bf16.gmra.mxu0 %v1025
    %v6276 = vpop.f32.mrf.mxu0
    %v6277 = vadd.f32 %v6264, %v6276
    %v6278 = vpop.f32.mrf.mxu0
    %6279 = vdwg.mxu0
    %6280 = vmatpush.bf16.msra.mxu0 %v4171
    %6281 = vmatpush.bf16.msra.mxu0 %v4169
    %6282 = vmatpush.bf16.msra.mxu0 %v4167
    %6283 = vmatpush.bf16.msra.mxu0 %v4165
    %6284 = vmatpush.bf16.msra.mxu0 %v4163
    %6285 = vmatpush.bf16.msra.mxu0 %v4161
    %6286 = vmatpush.bf16.msra.mxu0 %v4159
    %6287 = vmatpush.bf16.msra.mxu0 %v4157
    %6288 = vmatmul.bf16.gmra.mxu0 %v1026
    %v6289 = vpop.f32.mrf.mxu0
    %v6290 = vadd.f32 %v6277, %v6289
    %v6291 = vpop.f32.mrf.mxu0
    %6292 = vdwg.mxu0
    %6293 = vmatpush.bf16.msra.mxu0 %v4187
    %6294 = vmatpush.bf16.msra.mxu0 %v4185
    %6295 = vmatpush.bf16.msra.mxu0 %v4183
    %6296 = vmatpush.bf16.msra.mxu0 %v4181
    %6297 = vmatpush.bf16.msra.mxu0 %v4179
    %6298 = vmatpush.bf16.msra.mxu0 %v4177
    %6299 = vmatpush.bf16.msra.mxu0 %v4175
    %6300 = vmatpush.bf16.msra.mxu0 %v4173
    %6301 = vmatmul.bf16.gmra.mxu0 %v1027
    %v6302 = vpop.f32.mrf.mxu0
    %v6303 = vadd.f32 %v6290, %v6302
    %v6304 = vpop.f32.mrf.mxu0
    %6305 = vdwg.mxu0
    %6306 = vmatpush.bf16.msra.mxu0 %v4203
    %6307 = vmatpush.bf16.msra.mxu0 %v4201
    %6308 = vmatpush.bf16.msra.mxu0 %v4199
    %6309 = vmatpush.bf16.msra.mxu0 %v4197
    %6310 = vmatpush.bf16.msra.mxu0 %v4195
    %6311 = vmatpush.bf16.msra.mxu0 %v4193
    %6312 = vmatpush.bf16.msra.mxu0 %v4191
    %6313 = vmatpush.bf16.msra.mxu0 %v4189
    %6314 = vmatmul.bf16.gmra.mxu0 %v1028
    %v6315 = vpop.f32.mrf.mxu0
    %v6316 = vadd.f32 %v6303, %v6315
    %v6317 = vpop.f32.mrf.mxu0
    %6318 = vdwg.mxu0
    %6319 = vmatpush.bf16.msra.mxu0 %v4219
    %6320 = vmatpush.bf16.msra.mxu0 %v4217
    %6321 = vmatpush.bf16.msra.mxu0 %v4215
    %6322 = vmatpush.bf16.msra.mxu0 %v4213
    %6323 = vmatpush.bf16.msra.mxu0 %v4211
    %6324 = vmatpush.bf16.msra.mxu0 %v4209
    %6325 = vmatpush.bf16.msra.mxu0 %v4207
    %6326 = vmatpush.bf16.msra.mxu0 %v4205
    %6327 = vmatmul.bf16.gmra.mxu0 %v1029
    %v6328 = vpop.f32.mrf.mxu0
    %v6329 = vadd.f32 %v6316, %v6328
    %v6330 = vpop.f32.mrf.mxu0
    %6331 = vdwg.mxu0
    %6332 = vmatpush.bf16.msra.mxu0 %v4235
    %6333 = vmatpush.bf16.msra.mxu0 %v4233
    %6334 = vmatpush.bf16.msra.mxu0 %v4231
    %6335 = vmatpush.bf16.msra.mxu0 %v4229
    %6336 = vmatpush.bf16.msra.mxu0 %v4227
    %6337 = vmatpush.bf16.msra.mxu0 %v4225
    %6338 = vmatpush.bf16.msra.mxu0 %v4223
    %6339 = vmatpush.bf16.msra.mxu0 %v4221
    %6340 = vmatmul.bf16.gmra.mxu0 %v1030
    %v6341 = vpop.f32.mrf.mxu0
    %v6342 = vadd.f32 %v6329, %v6341
    %v6343 = vpop.f32.mrf.mxu0
    %6344 = vdwg.mxu0
    %6345 = vmatpush.bf16.msra.mxu0 %v4251
    %6346 = vmatpush.bf16.msra.mxu0 %v4249
    %6347 = vmatpush.bf16.msra.mxu0 %v4247
    %6348 = vmatpush.bf16.msra.mxu0 %v4245
    %6349 = vmatpush.bf16.msra.mxu0 %v4243
    %6350 = vmatpush.bf16.msra.mxu0 %v4241
    %6351 = vmatpush.bf16.msra.mxu0 %v4239
    %6352 = vmatpush.bf16.msra.mxu0 %v4237
    %6353 = vmatmul.bf16.gmra.mxu0 %v1031
    %v6354 = vpop.f32.mrf.mxu0
    %v6355 = vadd.f32 %v6342, %v6354
    %v6356 = vpop.f32.mrf.mxu0
    %6357 = vdwg.mxu0
    %6358 = vmatpush.bf16.msra.mxu0 %v4267
    %6359 = vmatpush.bf16.msra.mxu0 %v4265
    %6360 = vmatpush.bf16.msra.mxu0 %v4263
    %6361 = vmatpush.bf16.msra.mxu0 %v4261
    %6362 = vmatpush.bf16.msra.mxu0 %v4259
    %6363 = vmatpush.bf16.msra.mxu0 %v4257
    %6364 = vmatpush.bf16.msra.mxu0 %v4255
    %6365 = vmatpush.bf16.msra.mxu0 %v4253
    %6366 = vmatmul.bf16.gmra.mxu0 %v1032
    %v6367 = vpop.f32.mrf.mxu0
    %v6368 = vadd.f32 %v6355, %v6367
    %v6369 = vpop.f32.mrf.mxu0
    %6370 = vdwg.mxu0
    %6371 = vmatpush.bf16.msra.mxu0 %v4283
    %6372 = vmatpush.bf16.msra.mxu0 %v4281
    %6373 = vmatpush.bf16.msra.mxu0 %v4279
    %6374 = vmatpush.bf16.msra.mxu0 %v4277
    %6375 = vmatpush.bf16.msra.mxu0 %v4275
    %6376 = vmatpush.bf16.msra.mxu0 %v4273
    %6377 = vmatpush.bf16.msra.mxu0 %v4271
    %6378 = vmatpush.bf16.msra.mxu0 %v4269
    %6379 = vmatmul.bf16.gmra.mxu0 %v1033
    %v6380 = vpop.f32.mrf.mxu0
    %v6381 = vadd.f32 %v6368, %v6380
    %v6382 = vpop.f32.mrf.mxu0
    %6383 = vdwg.mxu0
    %v6384 = vmax.f32 %v5731, 0.0
    %v6385 = vmax.f32 %v6381, 0.0
    %v6386 = vld [vmem:[#allocation8] sm:$0x3]
    %v6388 = vperm.slane %v6386, 0
    %v6389 = vperm.slane %v6386, 1
    %v6392 = vmul.f32 %v6384, %v6388
    %v6393 = vmul.f32 %v6385, %v6389
    %v6394 = vadd.f32 %v6392, %v6393
    %6395 = vadd.xlane.f32.xlu0 %v6394
    %v6396 = vpop.xlane.xlu0 %6395
    %s6397 = sld [smem:[#allocation2]]
    %v6398 = vstv %s6397
    %v6399 = vadd.f32 %v6396, %v6398
    %v6400 = vxor.u32 %v6399, 2147483648
    %v6401 = vmul.f32 %v6400, 1.442695
    %v6402 = vpow.pop %v6401
    %v6403 = vadd.f32 %v6402, 1.0
    %v6404 = vrcp.pop %v6403
    %v6405 = vmul.f32 %v6403, %v6404
    %v6406 = vsub.f32 1.0, %v6405
    %v6407 = vmul.f32 %v6404, %v6406
    %v6408 = vadd.f32 %v6404, %v6407
    %vm6409 = vweird.f32 %v6403
    %vm6410 = vweird.f32 %v6404
    %vm6411 = vmor %vm6409, %vm6410
    %v6412 = vsel %vm6411, %v6404, %v6408
    %v6413 = vand.u32 2147483647, %v6403
    %vm6414 = vcmp.eq.f32.partialorder %v6413, 8.507059e+37
    %v6415 = vand.u32 %v6403, 2147483648
    %v6416 = vor.u32 1.1754944e-38, %v6415
    %v6417 = vsel %vm6414, %v6416, %v6412
    %v6418 = vmul.f32 1.0, %v6417
    %vm6419 = vcmask 7168
    %6420 = vst.msk [vmem:[%s5] sm:$0xff] %vm6419, %v6418
    // Predicated region
    $region38: #{pg_forward.1} parent=1 // pred_check
      _
    $region39: #{pg_forward.1} parent=1 // pred_check_branch
      %6422 = sbr.rel (0) target = $region41
    $region40: #{pg_forward.1} parent=1 // pred_region
      _
    $region41: #{pg_forward.1} parent=1 // pred_fallthru
      _
    // Predicated region
    $region42: #{pg_forward.1} parent=1 // pred_check
      _
    $region43: #{pg_forward.1} parent=1 // pred_check_branch
      %6424 = sbr.rel (0) target = $region45
    $region44: #{pg_forward.1} parent=1 // pred_region
      _
    $region45: #{pg_forward.1} parent=1 // pred_fallthru
      _
    %6425 = vsyncpa [#allocation4], 1
    %6426 = vsyncpa [#allocation6], 1
    %6427 = vsyncpa [#allocation9], 1

</llo_original>
